<compile_context>
chip_gen: v7x
topology: tpu7x:2x2x1
jax: 0.10.0
libtpu: 0.0.40
codegen_flags: <defaults>
</compile_context>

<pallas_src>
import functools

import numpy as np

import jax
import jax.numpy as jnp
from jax import lax
from jax.experimental import pallas as pl
from jax.experimental.pallas import tpu as pltpu


Z_DIM = 100
IMG_SHAPE = (1, 28, 28)
OUT_DIM = int(np.prod(IMG_SHAPE))          # 784
HIDDEN = (128, 256, 512, 1024)
BN_EPS = 0.8                               # nn.BatchNorm1d(C, 0.8) -> eps=0.8
LEAKY_SLOPE = 0.2


def _round_up(x, m):
    return ((x + m - 1) // m) * m


def _generator_kernel(z_ref,
                      w1_ref, b1_ref,
                      w2_ref, b2_ref, g2_ref, be2_ref,
                      w3_ref, b3_ref, g3_ref, be3_ref,
                      w4_ref, b4_ref, g4_ref, be4_ref,
                      w5_ref, b5_ref,
                      out_ref, *, n_valid, slope, eps):
    """Whole generator forward. All refs live in VMEM, f32."""
    bp = z_ref.shape[0]
    row = lax.broadcasted_iota(jnp.int32, (bp, 1), 0)
    valid = (row < n_valid).astype(jnp.float32)          # (Bp, 1) row mask
    inv_n = jnp.float32(1.0 / n_valid)

    def leaky(x):
        return jnp.where(x >= 0.0, x, slope * x)

    def batchnorm(x, gamma, beta):
        # Training-mode BN: biased batch variance, per-feature stats.
        # Padding rows are masked out of the statistics.
        xm = x * valid
        mean = jnp.sum(xm, axis=0, keepdims=True) * inv_n
        d = (x - mean) * valid
        var = jnp.sum(d * d, axis=0, keepdims=True) * inv_n
        inv_std = lax.rsqrt(var + eps)                    # EUP, off the VALU path
        return (x - mean) * inv_std * gamma + beta

    # Layer 1: Linear + LeakyReLU  (zero-padded K=100->128 rows of w1)
    h = jnp.dot(z_ref[...], w1_ref[...],
                preferred_element_type=jnp.float32) + b1_ref[...]
    h = leaky(h)
    # Layer 2: Linear + BN + LeakyReLU
    h = jnp.dot(h, w2_ref[...], preferred_element_type=jnp.float32) + b2_ref[...]
    h = leaky(batchnorm(h, g2_ref[...], be2_ref[...]))
    # Layer 3
    h = jnp.dot(h, w3_ref[...], preferred_element_type=jnp.float32) + b3_ref[...]
    h = leaky(batchnorm(h, g3_ref[...], be3_ref[...]))
    # Layer 4
    h = jnp.dot(h, w4_ref[...], preferred_element_type=jnp.float32) + b4_ref[...]
    h = leaky(batchnorm(h, g4_ref[...], be4_ref[...]))
    # Layer 5: Linear + Tanh  (zero-padded N=784->896 cols; tanh(0)=0 in pad)
    h = jnp.dot(h, w5_ref[...], preferred_element_type=jnp.float32) + b5_ref[...]
    out_ref[...] = jnp.tanh(h)


def init_generator_params(key):
    """PyTorch-style uniform(-1/sqrt(fan_in), 1/sqrt(fan_in)) init."""
    dims = (Z_DIM,) + HIDDEN + (OUT_DIM,)
    params = {}
    keys = jax.random.split(key, len(dims) - 1)
    for i, (din, dout) in enumerate(zip(dims[:-1], dims[1:]), start=1):
        kw, kb = jax.random.split(keys[i - 1])
        bound = 1.0 / np.sqrt(din)
        params[f"w{i}"] = jax.random.uniform(kw, (din, dout), jnp.float32,
                                             -bound, bound)
        params[f"b{i}"] = jax.random.uniform(kb, (dout,), jnp.float32,
                                             -bound, bound)
    # BatchNorm affine params for layers 2, 3, 4 (PyTorch default: 1 / 0).
    for i, d in zip((2, 3, 4), HIDDEN[1:]):
        params[f"g{i}"] = jnp.ones((d,), jnp.float32)
        params[f"beta{i}"] = jnp.zeros((d,), jnp.float32)
    return params


def _generator_forward_impl(z, params):
    b = z.shape[0]
    bp = max(8, _round_up(b, 8))
    zin_p = _round_up(Z_DIM, 128)      # 128
    out_p = _round_up(OUT_DIM, 128)    # 896

    z_pad = jnp.zeros((bp, zin_p), jnp.float32).at[:b, :Z_DIM].set(
        z.astype(jnp.float32))
    w1 = jnp.zeros((zin_p, HIDDEN[0]), jnp.float32).at[:Z_DIM, :].set(
        params["w1"])
    w5 = jnp.zeros((HIDDEN[3], out_p), jnp.float32).at[:, :OUT_DIM].set(
        params["w5"])
    b5 = jnp.zeros((1, out_p), jnp.float32).at[:, :OUT_DIM].set(
        params["b5"][None, :])

    def row(v):                         # (D,) -> (1, D) so biases are 2-D
        return v.reshape(1, -1).astype(jnp.float32)

    operands = (
        z_pad,
        w1, row(params["b1"]),
        params["w2"], row(params["b2"]), row(params["g2"]), row(params["beta2"]),
        params["w3"], row(params["b3"]), row(params["g3"]), row(params["beta3"]),
        params["w4"], row(params["b4"]), row(params["g4"]), row(params["beta4"]),
        w5, b5,
    )

    kernel = functools.partial(_generator_kernel, n_valid=b,
                               slope=LEAKY_SLOPE, eps=BN_EPS)
    vmem_spec = pl.BlockSpec(memory_space=pltpu.MemorySpace.VMEM)
    out = pl.pallas_call(
        kernel,
        out_shape=jax.ShapeDtypeStruct((bp, out_p), jnp.float32),
        in_specs=[vmem_spec] * len(operands),
        out_specs=vmem_spec,
        compiler_params=pltpu.CompilerParams(
            vmem_limit_bytes=32 * 1024 * 1024),   # safe on v7x's 64 MiB VMEM
    )(*operands)

    img = out[:b, :OUT_DIM].reshape(b, *IMG_SHAPE)
    return img


generator_forward = jax.jit(_generator_forward_impl)

# TODO(synk): running-mean/var updates of BatchNorm1d (training side effect)
# are not tracked; only the batch-stat normalization of the forward pass is.


def _reference(z, params):
    """Pure NumPy (float64) reference of the PyTorch forward pass."""
    z = np.asarray(z, np.float64)
    p = {k: np.asarray(v, np.float64) for k, v in params.items()}

    def leaky(x):
        return np.where(x >= 0, x, LEAKY_SLOPE * x)

    def bn(x, g, b):
        mean = x.mean(0, keepdims=True)
        var = x.var(0, keepdims=True)           # biased variance (ddof=0)
        return (x - mean) / np.sqrt(var + BN_EPS) * g + b

    h = leaky(z @ p["w1"] + p["b1"])
    h = leaky(bn(h @ p["w2"] + p["b2"], p["g2"], p["beta2"]))
    h = leaky(bn(h @ p["w3"] + p["b3"], p["g3"], p["beta3"]))
    h = leaky(bn(h @ p["w4"] + p["b4"], p["g4"], p["beta4"]))
    h = np.tanh(h @ p["w5"] + p["b5"])
    return h.reshape(z.shape[0], *IMG_SHAPE).astype(np.float32)


if __name__ == "__main__":
    key = jax.random.PRNGKey(0)
    kp, kz = jax.random.split(key)

    params = init_generator_params(kp)
    B = 8
    z = jax.random.normal(kz, (B, Z_DIM), jnp.float32)

    img = jax.block_until_ready(generator_forward(z, params))
    assert img.shape == (B, *IMG_SHAPE), img.shape

    ref = _reference(np.asarray(z), params)
    np.testing.assert_allclose(np.asarray(img), ref, rtol=0.0, atol=2e-2)

    print("KERNEL_OK")
</pallas_src>

<mosaic_0001>
module attributes {stable_mosaic.version = 11 : i64} {
  func.func @_generator_kernel(%arg0: memref<8x128xf32, #tpu.memory_space<vmem>>, %arg1: memref<128x128xf32, #tpu.memory_space<vmem>>, %arg2: memref<1x128xf32, #tpu.memory_space<vmem>>, %arg3: memref<128x256xf32, #tpu.memory_space<vmem>>, %arg4: memref<1x256xf32, #tpu.memory_space<vmem>>, %arg5: memref<1x256xf32, #tpu.memory_space<vmem>>, %arg6: memref<1x256xf32, #tpu.memory_space<vmem>>, %arg7: memref<256x512xf32, #tpu.memory_space<vmem>>, %arg8: memref<1x512xf32, #tpu.memory_space<vmem>>, %arg9: memref<1x512xf32, #tpu.memory_space<vmem>>, %arg10: memref<1x512xf32, #tpu.memory_space<vmem>>, %arg11: memref<512x1024xf32, #tpu.memory_space<vmem>>, %arg12: memref<1x1024xf32, #tpu.memory_space<vmem>>, %arg13: memref<1x1024xf32, #tpu.memory_space<vmem>>, %arg14: memref<1x1024xf32, #tpu.memory_space<vmem>>, %arg15: memref<1024x896xf32, #tpu.memory_space<vmem>>, %arg16: memref<1x896xf32, #tpu.memory_space<vmem>>, %arg17: memref<8x896xf32, #tpu.memory_space<vmem>>) attributes {dimension_semantics = [], scalar_prefetch = 0 : i64, scratch_operands = 0 : i64, tpu.core_type = #tpu.core_type<tc>} {
    %0 = tpu.iota {dimensions = array<i32: 0>} : vector<8x1xi32>
    %c8_i32 = arith.constant 8 : i32
    %1 = vector.broadcast %c8_i32 : i32 to vector<8x1xi32>
    %2 = arith.cmpi slt, %0, %1 : vector<8x1xi32>
    %3 = arith.extui %2 : vector<8x1xi1> to vector<8x1xi32>
    %4 = arith.sitofp %3 : vector<8x1xi32> to vector<8x1xf32>
    %c0 = arith.constant 0 : index
    %c0_0 = arith.constant 0 : index
    %5 = vector.load %arg0[%c0, %c0_0] : memref<8x128xf32, #tpu.memory_space<vmem>>, vector<8x128xf32>
    %c0_1 = arith.constant 0 : index
    %c0_2 = arith.constant 0 : index
    %6 = vector.load %arg1[%c0_1, %c0_2] : memref<128x128xf32, #tpu.memory_space<vmem>>, vector<128x128xf32>
    %cst = arith.constant dense<0.000000e+00> : vector<8x128xf32>
    %7 = tpu.matmul %5, %6, %cst {dimension_numbers = #tpu.dot_dimension_numbers<[1], [0], [0], [1], [0, 0, 1, 1], [], []>} : vector<8x128xf32>, vector<128x128xf32>, vector<8x128xf32> -> vector<8x128xf32>
    %c0_3 = arith.constant 0 : index
    %c0_4 = arith.constant 0 : index
    %8 = vector.load %arg2[%c0_3, %c0_4] : memref<1x128xf32, #tpu.memory_space<vmem>>, vector<1x128xf32>
    %9 = vector.broadcast %8 : vector<1x128xf32> to vector<8x128xf32>
    %10 = arith.addf %7, %9 : vector<8x128xf32>
    %cst_5 = arith.constant 0.000000e+00 : f32
    %11 = vector.broadcast %cst_5 : f32 to vector<8x128xf32>
    %12 = arith.cmpf oge, %10, %11 : vector<8x128xf32>
    %cst_6 = arith.constant 2.000000e-01 : f32
    %13 = vector.broadcast %cst_6 : f32 to vector<8x128xf32>
    %14 = arith.mulf %13, %10 : vector<8x128xf32>
    %15 = arith.select %12, %10, %14 : vector<8x128xi1>, vector<8x128xf32>
    %c0_7 = arith.constant 0 : index
    %c0_8 = arith.constant 0 : index
    %16 = vector.load %arg3[%c0_7, %c0_8] : memref<128x256xf32, #tpu.memory_space<vmem>>, vector<128x256xf32>
    %cst_9 = arith.constant dense<0.000000e+00> : vector<8x256xf32>
    %17 = tpu.matmul %15, %16, %cst_9 {dimension_numbers = #tpu.dot_dimension_numbers<[1], [0], [0], [1], [0, 0, 1, 1], [], []>} : vector<8x128xf32>, vector<128x256xf32>, vector<8x256xf32> -> vector<8x256xf32>
    %c0_10 = arith.constant 0 : index
    %c0_11 = arith.constant 0 : index
    %18 = vector.load %arg4[%c0_10, %c0_11] : memref<1x256xf32, #tpu.memory_space<vmem>>, vector<1x256xf32>
    %19 = vector.broadcast %18 : vector<1x256xf32> to vector<8x256xf32>
    %20 = arith.addf %17, %19 : vector<8x256xf32>
    %c0_12 = arith.constant 0 : index
    %c0_13 = arith.constant 0 : index
    %21 = vector.load %arg5[%c0_12, %c0_13] : memref<1x256xf32, #tpu.memory_space<vmem>>, vector<1x256xf32>
    %c0_14 = arith.constant 0 : index
    %c0_15 = arith.constant 0 : index
    %22 = vector.load %arg6[%c0_14, %c0_15] : memref<1x256xf32, #tpu.memory_space<vmem>>, vector<1x256xf32>
    %23 = vector.broadcast %4 : vector<8x1xf32> to vector<8x256xf32>
    %24 = arith.mulf %20, %23 : vector<8x256xf32>
    %cst_16 = arith.constant dense<0.000000e+00> : vector<256xf32>
    %25 = vector.multi_reduction <add>, %24, %cst_16 [0] : vector<8x256xf32> to vector<256xf32>
    %26 = vector.shape_cast %25 : vector<256xf32> to vector<1x256xf32>
    %cst_17 = arith.constant 1.250000e-01 : f32
    %27 = vector.broadcast %cst_17 : f32 to vector<1x256xf32>
    %28 = arith.mulf %26, %27 : vector<1x256xf32>
    %29 = vector.broadcast %28 : vector<1x256xf32> to vector<8x256xf32>
    %30 = arith.subf %20, %29 : vector<8x256xf32>
    %31 = vector.broadcast %4 : vector<8x1xf32> to vector<8x256xf32>
    %32 = arith.mulf %30, %31 : vector<8x256xf32>
    %33 = arith.mulf %32, %32 : vector<8x256xf32>
    %cst_18 = arith.constant dense<0.000000e+00> : vector<256xf32>
    %34 = vector.multi_reduction <add>, %33, %cst_18 [0] : vector<8x256xf32> to vector<256xf32>
    %35 = vector.shape_cast %34 : vector<256xf32> to vector<1x256xf32>
    %cst_19 = arith.constant 1.250000e-01 : f32
    %36 = vector.broadcast %cst_19 : f32 to vector<1x256xf32>
    %37 = arith.mulf %35, %36 : vector<1x256xf32>
    %cst_20 = arith.constant 8.000000e-01 : f32
    %38 = vector.broadcast %cst_20 : f32 to vector<1x256xf32>
    %39 = arith.addf %37, %38 : vector<1x256xf32>
    %40 = math.rsqrt %39 : vector<1x256xf32>
    %41 = vector.broadcast %28 : vector<1x256xf32> to vector<8x256xf32>
    %42 = arith.subf %20, %41 : vector<8x256xf32>
    %43 = vector.broadcast %40 : vector<1x256xf32> to vector<8x256xf32>
    %44 = arith.mulf %42, %43 : vector<8x256xf32>
    %45 = vector.broadcast %21 : vector<1x256xf32> to vector<8x256xf32>
    %46 = arith.mulf %44, %45 : vector<8x256xf32>
    %47 = vector.broadcast %22 : vector<1x256xf32> to vector<8x256xf32>
    %48 = arith.addf %46, %47 : vector<8x256xf32>
    %cst_21 = arith.constant 0.000000e+00 : f32
    %49 = vector.broadcast %cst_21 : f32 to vector<8x256xf32>
    %50 = arith.cmpf oge, %48, %49 : vector<8x256xf32>
    %cst_22 = arith.constant 2.000000e-01 : f32
    %51 = vector.broadcast %cst_22 : f32 to vector<8x256xf32>
    %52 = arith.mulf %51, %48 : vector<8x256xf32>
    %53 = arith.select %50, %48, %52 : vector<8x256xi1>, vector<8x256xf32>
    %c0_23 = arith.constant 0 : index
    %c0_24 = arith.constant 0 : index
    %54 = vector.load %arg7[%c0_23, %c0_24] : memref<256x512xf32, #tpu.memory_space<vmem>>, vector<256x512xf32>
    %cst_25 = arith.constant dense<0.000000e+00> : vector<8x512xf32>
    %55 = tpu.matmul %53, %54, %cst_25 {dimension_numbers = #tpu.dot_dimension_numbers<[1], [0], [0], [1], [0, 0, 1, 1], [], []>} : vector<8x256xf32>, vector<256x512xf32>, vector<8x512xf32> -> vector<8x512xf32>
    %c0_26 = arith.constant 0 : index
    %c0_27 = arith.constant 0 : index
    %56 = vector.load %arg8[%c0_26, %c0_27] : memref<1x512xf32, #tpu.memory_space<vmem>>, vector<1x512xf32>
    %57 = vector.broadcast %56 : vector<1x512xf32> to vector<8x512xf32>
    %58 = arith.addf %55, %57 : vector<8x512xf32>
    %c0_28 = arith.constant 0 : index
    %c0_29 = arith.constant 0 : index
    %59 = vector.load %arg9[%c0_28, %c0_29] : memref<1x512xf32, #tpu.memory_space<vmem>>, vector<1x512xf32>
    %c0_30 = arith.constant 0 : index
    %c0_31 = arith.constant 0 : index
    %60 = vector.load %arg10[%c0_30, %c0_31] : memref<1x512xf32, #tpu.memory_space<vmem>>, vector<1x512xf32>
    %61 = vector.broadcast %4 : vector<8x1xf32> to vector<8x512xf32>
    %62 = arith.mulf %58, %61 : vector<8x512xf32>
    %cst_32 = arith.constant dense<0.000000e+00> : vector<512xf32>
    %63 = vector.multi_reduction <add>, %62, %cst_32 [0] : vector<8x512xf32> to vector<512xf32>
    %64 = vector.shape_cast %63 : vector<512xf32> to vector<1x512xf32>
    %cst_33 = arith.constant 1.250000e-01 : f32
    %65 = vector.broadcast %cst_33 : f32 to vector<1x512xf32>
    %66 = arith.mulf %64, %65 : vector<1x512xf32>
    %67 = vector.broadcast %66 : vector<1x512xf32> to vector<8x512xf32>
    %68 = arith.subf %58, %67 : vector<8x512xf32>
    %69 = vector.broadcast %4 : vector<8x1xf32> to vector<8x512xf32>
    %70 = arith.mulf %68, %69 : vector<8x512xf32>
    %71 = arith.mulf %70, %70 : vector<8x512xf32>
    %cst_34 = arith.constant dense<0.000000e+00> : vector<512xf32>
    %72 = vector.multi_reduction <add>, %71, %cst_34 [0] : vector<8x512xf32> to vector<512xf32>
    %73 = vector.shape_cast %72 : vector<512xf32> to vector<1x512xf32>
    %cst_35 = arith.constant 1.250000e-01 : f32
    %74 = vector.broadcast %cst_35 : f32 to vector<1x512xf32>
    %75 = arith.mulf %73, %74 : vector<1x512xf32>
    %cst_36 = arith.constant 8.000000e-01 : f32
    %76 = vector.broadcast %cst_36 : f32 to vector<1x512xf32>
    %77 = arith.addf %75, %76 : vector<1x512xf32>
    %78 = math.rsqrt %77 : vector<1x512xf32>
    %79 = vector.broadcast %66 : vector<1x512xf32> to vector<8x512xf32>
    %80 = arith.subf %58, %79 : vector<8x512xf32>
    %81 = vector.broadcast %78 : vector<1x512xf32> to vector<8x512xf32>
    %82 = arith.mulf %80, %81 : vector<8x512xf32>
    %83 = vector.broadcast %59 : vector<1x512xf32> to vector<8x512xf32>
    %84 = arith.mulf %82, %83 : vector<8x512xf32>
    %85 = vector.broadcast %60 : vector<1x512xf32> to vector<8x512xf32>
    %86 = arith.addf %84, %85 : vector<8x512xf32>
    %cst_37 = arith.constant 0.000000e+00 : f32
    %87 = vector.broadcast %cst_37 : f32 to vector<8x512xf32>
    %88 = arith.cmpf oge, %86, %87 : vector<8x512xf32>
    %cst_38 = arith.constant 2.000000e-01 : f32
    %89 = vector.broadcast %cst_38 : f32 to vector<8x512xf32>
    %90 = arith.mulf %89, %86 : vector<8x512xf32>
    %91 = arith.select %88, %86, %90 : vector<8x512xi1>, vector<8x512xf32>
    %c0_39 = arith.constant 0 : index
    %c0_40 = arith.constant 0 : index
    %92 = vector.load %arg11[%c0_39, %c0_40] : memref<512x1024xf32, #tpu.memory_space<vmem>>, vector<512x1024xf32>
    %cst_41 = arith.constant dense<0.000000e+00> : vector<8x1024xf32>
    %93 = tpu.matmul %91, %92, %cst_41 {dimension_numbers = #tpu.dot_dimension_numbers<[1], [0], [0], [1], [0, 0, 1, 1], [], []>} : vector<8x512xf32>, vector<512x1024xf32>, vector<8x1024xf32> -> vector<8x1024xf32>
    %c0_42 = arith.constant 0 : index
    %c0_43 = arith.constant 0 : index
    %94 = vector.load %arg12[%c0_42, %c0_43] : memref<1x1024xf32, #tpu.memory_space<vmem>>, vector<1x1024xf32>
    %95 = vector.broadcast %94 : vector<1x1024xf32> to vector<8x1024xf32>
    %96 = arith.addf %93, %95 : vector<8x1024xf32>
    %c0_44 = arith.constant 0 : index
    %c0_45 = arith.constant 0 : index
    %97 = vector.load %arg13[%c0_44, %c0_45] : memref<1x1024xf32, #tpu.memory_space<vmem>>, vector<1x1024xf32>
    %c0_46 = arith.constant 0 : index
    %c0_47 = arith.constant 0 : index
    %98 = vector.load %arg14[%c0_46, %c0_47] : memref<1x1024xf32, #tpu.memory_space<vmem>>, vector<1x1024xf32>
    %99 = vector.broadcast %4 : vector<8x1xf32> to vector<8x1024xf32>
    %100 = arith.mulf %96, %99 : vector<8x1024xf32>
    %cst_48 = arith.constant dense<0.000000e+00> : vector<1024xf32>
    %101 = vector.multi_reduction <add>, %100, %cst_48 [0] : vector<8x1024xf32> to vector<1024xf32>
    %102 = vector.shape_cast %101 : vector<1024xf32> to vector<1x1024xf32>
    %cst_49 = arith.constant 1.250000e-01 : f32
    %103 = vector.broadcast %cst_49 : f32 to vector<1x1024xf32>
    %104 = arith.mulf %102, %103 : vector<1x1024xf32>
    %105 = vector.broadcast %104 : vector<1x1024xf32> to vector<8x1024xf32>
    %106 = arith.subf %96, %105 : vector<8x1024xf32>
    %107 = vector.broadcast %4 : vector<8x1xf32> to vector<8x1024xf32>
    %108 = arith.mulf %106, %107 : vector<8x1024xf32>
    %109 = arith.mulf %108, %108 : vector<8x1024xf32>
    %cst_50 = arith.constant dense<0.000000e+00> : vector<1024xf32>
    %110 = vector.multi_reduction <add>, %109, %cst_50 [0] : vector<8x1024xf32> to vector<1024xf32>
    %111 = vector.shape_cast %110 : vector<1024xf32> to vector<1x1024xf32>
    %cst_51 = arith.constant 1.250000e-01 : f32
    %112 = vector.broadcast %cst_51 : f32 to vector<1x1024xf32>
    %113 = arith.mulf %111, %112 : vector<1x1024xf32>
    %cst_52 = arith.constant 8.000000e-01 : f32
    %114 = vector.broadcast %cst_52 : f32 to vector<1x1024xf32>
    %115 = arith.addf %113, %114 : vector<1x1024xf32>
    %116 = math.rsqrt %115 : vector<1x1024xf32>
    %117 = vector.broadcast %104 : vector<1x1024xf32> to vector<8x1024xf32>
    %118 = arith.subf %96, %117 : vector<8x1024xf32>
    %119 = vector.broadcast %116 : vector<1x1024xf32> to vector<8x1024xf32>
    %120 = arith.mulf %118, %119 : vector<8x1024xf32>
    %121 = vector.broadcast %97 : vector<1x1024xf32> to vector<8x1024xf32>
    %122 = arith.mulf %120, %121 : vector<8x1024xf32>
    %123 = vector.broadcast %98 : vector<1x1024xf32> to vector<8x1024xf32>
    %124 = arith.addf %122, %123 : vector<8x1024xf32>
    %cst_53 = arith.constant 0.000000e+00 : f32
    %125 = vector.broadcast %cst_53 : f32 to vector<8x1024xf32>
    %126 = arith.cmpf oge, %124, %125 : vector<8x1024xf32>
    %cst_54 = arith.constant 2.000000e-01 : f32
    %127 = vector.broadcast %cst_54 : f32 to vector<8x1024xf32>
    %128 = arith.mulf %127, %124 : vector<8x1024xf32>
    %129 = arith.select %126, %124, %128 : vector<8x1024xi1>, vector<8x1024xf32>
    %c0_55 = arith.constant 0 : index
    %c0_56 = arith.constant 0 : index
    %130 = vector.load %arg15[%c0_55, %c0_56] : memref<1024x896xf32, #tpu.memory_space<vmem>>, vector<1024x896xf32>
    %cst_57 = arith.constant dense<0.000000e+00> : vector<8x896xf32>
    %131 = tpu.matmul %129, %130, %cst_57 {dimension_numbers = #tpu.dot_dimension_numbers<[1], [0], [0], [1], [0, 0, 1, 1], [], []>} : vector<8x1024xf32>, vector<1024x896xf32>, vector<8x896xf32> -> vector<8x896xf32>
    %c0_58 = arith.constant 0 : index
    %c0_59 = arith.constant 0 : index
    %132 = vector.load %arg16[%c0_58, %c0_59] : memref<1x896xf32, #tpu.memory_space<vmem>>, vector<1x896xf32>
    %133 = vector.broadcast %132 : vector<1x896xf32> to vector<8x896xf32>
    %134 = arith.addf %131, %133 : vector<8x896xf32>
    %135 = math.tanh %134 : vector<8x896xf32>
    %c0_60 = arith.constant 0 : index
    %c0_61 = arith.constant 0 : index
    %136 = vector.load %arg17[%c0_60, %c0_61] : memref<8x896xf32, #tpu.memory_space<vmem>>, vector<8x896xf32>
    tpu.vector_store %arg17[%c0_60, %c0_61], %135 {strides = array<i32>} : memref<8x896xf32, #tpu.memory_space<vmem>>, vector<8x896xf32>,
    return
  }
}

</mosaic_0001>

<llo_original>
// kernel: _generator_forward_impl.1
$region0: #{_generator_forward_impl.1}
  #allocation0 [shape = 'u32[]', space=smem, size = 0x4, offset = 0x4, fixed_abs, tag = 'smem constant byte address 0x4 - core index']
  #allocation1 [shape = 'u32[144,128]{1,0:T(1,128)}', space=vmem, size = 0x12000, scoped, tag = 'internal scratch']
  %s0 = inlined_call_operand.vmem [shape: f32[8,128], index: 0, kind: input, shape index: {}]
  %s1 = inlined_call_operand.vmem [shape: f32[128,128], index: 1, kind: input, shape index: {}]
  %s2 = inlined_call_operand.vmem [shape: f32[1,128], index: 2, kind: input, shape index: {}]
  %s3 = inlined_call_operand.vmem [shape: f32[128,256], index: 3, kind: input, shape index: {}]
  %s4 = inlined_call_operand.vmem [shape: f32[1,256], index: 4, kind: input, shape index: {}]
  %s5 = inlined_call_operand.vmem [shape: f32[1,256], index: 5, kind: input, shape index: {}]
  %s6 = inlined_call_operand.vmem [shape: f32[1,256], index: 6, kind: input, shape index: {}]
  %s7 = inlined_call_operand.vmem [shape: f32[256,512], index: 7, kind: input, shape index: {}]
  %s8 = inlined_call_operand.vmem [shape: f32[1,512], index: 8, kind: input, shape index: {}]
  %s9 = inlined_call_operand.vmem [shape: f32[1,512], index: 9, kind: input, shape index: {}]
  %s10 = inlined_call_operand.vmem [shape: f32[1,512], index: 10, kind: input, shape index: {}]
  %s11 = inlined_call_operand.vmem [shape: f32[512,1024], index: 11, kind: input, shape index: {}]
  %s12 = inlined_call_operand.vmem [shape: f32[1,1024], index: 12, kind: input, shape index: {}]
  %s13 = inlined_call_operand.vmem [shape: f32[1,1024], index: 13, kind: input, shape index: {}]
  %s14 = inlined_call_operand.vmem [shape: f32[1,1024], index: 14, kind: input, shape index: {}]
  %s15 = inlined_call_operand.vmem [shape: f32[1024,896], index: 15, kind: input, shape index: {}]
  %s16 = inlined_call_operand.vmem [shape: f32[1,896], index: 16, kind: input, shape index: {}]
  %s17 = inlined_call_operand.vmem [shape: f32[8,896], index: 17, kind: output, shape index: {}]
  %s18 = sld [smem:[#allocation0]]
  $region78: #{_generator_forward_impl.1} parent=0
    _
  %s20 = ssub.s32 1, %s18
  %s21 = scalar_select 0, %s20, %s18
  // Predicated region
  $region2: #{_generator_forward_impl.1} parent=0 // pred_check
    _
  $region3: #{_generator_forward_impl.1} parent=0 // pred_check_branch
    %23 = sbr.rel (0) target = $region5
  $region4: #{_generator_forward_impl.1} parent=0 // pred_region
    _
  $region5: #{_generator_forward_impl.1} parent=0 // pred_fallthru
    _
  // Predicated region
  $region6: #{_generator_forward_impl.1} parent=0 // pred_check
    _
  $region7: #{_generator_forward_impl.1} parent=0 // pred_check_branch
    %25 = sbr.rel (0) target = $region9
  $region8: #{_generator_forward_impl.1} parent=0 // pred_region
    _
  $region9: #{_generator_forward_impl.1} parent=0 // pred_fallthru
    _
  // Predicated region
  $region10: #{_generator_forward_impl.1} parent=0 // pred_check
    _
  $region11: #{_generator_forward_impl.1} parent=0 // pred_check_branch
    %27 = sbr.rel (0) target = $region13
  $region12: #{_generator_forward_impl.1} parent=0 // pred_region
    _
  $region13: #{_generator_forward_impl.1} parent=0 // pred_fallthru
    _
  // Predicated region
  $region14: #{_generator_forward_impl.1} parent=0 // pred_check
    _
  $region15: #{_generator_forward_impl.1} parent=0 // pred_check_branch
    %29 = sbr.rel (0) target = $region17
  $region16: #{_generator_forward_impl.1} parent=0 // pred_region
    _
  $region17: #{_generator_forward_impl.1} parent=0 // pred_fallthru
    _
  // Predicated region
  $region18: #{_generator_forward_impl.1} parent=0 // pred_check
    _
  $region19: #{_generator_forward_impl.1} parent=0 // pred_check_branch
    %31 = sbr.rel (0) target = $region21
  $region20: #{_generator_forward_impl.1} parent=0 // pred_region
    _
  $region21: #{_generator_forward_impl.1} parent=0 // pred_fallthru
    _
  // Predicated region
  $region22: #{_generator_forward_impl.1} parent=0 // pred_check
    _
  $region23: #{_generator_forward_impl.1} parent=0 // pred_check_branch
    %33 = sbr.rel (0) target = $region25
  $region24: #{_generator_forward_impl.1} parent=0 // pred_region
    _
  $region25: #{_generator_forward_impl.1} parent=0 // pred_fallthru
    _
  // Predicated region
  $region26: #{_generator_forward_impl.1} parent=0 // pred_check
    _
  $region27: #{_generator_forward_impl.1} parent=0 // pred_check_branch
    %35 = sbr.rel (0) target = $region29
  $region28: #{_generator_forward_impl.1} parent=0 // pred_region
    _
  $region29: #{_generator_forward_impl.1} parent=0 // pred_fallthru
    _
  // Predicated region
  $region30: #{_generator_forward_impl.1} parent=0 // pred_check
    _
  $region31: #{_generator_forward_impl.1} parent=0 // pred_check_branch
    %37 = sbr.rel (0) target = $region33
  $region32: #{_generator_forward_impl.1} parent=0 // pred_region
    _
  $region33: #{_generator_forward_impl.1} parent=0 // pred_fallthru
    _
  // Predicated region
  $region34: #{_generator_forward_impl.1} parent=0 // pred_check
    _
  $region35: #{_generator_forward_impl.1} parent=0 // pred_check_branch
    %39 = sbr.rel (0) target = $region37
  $region36: #{_generator_forward_impl.1} parent=0 // pred_region
    _
  $region37: #{_generator_forward_impl.1} parent=0 // pred_fallthru
    _
  // Predicated region
  $region38: #{_generator_forward_impl.1} parent=0 // pred_check
    _
  $region39: #{_generator_forward_impl.1} parent=0 // pred_check_branch
    %41 = sbr.rel (0) target = $region41
  $region40: #{_generator_forward_impl.1} parent=0 // pred_region
    _
  $region41: #{_generator_forward_impl.1} parent=0 // pred_fallthru
    _
  // Predicated region
  $region42: #{_generator_forward_impl.1} parent=0 // pred_check
    _
  $region43: #{_generator_forward_impl.1} parent=0 // pred_check_branch
    %43 = sbr.rel (0) target = $region45
  $region44: #{_generator_forward_impl.1} parent=0 // pred_region
    _
  $region45: #{_generator_forward_impl.1} parent=0 // pred_fallthru
    _
  // Predicated region
  $region46: #{_generator_forward_impl.1} parent=0 // pred_check
    _
  $region47: #{_generator_forward_impl.1} parent=0 // pred_check_branch
    %45 = sbr.rel (0) target = $region49
  $region48: #{_generator_forward_impl.1} parent=0 // pred_region
    _
  $region49: #{_generator_forward_impl.1} parent=0 // pred_fallthru
    _
  // Predicated region
  $region50: #{_generator_forward_impl.1} parent=0 // pred_check
    _
  $region51: #{_generator_forward_impl.1} parent=0 // pred_check_branch
    %47 = sbr.rel (0) target = $region53
  $region52: #{_generator_forward_impl.1} parent=0 // pred_region
    _
  $region53: #{_generator_forward_impl.1} parent=0 // pred_fallthru
    _
  // Predicated region
  $region54: #{_generator_forward_impl.1} parent=0 // pred_check
    _
  $region55: #{_generator_forward_impl.1} parent=0 // pred_check_branch
    %49 = sbr.rel (0) target = $region57
  $region56: #{_generator_forward_impl.1} parent=0 // pred_region
    _
  $region57: #{_generator_forward_impl.1} parent=0 // pred_fallthru
    _
  // Predicated region
  $region58: #{_generator_forward_impl.1} parent=0 // pred_check
    _
  $region59: #{_generator_forward_impl.1} parent=0 // pred_check_branch
    %51 = sbr.rel (0) target = $region61
  $region60: #{_generator_forward_impl.1} parent=0 // pred_region
    _
  $region61: #{_generator_forward_impl.1} parent=0 // pred_fallthru
    _
  // Predicated region
  $region62: #{_generator_forward_impl.1} parent=0 // pred_check
    _
  $region63: #{_generator_forward_impl.1} parent=0 // pred_check_branch
    %53 = sbr.rel (0) target = $region65
  $region64: #{_generator_forward_impl.1} parent=0 // pred_region
    _
  $region65: #{_generator_forward_impl.1} parent=0 // pred_fallthru
    _
  // Predicated region
  $region66: #{_generator_forward_impl.1} parent=0 // pred_check
    _
  $region67: #{_generator_forward_impl.1} parent=0 // pred_check_branch
    %55 = sbr.rel (0) target = $region69
  $region68: #{_generator_forward_impl.1} parent=0 // pred_region
    _
  $region69: #{_generator_forward_impl.1} parent=0 // pred_fallthru
    _
  %v56 = vlaneseq
  %v57 = vshrl.u32 %v56, 7
  %vm58 = vcmp.lt.s32.totalorder %v57, 8
  %v59 = vsel %vm58, 1, 0
  %v60 = vcvt.s32.f32 %v59
  %v61 = vld [vmem:[%s0] sm:$0xff]
  %v62 = vld [vmem:[%s1] sm:$0xff]
  %v63 = vld [vmem:[%s1 + $0x8] sm:$0xff]
  %v64 = vld [vmem:[%s1 + $0x10] sm:$0xff]
  %v65 = vld [vmem:[%s1 + $0x18] sm:$0xff]
  %v66 = vld [vmem:[%s1 + $0x20] sm:$0xff]
  %v67 = vld [vmem:[%s1 + $0x28] sm:$0xff]
  %v68 = vld [vmem:[%s1 + $0x30] sm:$0xff]
  %v69 = vld [vmem:[%s1 + $0x38] sm:$0xff]
  %v70 = vld [vmem:[%s1 + $0x40] sm:$0xff]
  %v71 = vld [vmem:[%s1 + $0x48] sm:$0xff]
  %v72 = vld [vmem:[%s1 + $0x50] sm:$0xff]
  %v73 = vld [vmem:[%s1 + $0x58] sm:$0xff]
  %v74 = vld [vmem:[%s1 + $0x60] sm:$0xff]
  %v75 = vld [vmem:[%s1 + $0x68] sm:$0xff]
  %v76 = vld [vmem:[%s1 + $0x70] sm:$0xff]
  %v77 = vld [vmem:[%s1 + $0x78] sm:$0xff]
  %v78 = vld [vmem:[%s2] sm:$0x1]
  %v80 = vlaneseq
  %v81 = vshrl.u32 %v80, 7
  %v82 = vsub.s32 0, %v81
  %v83 = vrot.slane %v78, %v82
  %85 = vmatprep.subr.mxu0 0.0
  %86 = vmatpush1.msra.mxu0 %v62
  %87 = vmatprep.subr.mxu0 0.0
  %88 = vmatpush1.msra.mxu0 %v63
  %89 = vmatprep.subr.mxu0 0.0
  %90 = vmatpush1.msra.mxu0 %v64
  %91 = vmatprep.subr.mxu0 0.0
  %92 = vmatpush1.msra.mxu0 %v65
  %93 = vmatprep.subr.mxu0 0.0
  %94 = vmatpush1.msra.mxu0 %v66
  %95 = vmatprep.subr.mxu0 0.0
  %96 = vmatpush1.msra.mxu0 %v67
  %97 = vmatprep.subr.mxu0 0.0
  %98 = vmatpush1.msra.mxu0 %v68
  %99 = vmatprep.subr.mxu0 0.0
  %100 = vmatpush1.msra.mxu0 %v69
  %101 = vmatprep.subr.mxu0 0.0
  %102 = vmatpush1.msra.mxu0 %v70
  %103 = vmatprep.subr.mxu0 0.0
  %104 = vmatpush1.msra.mxu0 %v71
  %105 = vmatprep.subr.mxu0 0.0
  %106 = vmatpush1.msra.mxu0 %v72
  %107 = vmatprep.subr.mxu0 0.0
  %108 = vmatpush1.msra.mxu0 %v73
  %109 = vmatprep.subr.mxu0 0.0
  %110 = vmatpush1.msra.mxu0 %v74
  %111 = vmatprep.subr.mxu0 0.0
  %112 = vmatpush1.msra.mxu0 %v75
  %113 = vmatprep.subr.mxu0 0.0
  %114 = vmatpush1.msra.mxu0 %v76
  %115 = vmatprep.subr.mxu0 0.0
  %116 = vmatpush1.msra.mxu0 %v77
  %117 = vmatprep.subr.mxu0 0.0
  %118 = vmatpush1.msra.mxu0 0.0
  %119 = vmatprep.subr.mxu0 0.0
  %120 = vmatpush1.msra.mxu0 0.0
  %121 = vmatprep.subr.mxu0 0.0
  %122 = vmatpush1.msra.mxu0 0.0
  %123 = vmatprep.subr.mxu0 0.0
  %124 = vmatpush1.msra.mxu0 0.0
  %125 = vmatprep.subr.mxu0 0.0
  %126 = vmatpush1.msra.mxu0 0.0
  %127 = vmatprep.subr.mxu0 0.0
  %128 = vmatpush1.msra.mxu0 0.0
  %129 = vmatprep.subr.mxu0 0.0
  %130 = vmatpush1.msra.mxu0 0.0
  %131 = vmatprep.subr.mxu0 0.0
  %132 = vmatpush1.msra.mxu0 0.0
  %133 = vmatprep.subr.mxu0 0.0
  %134 = vmatpush1.msra.mxu0 0.0
  %135 = vmatprep.subr.mxu0 0.0
  %136 = vmatpush1.msra.mxu0 0.0
  %137 = vmatprep.subr.mxu0 0.0
  %138 = vmatpush1.msra.mxu0 0.0
  %139 = vmatprep.subr.mxu0 0.0
  %140 = vmatpush1.msra.mxu0 0.0
  %141 = vmatprep.subr.mxu0 0.0
  %142 = vmatpush1.msra.mxu0 0.0
  %143 = vmatprep.subr.mxu0 0.0
  %144 = vmatpush1.msra.mxu0 0.0
  %145 = vmatprep.subr.mxu0 0.0
  %146 = vmatpush1.msra.mxu0 0.0
  %147 = vmatprep.subr.mxu0 0.0
  %148 = vmatpush1.msra.mxu0 0.0
  %149 = vmatprep.mubr.f32.mxu0 0.0
  %150 = vmatmul.mubr.f32.gmra.mrb[0].mxu0 %v61
  %v151 = vpop.f32.mrb[0].mxu0
  %v152 = vadd.f32 %v83, %v151
  %v153 = vpop.f32.mrb[0].mxu0
  %154 = vdwg.mxu0
  %vm155 = vcmp.ge.f32.partialorder %v152, 0.0
  %v156 = vmul.f32 %v152, 0.2
  %v157 = vsel %vm155, %v152, %v156
  %v158 = vld [vmem:[%s3] sm:$0xff]
  %v159 = vld [vmem:[%s3 + $0x8] sm:$0xff]
  %v160 = vld [vmem:[%s3 + $0x10] sm:$0xff]
  %v161 = vld [vmem:[%s3 + $0x18] sm:$0xff]
  %v162 = vld [vmem:[%s3 + $0x20] sm:$0xff]
  %v163 = vld [vmem:[%s3 + $0x28] sm:$0xff]
  %v164 = vld [vmem:[%s3 + $0x30] sm:$0xff]
  %v165 = vld [vmem:[%s3 + $0x38] sm:$0xff]
  %v166 = vld [vmem:[%s3 + $0x40] sm:$0xff]
  %v167 = vld [vmem:[%s3 + $0x48] sm:$0xff]
  %v168 = vld [vmem:[%s3 + $0x50] sm:$0xff]
  %v169 = vld [vmem:[%s3 + $0x58] sm:$0xff]
  %v170 = vld [vmem:[%s3 + $0x60] sm:$0xff]
  %v171 = vld [vmem:[%s3 + $0x68] sm:$0xff]
  %v172 = vld [vmem:[%s3 + $0x70] sm:$0xff]
  %v173 = vld [vmem:[%s3 + $0x78] sm:$0xff]
  %v174 = vld [vmem:[%s3 + $0x80] sm:$0xff]
  %v175 = vld [vmem:[%s3 + $0x88] sm:$0xff]
  %v176 = vld [vmem:[%s3 + $0x90] sm:$0xff]
  %v177 = vld [vmem:[%s3 + $0x98] sm:$0xff]
  %v178 = vld [vmem:[%s3 + $0xa0] sm:$0xff]
  %v179 = vld [vmem:[%s3 + $0xa8] sm:$0xff]
  %v180 = vld [vmem:[%s3 + $0xb0] sm:$0xff]
  %v181 = vld [vmem:[%s3 + $0xb8] sm:$0xff]
  %v182 = vld [vmem:[%s3 + $0xc0] sm:$0xff]
  %v183 = vld [vmem:[%s3 + $0xc8] sm:$0xff]
  %v184 = vld [vmem:[%s3 + $0xd0] sm:$0xff]
  %v185 = vld [vmem:[%s3 + $0xd8] sm:$0xff]
  %v186 = vld [vmem:[%s3 + $0xe0] sm:$0xff]
  %v187 = vld [vmem:[%s3 + $0xe8] sm:$0xff]
  %v188 = vld [vmem:[%s3 + $0xf0] sm:$0xff]
  %v189 = vld [vmem:[%s3 + $0xf8] sm:$0xff]
  %v190 = vld [vmem:[%s4] sm:$0x3]
  %v192 = vlaneseq
  %v193 = vshrl.u32 %v192, 7
  %v194 = vsub.s32 0, %v193
  %v195 = vrot.slane %v190, %v194
  %v196 = vlaneseq
  %v197 = vshrl.u32 %v196, 7
  %v198 = vsub.s32 1, %v197
  %v199 = vrot.slane %v190, %v198
  %202 = vmatprep.subr.mxu0 %v159
  %203 = vmatpush1.msra.mxu0 %v158
  %204 = vmatprep.subr.mxu0 %v161
  %205 = vmatpush1.msra.mxu0 %v160
  %206 = vmatprep.subr.mxu0 %v163
  %207 = vmatpush1.msra.mxu0 %v162
  %208 = vmatprep.subr.mxu0 %v165
  %209 = vmatpush1.msra.mxu0 %v164
  %210 = vmatprep.subr.mxu0 %v167
  %211 = vmatpush1.msra.mxu0 %v166
  %212 = vmatprep.subr.mxu0 %v169
  %213 = vmatpush1.msra.mxu0 %v168
  %214 = vmatprep.subr.mxu0 %v171
  %215 = vmatpush1.msra.mxu0 %v170
  %216 = vmatprep.subr.mxu0 %v173
  %217 = vmatpush1.msra.mxu0 %v172
  %218 = vmatprep.subr.mxu0 %v175
  %219 = vmatpush1.msra.mxu0 %v174
  %220 = vmatprep.subr.mxu0 %v177
  %221 = vmatpush1.msra.mxu0 %v176
  %222 = vmatprep.subr.mxu0 %v179
  %223 = vmatpush1.msra.mxu0 %v178
  %224 = vmatprep.subr.mxu0 %v181
  %225 = vmatpush1.msra.mxu0 %v180
  %226 = vmatprep.subr.mxu0 %v183
  %227 = vmatpush1.msra.mxu0 %v182
  %228 = vmatprep.subr.mxu0 %v185
  %229 = vmatpush1.msra.mxu0 %v184
  %230 = vmatprep.subr.mxu0 %v187
  %231 = vmatpush1.msra.mxu0 %v186
  %232 = vmatprep.subr.mxu0 %v189
  %233 = vmatpush1.msra.mxu0 %v188
  %234 = vmatprep.subr.mxu0 0.0
  %235 = vmatpush1.msra.mxu0 0.0
  %236 = vmatprep.subr.mxu0 0.0
  %237 = vmatpush1.msra.mxu0 0.0
  %238 = vmatprep.subr.mxu0 0.0
  %239 = vmatpush1.msra.mxu0 0.0
  %240 = vmatprep.subr.mxu0 0.0
  %241 = vmatpush1.msra.mxu0 0.0
  %242 = vmatprep.subr.mxu0 0.0
  %243 = vmatpush1.msra.mxu0 0.0
  %244 = vmatprep.subr.mxu0 0.0
  %245 = vmatpush1.msra.mxu0 0.0
  %246 = vmatprep.subr.mxu0 0.0
  %247 = vmatpush1.msra.mxu0 0.0
  %248 = vmatprep.subr.mxu0 0.0
  %249 = vmatpush1.msra.mxu0 0.0
  %250 = vmatprep.subr.mxu0 0.0
  %251 = vmatpush1.msra.mxu0 0.0
  %252 = vmatprep.subr.mxu0 0.0
  %253 = vmatpush1.msra.mxu0 0.0
  %254 = vmatprep.subr.mxu0 0.0
  %255 = vmatpush1.msra.mxu0 0.0
  %256 = vmatprep.subr.mxu0 0.0
  %257 = vmatpush1.msra.mxu0 0.0
  %258 = vmatprep.subr.mxu0 0.0
  %259 = vmatpush1.msra.mxu0 0.0
  %260 = vmatprep.subr.mxu0 0.0
  %261 = vmatpush1.msra.mxu0 0.0
  %262 = vmatprep.subr.mxu0 0.0
  %263 = vmatpush1.msra.mxu0 0.0
  %264 = vmatprep.subr.mxu0 0.0
  %265 = vmatpush1.msra.mxu0 0.0
  %266 = vmatprep.mubr.f32.mxu0 0.0
  %267 = vmatmul.mubr.f32.gmra.mrb[0].mxu0 %v157
  %v268 = vpop.f32.mrb[0].mxu0
  %v269 = vadd.f32 %v195, %v268
  %v270 = vpop.f32.mrb[0].mxu0
  %v271 = vadd.f32 %v199, %v270
  %272 = vdwg.mxu0
  %v273 = vld [vmem:[%s5] sm:$0x3]
  %v274 = vld [vmem:[%s6] sm:$0x3]
  %v275 = vmul.f32 %v269, %v60
  %v276 = vmul.f32 %v271, %v60
  %v277 = vrot.slane %v275, 4
  %v278 = vadd.f32 %v275, %v277
  %v279 = vrot.slane %v278, 2
  %v280 = vadd.f32 %v278, %v279
  %v281 = vrot.slane %v280, 1
  %v282 = vadd.f32 %v280, %v281
  %v283 = vrot.slane %v276, 4
  %v284 = vadd.f32 %v276, %v283
  %v285 = vrot.slane %v284, 2
  %v286 = vadd.f32 %v284, %v285
  %v287 = vrot.slane %v286, 1
  %v288 = vadd.f32 %v286, %v287
  %v289 = vmul.f32 %v282, 0.125
  %v290 = vmul.f32 %v288, 0.125
  %v291 = vsub.f32 %v269, %v289
  %v292 = vsub.f32 %v271, %v290
  %v293 = vmul.f32 %v291, %v60
  %v294 = vmul.f32 %v292, %v60
  %v295 = vmul.f32 %v293, %v293
  %v296 = vmul.f32 %v294, %v294
  %v297 = vrot.slane %v295, 4
  %v298 = vadd.f32 %v295, %v297
  %v299 = vrot.slane %v298, 2
  %v300 = vadd.f32 %v298, %v299
  %v301 = vrot.slane %v300, 1
  %v302 = vadd.f32 %v300, %v301
  %v303 = vrot.slane %v296, 4
  %v304 = vadd.f32 %v296, %v303
  %v305 = vrot.slane %v304, 2
  %v306 = vadd.f32 %v304, %v305
  %v307 = vrot.slane %v306, 1
  %v308 = vadd.f32 %v306, %v307
  %v309 = vmul.f32 %v302, 0.125
  %v310 = vmul.f32 %v308, 0.125
  %v311 = vadd.f32 %v309, 0.8
  %v312 = vadd.f32 %v310, 0.8
  %v313 = vrsqrt.pop %v311
  %v314 = vrsqrt.pop %v312
  %v315 = vmul.f32 %v291, %v313
  %v316 = vmul.f32 %v292, %v314
  %v318 = vlaneseq
  %v319 = vshrl.u32 %v318, 7
  %v320 = vsub.s32 0, %v319
  %v321 = vrot.slane %v273, %v320
  %v322 = vlaneseq
  %v323 = vshrl.u32 %v322, 7
  %v324 = vsub.s32 1, %v323
  %v325 = vrot.slane %v273, %v324
  %v328 = vmul.f32 %v315, %v321
  %v329 = vmul.f32 %v316, %v325
  %v331 = vlaneseq
  %v332 = vshrl.u32 %v331, 7
  %v333 = vsub.s32 0, %v332
  %v334 = vrot.slane %v274, %v333
  %v335 = vlaneseq
  %v336 = vshrl.u32 %v335, 7
  %v337 = vsub.s32 1, %v336
  %v338 = vrot.slane %v274, %v337
  %v341 = vadd.f32 %v328, %v334
  %v342 = vadd.f32 %v329, %v338
  %vm343 = vcmp.ge.f32.partialorder %v341, 0.0
  %vm344 = vcmp.ge.f32.partialorder %v342, 0.0
  %v345 = vmul.f32 %v341, 0.2
  %v346 = vmul.f32 %v342, 0.2
  %v347 = vsel %vm343, %v341, %v345
  %v348 = vsel %vm344, %v342, %v346
  %v349 = vld [vmem:[%s7] sm:$0xff]
  %v350 = vld [vmem:[%s7 + $0x8] sm:$0xff]
  %v351 = vld [vmem:[%s7 + $0x10] sm:$0xff]
  %v352 = vld [vmem:[%s7 + $0x18] sm:$0xff]
  %v353 = vld [vmem:[%s7 + $0x20] sm:$0xff]
  %v354 = vld [vmem:[%s7 + $0x28] sm:$0xff]
  %v355 = vld [vmem:[%s7 + $0x30] sm:$0xff]
  %v356 = vld [vmem:[%s7 + $0x38] sm:$0xff]
  %v357 = vld [vmem:[%s7 + $0x40] sm:$0xff]
  %v358 = vld [vmem:[%s7 + $0x48] sm:$0xff]
  %v359 = vld [vmem:[%s7 + $0x50] sm:$0xff]
  %v360 = vld [vmem:[%s7 + $0x58] sm:$0xff]
  %v361 = vld [vmem:[%s7 + $0x60] sm:$0xff]
  %v362 = vld [vmem:[%s7 + $0x68] sm:$0xff]
  %v363 = vld [vmem:[%s7 + $0x70] sm:$0xff]
  %v364 = vld [vmem:[%s7 + $0x78] sm:$0xff]
  %v365 = vld [vmem:[%s7 + $0x80] sm:$0xff]
  %v366 = vld [vmem:[%s7 + $0x88] sm:$0xff]
  %v367 = vld [vmem:[%s7 + $0x90] sm:$0xff]
  %v368 = vld [vmem:[%s7 + $0x98] sm:$0xff]
  %v369 = vld [vmem:[%s7 + $0xa0] sm:$0xff]
  %v370 = vld [vmem:[%s7 + $0xa8] sm:$0xff]
  %v371 = vld [vmem:[%s7 + $0xb0] sm:$0xff]
  %v372 = vld [vmem:[%s7 + $0xb8] sm:$0xff]
  %v373 = vld [vmem:[%s7 + $0xc0] sm:$0xff]
  %v374 = vld [vmem:[%s7 + $0xc8] sm:$0xff]
  %v375 = vld [vmem:[%s7 + $0xd0] sm:$0xff]
  %v376 = vld [vmem:[%s7 + $0xd8] sm:$0xff]
  %v377 = vld [vmem:[%s7 + $0xe0] sm:$0xff]
  %v378 = vld [vmem:[%s7 + $0xe8] sm:$0xff]
  %v379 = vld [vmem:[%s7 + $0xf0] sm:$0xff]
  %v380 = vld [vmem:[%s7 + $0xf8] sm:$0xff]
  %v381 = vld [vmem:[%s7 + $0x100] sm:$0xff]
  %v382 = vld [vmem:[%s7 + $0x108] sm:$0xff]
  %v383 = vld [vmem:[%s7 + $0x110] sm:$0xff]
  %v384 = vld [vmem:[%s7 + $0x118] sm:$0xff]
  %v385 = vld [vmem:[%s7 + $0x120] sm:$0xff]
  %v386 = vld [vmem:[%s7 + $0x128] sm:$0xff]
  %v387 = vld [vmem:[%s7 + $0x130] sm:$0xff]
  %v388 = vld [vmem:[%s7 + $0x138] sm:$0xff]
  %v389 = vld [vmem:[%s7 + $0x140] sm:$0xff]
  %v390 = vld [vmem:[%s7 + $0x148] sm:$0xff]
  %v391 = vld [vmem:[%s7 + $0x150] sm:$0xff]
  %v392 = vld [vmem:[%s7 + $0x158] sm:$0xff]
  %v393 = vld [vmem:[%s7 + $0x160] sm:$0xff]
  %v394 = vld [vmem:[%s7 + $0x168] sm:$0xff]
  %v395 = vld [vmem:[%s7 + $0x170] sm:$0xff]
  %v396 = vld [vmem:[%s7 + $0x178] sm:$0xff]
  %v397 = vld [vmem:[%s7 + $0x180] sm:$0xff]
  %v398 = vld [vmem:[%s7 + $0x188] sm:$0xff]
  %v399 = vld [vmem:[%s7 + $0x190] sm:$0xff]
  %v400 = vld [vmem:[%s7 + $0x198] sm:$0xff]
  %v401 = vld [vmem:[%s7 + $0x1a0] sm:$0xff]
  %v402 = vld [vmem:[%s7 + $0x1a8] sm:$0xff]
  %v403 = vld [vmem:[%s7 + $0x1b0] sm:$0xff]
  %v404 = vld [vmem:[%s7 + $0x1b8] sm:$0xff]
  %v405 = vld [vmem:[%s7 + $0x1c0] sm:$0xff]
  %v406 = vld [vmem:[%s7 + $0x1c8] sm:$0xff]
  %v407 = vld [vmem:[%s7 + $0x1d0] sm:$0xff]
  %v408 = vld [vmem:[%s7 + $0x1d8] sm:$0xff]
  %v409 = vld [vmem:[%s7 + $0x1e0] sm:$0xff]
  %v410 = vld [vmem:[%s7 + $0x1e8] sm:$0xff]
  %v411 = vld [vmem:[%s7 + $0x1f0] sm:$0xff]
  %v412 = vld [vmem:[%s7 + $0x1f8] sm:$0xff]
  %v413 = vld [vmem:[%s7 + $0x200] sm:$0xff]
  %v414 = vld [vmem:[%s7 + $0x208] sm:$0xff]
  %v415 = vld [vmem:[%s7 + $0x210] sm:$0xff]
  %v416 = vld [vmem:[%s7 + $0x218] sm:$0xff]
  %v417 = vld [vmem:[%s7 + $0x220] sm:$0xff]
  %v418 = vld [vmem:[%s7 + $0x228] sm:$0xff]
  %v419 = vld [vmem:[%s7 + $0x230] sm:$0xff]
  %v420 = vld [vmem:[%s7 + $0x238] sm:$0xff]
  %v421 = vld [vmem:[%s7 + $0x240] sm:$0xff]
  %v422 = vld [vmem:[%s7 + $0x248] sm:$0xff]
  %v423 = vld [vmem:[%s7 + $0x250] sm:$0xff]
  %v424 = vld [vmem:[%s7 + $0x258] sm:$0xff]
  %v425 = vld [vmem:[%s7 + $0x260] sm:$0xff]
  %v426 = vld [vmem:[%s7 + $0x268] sm:$0xff]
  %v427 = vld [vmem:[%s7 + $0x270] sm:$0xff]
  %v428 = vld [vmem:[%s7 + $0x278] sm:$0xff]
  %v429 = vld [vmem:[%s7 + $0x280] sm:$0xff]
  %v430 = vld [vmem:[%s7 + $0x288] sm:$0xff]
  %v431 = vld [vmem:[%s7 + $0x290] sm:$0xff]
  %v432 = vld [vmem:[%s7 + $0x298] sm:$0xff]
  %v433 = vld [vmem:[%s7 + $0x2a0] sm:$0xff]
  %v434 = vld [vmem:[%s7 + $0x2a8] sm:$0xff]
  %v435 = vld [vmem:[%s7 + $0x2b0] sm:$0xff]
  %v436 = vld [vmem:[%s7 + $0x2b8] sm:$0xff]
  %v437 = vld [vmem:[%s7 + $0x2c0] sm:$0xff]
  %v438 = vld [vmem:[%s7 + $0x2c8] sm:$0xff]
  %v439 = vld [vmem:[%s7 + $0x2d0] sm:$0xff]
  %v440 = vld [vmem:[%s7 + $0x2d8] sm:$0xff]
  %v441 = vld [vmem:[%s7 + $0x2e0] sm:$0xff]
  %v442 = vld [vmem:[%s7 + $0x2e8] sm:$0xff]
  %v443 = vld [vmem:[%s7 + $0x2f0] sm:$0xff]
  %v444 = vld [vmem:[%s7 + $0x2f8] sm:$0xff]
  %v445 = vld [vmem:[%s7 + $0x300] sm:$0xff]
  %v446 = vld [vmem:[%s7 + $0x308] sm:$0xff]
  %v447 = vld [vmem:[%s7 + $0x310] sm:$0xff]
  %v448 = vld [vmem:[%s7 + $0x318] sm:$0xff]
  %v449 = vld [vmem:[%s7 + $0x320] sm:$0xff]
  %v450 = vld [vmem:[%s7 + $0x328] sm:$0xff]
  %v451 = vld [vmem:[%s7 + $0x330] sm:$0xff]
  %v452 = vld [vmem:[%s7 + $0x338] sm:$0xff]
  %v453 = vld [vmem:[%s7 + $0x340] sm:$0xff]
  %v454 = vld [vmem:[%s7 + $0x348] sm:$0xff]
  %v455 = vld [vmem:[%s7 + $0x350] sm:$0xff]
  %v456 = vld [vmem:[%s7 + $0x358] sm:$0xff]
  %v457 = vld [vmem:[%s7 + $0x360] sm:$0xff]
  %v458 = vld [vmem:[%s7 + $0x368] sm:$0xff]
  %v459 = vld [vmem:[%s7 + $0x370] sm:$0xff]
  %v460 = vld [vmem:[%s7 + $0x378] sm:$0xff]
  %v461 = vld [vmem:[%s7 + $0x380] sm:$0xff]
  %v462 = vld [vmem:[%s7 + $0x388] sm:$0xff]
  %v463 = vld [vmem:[%s7 + $0x390] sm:$0xff]
  %v464 = vld [vmem:[%s7 + $0x398] sm:$0xff]
  %v465 = vld [vmem:[%s7 + $0x3a0] sm:$0xff]
  %v466 = vld [vmem:[%s7 + $0x3a8] sm:$0xff]
  %v467 = vld [vmem:[%s7 + $0x3b0] sm:$0xff]
  %v468 = vld [vmem:[%s7 + $0x3b8] sm:$0xff]
  %v469 = vld [vmem:[%s7 + $0x3c0] sm:$0xff]
  %v470 = vld [vmem:[%s7 + $0x3c8] sm:$0xff]
  %v471 = vld [vmem:[%s7 + $0x3d0] sm:$0xff]
  %v472 = vld [vmem:[%s7 + $0x3d8] sm:$0xff]
  %v473 = vld [vmem:[%s7 + $0x3e0] sm:$0xff]
  %v474 = vld [vmem:[%s7 + $0x3e8] sm:$0xff]
  %v475 = vld [vmem:[%s7 + $0x3f0] sm:$0xff]
  %v476 = vld [vmem:[%s7 + $0x3f8] sm:$0xff]
  %v477 = vld [vmem:[%s8] sm:$0xf]
  %v479 = vlaneseq
  %v480 = vshrl.u32 %v479, 7
  %v481 = vsub.s32 0, %v480
  %v482 = vrot.slane %v477, %v481
  %v483 = vlaneseq
  %v484 = vshrl.u32 %v483, 7
  %v485 = vsub.s32 1, %v484
  %v486 = vrot.slane %v477, %v485
  %v487 = vlaneseq
  %v488 = vshrl.u32 %v487, 7
  %v489 = vsub.s32 2, %v488
  %v490 = vrot.slane %v477, %v489
  %v491 = vlaneseq
  %v492 = vshrl.u32 %v491, 7
  %v493 = vsub.s32 3, %v492
  %v494 = vrot.slane %v477, %v493
  %499 = vmatprep.subr.mxu0 %v350
  %500 = vmatpush1.msra.mxu0 %v349
  %501 = vmatprep.subr.mxu0 %v354
  %502 = vmatpush1.msra.mxu0 %v353
  %503 = vmatprep.subr.mxu0 %v358
  %504 = vmatpush1.msra.mxu0 %v357
  %505 = vmatprep.subr.mxu0 %v362
  %506 = vmatpush1.msra.mxu0 %v361
  %507 = vmatprep.subr.mxu0 %v366
  %508 = vmatpush1.msra.mxu0 %v365
  %509 = vmatprep.subr.mxu0 %v370
  %510 = vmatpush1.msra.mxu0 %v369
  %511 = vmatprep.subr.mxu0 %v374
  %512 = vmatpush1.msra.mxu0 %v373
  %513 = vmatprep.subr.mxu0 %v378
  %514 = vmatpush1.msra.mxu0 %v377
  %515 = vmatprep.subr.mxu0 %v382
  %516 = vmatpush1.msra.mxu0 %v381
  %517 = vmatprep.subr.mxu0 %v386
  %518 = vmatpush1.msra.mxu0 %v385
  %519 = vmatprep.subr.mxu0 %v390
  %520 = vmatpush1.msra.mxu0 %v389
  %521 = vmatprep.subr.mxu0 %v394
  %522 = vmatpush1.msra.mxu0 %v393
  %523 = vmatprep.subr.mxu0 %v398
  %524 = vmatpush1.msra.mxu0 %v397
  %525 = vmatprep.subr.mxu0 %v402
  %526 = vmatpush1.msra.mxu0 %v401
  %527 = vmatprep.subr.mxu0 %v406
  %528 = vmatpush1.msra.mxu0 %v405
  %529 = vmatprep.subr.mxu0 %v410
  %530 = vmatpush1.msra.mxu0 %v409
  %531 = vmatprep.subr.mxu0 %v414
  %532 = vmatpush1.msra.mxu0 %v413
  %533 = vmatprep.subr.mxu0 %v418
  %534 = vmatpush1.msra.mxu0 %v417
  %535 = vmatprep.subr.mxu0 %v422
  %536 = vmatpush1.msra.mxu0 %v421
  %537 = vmatprep.subr.mxu0 %v426
  %538 = vmatpush1.msra.mxu0 %v425
  %539 = vmatprep.subr.mxu0 %v430
  %540 = vmatpush1.msra.mxu0 %v429
  %541 = vmatprep.subr.mxu0 %v434
  %542 = vmatpush1.msra.mxu0 %v433
  %543 = vmatprep.subr.mxu0 %v438
  %544 = vmatpush1.msra.mxu0 %v437
  %545 = vmatprep.subr.mxu0 %v442
  %546 = vmatpush1.msra.mxu0 %v441
  %547 = vmatprep.subr.mxu0 %v446
  %548 = vmatpush1.msra.mxu0 %v445
  %549 = vmatprep.subr.mxu0 %v450
  %550 = vmatpush1.msra.mxu0 %v449
  %551 = vmatprep.subr.mxu0 %v454
  %552 = vmatpush1.msra.mxu0 %v453
  %553 = vmatprep.subr.mxu0 %v458
  %554 = vmatpush1.msra.mxu0 %v457
  %555 = vmatprep.subr.mxu0 %v462
  %556 = vmatpush1.msra.mxu0 %v461
  %557 = vmatprep.subr.mxu0 %v466
  %558 = vmatpush1.msra.mxu0 %v465
  %559 = vmatprep.subr.mxu0 %v470
  %560 = vmatpush1.msra.mxu0 %v469
  %561 = vmatprep.subr.mxu0 %v474
  %562 = vmatpush1.msra.mxu0 %v473
  %563 = vmatprep.mubr.f32.mxu0 %v348
  %564 = vmatmul.mubr.f32.gmra.mrb[0].mxu0 %v347
  %v565 = vpop.f32.mrb[0].mxu0
  %v566 = vadd.f32 %v482, %v565
  %v567 = vpop.f32.mrb[0].mxu0
  %v568 = vadd.f32 %v486, %v567
  %569 = vdwg.mxu0
  %570 = vmatprep.subr.mxu0 %v352
  %571 = vmatpush1.msra.mxu0 %v351
  %572 = vmatprep.subr.mxu0 %v356
  %573 = vmatpush1.msra.mxu0 %v355
  %574 = vmatprep.subr.mxu0 %v360
  %575 = vmatpush1.msra.mxu0 %v359
  %576 = vmatprep.subr.mxu0 %v364
  %577 = vmatpush1.msra.mxu0 %v363
  %578 = vmatprep.subr.mxu0 %v368
  %579 = vmatpush1.msra.mxu0 %v367
  %580 = vmatprep.subr.mxu0 %v372
  %581 = vmatpush1.msra.mxu0 %v371
  %582 = vmatprep.subr.mxu0 %v376
  %583 = vmatpush1.msra.mxu0 %v375
  %584 = vmatprep.subr.mxu0 %v380
  %585 = vmatpush1.msra.mxu0 %v379
  %586 = vmatprep.subr.mxu0 %v384
  %587 = vmatpush1.msra.mxu0 %v383
  %588 = vmatprep.subr.mxu0 %v388
  %589 = vmatpush1.msra.mxu0 %v387
  %590 = vmatprep.subr.mxu0 %v392
  %591 = vmatpush1.msra.mxu0 %v391
  %592 = vmatprep.subr.mxu0 %v396
  %593 = vmatpush1.msra.mxu0 %v395
  %594 = vmatprep.subr.mxu0 %v400
  %595 = vmatpush1.msra.mxu0 %v399
  %596 = vmatprep.subr.mxu0 %v404
  %597 = vmatpush1.msra.mxu0 %v403
  %598 = vmatprep.subr.mxu0 %v408
  %599 = vmatpush1.msra.mxu0 %v407
  %600 = vmatprep.subr.mxu0 %v412
  %601 = vmatpush1.msra.mxu0 %v411
  %602 = vmatprep.subr.mxu0 %v416
  %603 = vmatpush1.msra.mxu0 %v415
  %604 = vmatprep.subr.mxu0 %v420
  %605 = vmatpush1.msra.mxu0 %v419
  %606 = vmatprep.subr.mxu0 %v424
  %607 = vmatpush1.msra.mxu0 %v423
  %608 = vmatprep.subr.mxu0 %v428
  %609 = vmatpush1.msra.mxu0 %v427
  %610 = vmatprep.subr.mxu0 %v432
  %611 = vmatpush1.msra.mxu0 %v431
  %612 = vmatprep.subr.mxu0 %v436
  %613 = vmatpush1.msra.mxu0 %v435
  %614 = vmatprep.subr.mxu0 %v440
  %615 = vmatpush1.msra.mxu0 %v439
  %616 = vmatprep.subr.mxu0 %v444
  %617 = vmatpush1.msra.mxu0 %v443
  %618 = vmatprep.subr.mxu0 %v448
  %619 = vmatpush1.msra.mxu0 %v447
  %620 = vmatprep.subr.mxu0 %v452
  %621 = vmatpush1.msra.mxu0 %v451
  %622 = vmatprep.subr.mxu0 %v456
  %623 = vmatpush1.msra.mxu0 %v455
  %624 = vmatprep.subr.mxu0 %v460
  %625 = vmatpush1.msra.mxu0 %v459
  %626 = vmatprep.subr.mxu0 %v464
  %627 = vmatpush1.msra.mxu0 %v463
  %628 = vmatprep.subr.mxu0 %v468
  %629 = vmatpush1.msra.mxu0 %v467
  %630 = vmatprep.subr.mxu0 %v472
  %631 = vmatpush1.msra.mxu0 %v471
  %632 = vmatprep.subr.mxu0 %v476
  %633 = vmatpush1.msra.mxu0 %v475
  %634 = vmatprep.mubr.f32.mxu0 %v348
  %635 = vmatmul.mubr.f32.gmra.mrb[0].mxu0 %v347
  %v636 = vpop.f32.mrb[0].mxu0
  %v637 = vadd.f32 %v490, %v636
  %v638 = vpop.f32.mrb[0].mxu0
  %v639 = vadd.f32 %v494, %v638
  %640 = vdwg.mxu0
  %v641 = vld [vmem:[%s9] sm:$0xf]
  %v642 = vld [vmem:[%s10] sm:$0xf]
  %v643 = vmul.f32 %v566, %v60
  %v644 = vmul.f32 %v568, %v60
  %v645 = vmul.f32 %v637, %v60
  %v646 = vmul.f32 %v639, %v60
  %v647 = vrot.slane %v643, 4
  %v648 = vadd.f32 %v643, %v647
  %v649 = vrot.slane %v648, 2
  %v650 = vadd.f32 %v648, %v649
  %v651 = vrot.slane %v650, 1
  %v652 = vadd.f32 %v650, %v651
  %v653 = vrot.slane %v644, 4
  %v654 = vadd.f32 %v644, %v653
  %v655 = vrot.slane %v654, 2
  %v656 = vadd.f32 %v654, %v655
  %v657 = vrot.slane %v656, 1
  %v658 = vadd.f32 %v656, %v657
  %v659 = vrot.slane %v645, 4
  %v660 = vadd.f32 %v645, %v659
  %v661 = vrot.slane %v660, 2
  %v662 = vadd.f32 %v660, %v661
  %v663 = vrot.slane %v662, 1
  %v664 = vadd.f32 %v662, %v663
  %v665 = vrot.slane %v646, 4
  %v666 = vadd.f32 %v646, %v665
  %v667 = vrot.slane %v666, 2
  %v668 = vadd.f32 %v666, %v667
  %v669 = vrot.slane %v668, 1
  %v670 = vadd.f32 %v668, %v669
  %v671 = vmul.f32 %v652, 0.125
  %v672 = vmul.f32 %v658, 0.125
  %v673 = vmul.f32 %v664, 0.125
  %v674 = vmul.f32 %v670, 0.125
  %v675 = vsub.f32 %v566, %v671
  %v676 = vsub.f32 %v568, %v672
  %v677 = vsub.f32 %v637, %v673
  %v678 = vsub.f32 %v639, %v674
  %v679 = vmul.f32 %v675, %v60
  %v680 = vmul.f32 %v676, %v60
  %v681 = vmul.f32 %v677, %v60
  %v682 = vmul.f32 %v678, %v60
  %v683 = vmul.f32 %v679, %v679
  %v684 = vmul.f32 %v680, %v680
  %v685 = vmul.f32 %v681, %v681
  %v686 = vmul.f32 %v682, %v682
  %v687 = vrot.slane %v683, 4
  %v688 = vadd.f32 %v683, %v687
  %v689 = vrot.slane %v688, 2
  %v690 = vadd.f32 %v688, %v689
  %v691 = vrot.slane %v690, 1
  %v692 = vadd.f32 %v690, %v691
  %v693 = vrot.slane %v684, 4
  %v694 = vadd.f32 %v684, %v693
  %v695 = vrot.slane %v694, 2
  %v696 = vadd.f32 %v694, %v695
  %v697 = vrot.slane %v696, 1
  %v698 = vadd.f32 %v696, %v697
  %v699 = vrot.slane %v685, 4
  %v700 = vadd.f32 %v685, %v699
  %v701 = vrot.slane %v700, 2
  %v702 = vadd.f32 %v700, %v701
  %v703 = vrot.slane %v702, 1
  %v704 = vadd.f32 %v702, %v703
  %v705 = vrot.slane %v686, 4
  %v706 = vadd.f32 %v686, %v705
  %v707 = vrot.slane %v706, 2
  %v708 = vadd.f32 %v706, %v707
  %v709 = vrot.slane %v708, 1
  %v710 = vadd.f32 %v708, %v709
  %v711 = vmul.f32 %v692, 0.125
  %v712 = vmul.f32 %v698, 0.125
  %v713 = vmul.f32 %v704, 0.125
  %v714 = vmul.f32 %v710, 0.125
  %v715 = vadd.f32 %v711, 0.8
  %v716 = vadd.f32 %v712, 0.8
  %v717 = vadd.f32 %v713, 0.8
  %v718 = vadd.f32 %v714, 0.8
  %v719 = vrsqrt.pop %v715
  %v720 = vrsqrt.pop %v716
  %v721 = vrsqrt.pop %v717
  %v722 = vrsqrt.pop %v718
  %v723 = vmul.f32 %v675, %v719
  %v724 = vmul.f32 %v676, %v720
  %v725 = vmul.f32 %v677, %v721
  %v726 = vmul.f32 %v678, %v722
  %v728 = vlaneseq
  %v729 = vshrl.u32 %v728, 7
  %v730 = vsub.s32 0, %v729
  %v731 = vrot.slane %v641, %v730
  %v732 = vlaneseq
  %v733 = vshrl.u32 %v732, 7
  %v734 = vsub.s32 1, %v733
  %v735 = vrot.slane %v641, %v734
  %v736 = vlaneseq
  %v737 = vshrl.u32 %v736, 7
  %v738 = vsub.s32 2, %v737
  %v739 = vrot.slane %v641, %v738
  %v740 = vlaneseq
  %v741 = vshrl.u32 %v740, 7
  %v742 = vsub.s32 3, %v741
  %v743 = vrot.slane %v641, %v742
  %v748 = vmul.f32 %v723, %v731
  %v749 = vmul.f32 %v724, %v735
  %v750 = vmul.f32 %v725, %v739
  %v751 = vmul.f32 %v726, %v743
  %v753 = vlaneseq
  %v754 = vshrl.u32 %v753, 7
  %v755 = vsub.s32 0, %v754
  %v756 = vrot.slane %v642, %v755
  %v757 = vlaneseq
  %v758 = vshrl.u32 %v757, 7
  %v759 = vsub.s32 1, %v758
  %v760 = vrot.slane %v642, %v759
  %v761 = vlaneseq
  %v762 = vshrl.u32 %v761, 7
  %v763 = vsub.s32 2, %v762
  %v764 = vrot.slane %v642, %v763
  %v765 = vlaneseq
  %v766 = vshrl.u32 %v765, 7
  %v767 = vsub.s32 3, %v766
  %v768 = vrot.slane %v642, %v767
  %v773 = vadd.f32 %v748, %v756
  %v774 = vadd.f32 %v749, %v760
  %v775 = vadd.f32 %v750, %v764
  %v776 = vadd.f32 %v751, %v768
  %vm777 = vcmp.ge.f32.partialorder %v773, 0.0
  %vm778 = vcmp.ge.f32.partialorder %v774, 0.0
  %vm779 = vcmp.ge.f32.partialorder %v775, 0.0
  %vm780 = vcmp.ge.f32.partialorder %v776, 0.0
  %v781 = vmul.f32 %v773, 0.2
  %v782 = vmul.f32 %v774, 0.2
  %v783 = vmul.f32 %v775, 0.2
  %v784 = vmul.f32 %v776, 0.2
  %v785 = vsel %vm777, %v773, %v781
  %v786 = vsel %vm778, %v774, %v782
  %v787 = vsel %vm779, %v775, %v783
  %v788 = vsel %vm780, %v776, %v784
  %v789 = vld [vmem:[%s11] sm:$0xff]
  %v790 = vld [vmem:[%s11 + $0x8] sm:$0xff]
  %v791 = vld [vmem:[%s11 + $0x10] sm:$0xff]
  %v792 = vld [vmem:[%s11 + $0x18] sm:$0xff]
  %v793 = vld [vmem:[%s11 + $0x20] sm:$0xff]
  %v794 = vld [vmem:[%s11 + $0x28] sm:$0xff]
  %v795 = vld [vmem:[%s11 + $0x30] sm:$0xff]
  %v796 = vld [vmem:[%s11 + $0x38] sm:$0xff]
  %v797 = vld [vmem:[%s11 + $0x40] sm:$0xff]
  %v798 = vld [vmem:[%s11 + $0x48] sm:$0xff]
  %v799 = vld [vmem:[%s11 + $0x50] sm:$0xff]
  %v800 = vld [vmem:[%s11 + $0x58] sm:$0xff]
  %v801 = vld [vmem:[%s11 + $0x60] sm:$0xff]
  %v802 = vld [vmem:[%s11 + $0x68] sm:$0xff]
  %v803 = vld [vmem:[%s11 + $0x70] sm:$0xff]
  %v804 = vld [vmem:[%s11 + $0x78] sm:$0xff]
  %v805 = vld [vmem:[%s11 + $0x80] sm:$0xff]
  %v806 = vld [vmem:[%s11 + $0x88] sm:$0xff]
  %v807 = vld [vmem:[%s11 + $0x90] sm:$0xff]
  %v808 = vld [vmem:[%s11 + $0x98] sm:$0xff]
  %v809 = vld [vmem:[%s11 + $0xa0] sm:$0xff]
  %v810 = vld [vmem:[%s11 + $0xa8] sm:$0xff]
  %v811 = vld [vmem:[%s11 + $0xb0] sm:$0xff]
  %v812 = vld [vmem:[%s11 + $0xb8] sm:$0xff]
  %v813 = vld [vmem:[%s11 + $0xc0] sm:$0xff]
  %v814 = vld [vmem:[%s11 + $0xc8] sm:$0xff]
  %v815 = vld [vmem:[%s11 + $0xd0] sm:$0xff]
  %v816 = vld [vmem:[%s11 + $0xd8] sm:$0xff]
  %v817 = vld [vmem:[%s11 + $0xe0] sm:$0xff]
  %v818 = vld [vmem:[%s11 + $0xe8] sm:$0xff]
  %v819 = vld [vmem:[%s11 + $0xf0] sm:$0xff]
  %v820 = vld [vmem:[%s11 + $0xf8] sm:$0xff]
  %v821 = vld [vmem:[%s11 + $0x100] sm:$0xff]
  %v822 = vld [vmem:[%s11 + $0x108] sm:$0xff]
  %v823 = vld [vmem:[%s11 + $0x110] sm:$0xff]
  %v824 = vld [vmem:[%s11 + $0x118] sm:$0xff]
  %v825 = vld [vmem:[%s11 + $0x120] sm:$0xff]
  %v826 = vld [vmem:[%s11 + $0x128] sm:$0xff]
  %v827 = vld [vmem:[%s11 + $0x130] sm:$0xff]
  %v828 = vld [vmem:[%s11 + $0x138] sm:$0xff]
  %v829 = vld [vmem:[%s11 + $0x140] sm:$0xff]
  %v830 = vld [vmem:[%s11 + $0x148] sm:$0xff]
  %v831 = vld [vmem:[%s11 + $0x150] sm:$0xff]
  %v832 = vld [vmem:[%s11 + $0x158] sm:$0xff]
  %v833 = vld [vmem:[%s11 + $0x160] sm:$0xff]
  %v834 = vld [vmem:[%s11 + $0x168] sm:$0xff]
  %v835 = vld [vmem:[%s11 + $0x170] sm:$0xff]
  %v836 = vld [vmem:[%s11 + $0x178] sm:$0xff]
  %v837 = vld [vmem:[%s11 + $0x180] sm:$0xff]
  %v838 = vld [vmem:[%s11 + $0x188] sm:$0xff]
  %v839 = vld [vmem:[%s11 + $0x190] sm:$0xff]
  %v840 = vld [vmem:[%s11 + $0x198] sm:$0xff]
  %v841 = vld [vmem:[%s11 + $0x1a0] sm:$0xff]
  %v842 = vld [vmem:[%s11 + $0x1a8] sm:$0xff]
  %v843 = vld [vmem:[%s11 + $0x1b0] sm:$0xff]
  %v844 = vld [vmem:[%s11 + $0x1b8] sm:$0xff]
  %v845 = vld [vmem:[%s11 + $0x1c0] sm:$0xff]
  %v846 = vld [vmem:[%s11 + $0x1c8] sm:$0xff]
  %v847 = vld [vmem:[%s11 + $0x1d0] sm:$0xff]
  %v848 = vld [vmem:[%s11 + $0x1d8] sm:$0xff]
  %v849 = vld [vmem:[%s11 + $0x1e0] sm:$0xff]
  %v850 = vld [vmem:[%s11 + $0x1e8] sm:$0xff]
  %v851 = vld [vmem:[%s11 + $0x1f0] sm:$0xff]
  %v852 = vld [vmem:[%s11 + $0x1f8] sm:$0xff]
  %v853 = vld [vmem:[%s11 + $0x200] sm:$0xff]
  %v854 = vld [vmem:[%s11 + $0x208] sm:$0xff]
  %v855 = vld [vmem:[%s11 + $0x210] sm:$0xff]
  %v856 = vld [vmem:[%s11 + $0x218] sm:$0xff]
  %v857 = vld [vmem:[%s11 + $0x220] sm:$0xff]
  %v858 = vld [vmem:[%s11 + $0x228] sm:$0xff]
  %v859 = vld [vmem:[%s11 + $0x230] sm:$0xff]
  %v860 = vld [vmem:[%s11 + $0x238] sm:$0xff]
  %v861 = vld [vmem:[%s11 + $0x240] sm:$0xff]
  %v862 = vld [vmem:[%s11 + $0x248] sm:$0xff]
  %v863 = vld [vmem:[%s11 + $0x250] sm:$0xff]
  %v864 = vld [vmem:[%s11 + $0x258] sm:$0xff]
  %v865 = vld [vmem:[%s11 + $0x260] sm:$0xff]
  %v866 = vld [vmem:[%s11 + $0x268] sm:$0xff]
  %v867 = vld [vmem:[%s11 + $0x270] sm:$0xff]
  %v868 = vld [vmem:[%s11 + $0x278] sm:$0xff]
  %v869 = vld [vmem:[%s11 + $0x280] sm:$0xff]
  %v870 = vld [vmem:[%s11 + $0x288] sm:$0xff]
  %v871 = vld [vmem:[%s11 + $0x290] sm:$0xff]
  %v872 = vld [vmem:[%s11 + $0x298] sm:$0xff]
  %v873 = vld [vmem:[%s11 + $0x2a0] sm:$0xff]
  %v874 = vld [vmem:[%s11 + $0x2a8] sm:$0xff]
  %v875 = vld [vmem:[%s11 + $0x2b0] sm:$0xff]
  %v876 = vld [vmem:[%s11 + $0x2b8] sm:$0xff]
  %v877 = vld [vmem:[%s11 + $0x2c0] sm:$0xff]
  %v878 = vld [vmem:[%s11 + $0x2c8] sm:$0xff]
  %v879 = vld [vmem:[%s11 + $0x2d0] sm:$0xff]
  %v880 = vld [vmem:[%s11 + $0x2d8] sm:$0xff]
  %v881 = vld [vmem:[%s11 + $0x2e0] sm:$0xff]
  %v882 = vld [vmem:[%s11 + $0x2e8] sm:$0xff]
  %v883 = vld [vmem:[%s11 + $0x2f0] sm:$0xff]
  %v884 = vld [vmem:[%s11 + $0x2f8] sm:$0xff]
  %v885 = vld [vmem:[%s11 + $0x300] sm:$0xff]
  %v886 = vld [vmem:[%s11 + $0x308] sm:$0xff]
  %v887 = vld [vmem:[%s11 + $0x310] sm:$0xff]
  %v888 = vld [vmem:[%s11 + $0x318] sm:$0xff]
  %v889 = vld [vmem:[%s11 + $0x320] sm:$0xff]
  %v890 = vld [vmem:[%s11 + $0x328] sm:$0xff]
  %v891 = vld [vmem:[%s11 + $0x330] sm:$0xff]
  %v892 = vld [vmem:[%s11 + $0x338] sm:$0xff]
  %v893 = vld [vmem:[%s11 + $0x340] sm:$0xff]
  %v894 = vld [vmem:[%s11 + $0x348] sm:$0xff]
  %v895 = vld [vmem:[%s11 + $0x350] sm:$0xff]
  %v896 = vld [vmem:[%s11 + $0x358] sm:$0xff]
  %v897 = vld [vmem:[%s11 + $0x360] sm:$0xff]
  %v898 = vld [vmem:[%s11 + $0x368] sm:$0xff]
  %v899 = vld [vmem:[%s11 + $0x370] sm:$0xff]
  %v900 = vld [vmem:[%s11 + $0x378] sm:$0xff]
  %v901 = vld [vmem:[%s11 + $0x380] sm:$0xff]
  %v902 = vld [vmem:[%s11 + $0x388] sm:$0xff]
  %v903 = vld [vmem:[%s11 + $0x390] sm:$0xff]
  %v904 = vld [vmem:[%s11 + $0x398] sm:$0xff]
  %v905 = vld [vmem:[%s11 + $0x3a0] sm:$0xff]
  %v906 = vld [vmem:[%s11 + $0x3a8] sm:$0xff]
  %v907 = vld [vmem:[%s11 + $0x3b0] sm:$0xff]
  %v908 = vld [vmem:[%s11 + $0x3b8] sm:$0xff]
  %v909 = vld [vmem:[%s11 + $0x3c0] sm:$0xff]
  %v910 = vld [vmem:[%s11 + $0x3c8] sm:$0xff]
  %v911 = vld [vmem:[%s11 + $0x3d0] sm:$0xff]
  %v912 = vld [vmem:[%s11 + $0x3d8] sm:$0xff]
  %v913 = vld [vmem:[%s11 + $0x3e0] sm:$0xff]
  %v914 = vld [vmem:[%s11 + $0x3e8] sm:$0xff]
  %v915 = vld [vmem:[%s11 + $0x3f0] sm:$0xff]
  %v916 = vld [vmem:[%s11 + $0x3f8] sm:$0xff]
  %v917 = vld [vmem:[%s11 + $0x400] sm:$0xff]
  %v918 = vld [vmem:[%s11 + $0x408] sm:$0xff]
  %v919 = vld [vmem:[%s11 + $0x410] sm:$0xff]
  %v920 = vld [vmem:[%s11 + $0x418] sm:$0xff]
  %v921 = vld [vmem:[%s11 + $0x420] sm:$0xff]
  %v922 = vld [vmem:[%s11 + $0x428] sm:$0xff]
  %v923 = vld [vmem:[%s11 + $0x430] sm:$0xff]
  %v924 = vld [vmem:[%s11 + $0x438] sm:$0xff]
  %v925 = vld [vmem:[%s11 + $0x440] sm:$0xff]
  %v926 = vld [vmem:[%s11 + $0x448] sm:$0xff]
  %v927 = vld [vmem:[%s11 + $0x450] sm:$0xff]
  %v928 = vld [vmem:[%s11 + $0x458] sm:$0xff]
  %v929 = vld [vmem:[%s11 + $0x460] sm:$0xff]
  %v930 = vld [vmem:[%s11 + $0x468] sm:$0xff]
  %v931 = vld [vmem:[%s11 + $0x470] sm:$0xff]
  %v932 = vld [vmem:[%s11 + $0x478] sm:$0xff]
  %v933 = vld [vmem:[%s11 + $0x480] sm:$0xff]
  %v934 = vld [vmem:[%s11 + $0x488] sm:$0xff]
  %v935 = vld [vmem:[%s11 + $0x490] sm:$0xff]
  %v936 = vld [vmem:[%s11 + $0x498] sm:$0xff]
  %v937 = vld [vmem:[%s11 + $0x4a0] sm:$0xff]
  %v938 = vld [vmem:[%s11 + $0x4a8] sm:$0xff]
  %v939 = vld [vmem:[%s11 + $0x4b0] sm:$0xff]
  %v940 = vld [vmem:[%s11 + $0x4b8] sm:$0xff]
  %v941 = vld [vmem:[%s11 + $0x4c0] sm:$0xff]
  %v942 = vld [vmem:[%s11 + $0x4c8] sm:$0xff]
  %v943 = vld [vmem:[%s11 + $0x4d0] sm:$0xff]
  %v944 = vld [vmem:[%s11 + $0x4d8] sm:$0xff]
  %v945 = vld [vmem:[%s11 + $0x4e0] sm:$0xff]
  %v946 = vld [vmem:[%s11 + $0x4e8] sm:$0xff]
  %v947 = vld [vmem:[%s11 + $0x4f0] sm:$0xff]
  %v948 = vld [vmem:[%s11 + $0x4f8] sm:$0xff]
  %v949 = vld [vmem:[%s11 + $0x500] sm:$0xff]
  %v950 = vld [vmem:[%s11 + $0x508] sm:$0xff]
  %v951 = vld [vmem:[%s11 + $0x510] sm:$0xff]
  %v952 = vld [vmem:[%s11 + $0x518] sm:$0xff]
  %v953 = vld [vmem:[%s11 + $0x520] sm:$0xff]
  %v954 = vld [vmem:[%s11 + $0x528] sm:$0xff]
  %v955 = vld [vmem:[%s11 + $0x530] sm:$0xff]
  %v956 = vld [vmem:[%s11 + $0x538] sm:$0xff]
  %v957 = vld [vmem:[%s11 + $0x540] sm:$0xff]
  %v958 = vld [vmem:[%s11 + $0x548] sm:$0xff]
  %v959 = vld [vmem:[%s11 + $0x550] sm:$0xff]
  %v960 = vld [vmem:[%s11 + $0x558] sm:$0xff]
  %v961 = vld [vmem:[%s11 + $0x560] sm:$0xff]
  %v962 = vld [vmem:[%s11 + $0x568] sm:$0xff]
  %v963 = vld [vmem:[%s11 + $0x570] sm:$0xff]
  %v964 = vld [vmem:[%s11 + $0x578] sm:$0xff]
  %v965 = vld [vmem:[%s11 + $0x580] sm:$0xff]
  %v966 = vld [vmem:[%s11 + $0x588] sm:$0xff]
  %v967 = vld [vmem:[%s11 + $0x590] sm:$0xff]
  %v968 = vld [vmem:[%s11 + $0x598] sm:$0xff]
  %v969 = vld [vmem:[%s11 + $0x5a0] sm:$0xff]
  %v970 = vld [vmem:[%s11 + $0x5a8] sm:$0xff]
  %v971 = vld [vmem:[%s11 + $0x5b0] sm:$0xff]
  %v972 = vld [vmem:[%s11 + $0x5b8] sm:$0xff]
  %v973 = vld [vmem:[%s11 + $0x5c0] sm:$0xff]
  %v974 = vld [vmem:[%s11 + $0x5c8] sm:$0xff]
  %v975 = vld [vmem:[%s11 + $0x5d0] sm:$0xff]
  %v976 = vld [vmem:[%s11 + $0x5d8] sm:$0xff]
  %v977 = vld [vmem:[%s11 + $0x5e0] sm:$0xff]
  %v978 = vld [vmem:[%s11 + $0x5e8] sm:$0xff]
  %v979 = vld [vmem:[%s11 + $0x5f0] sm:$0xff]
  %v980 = vld [vmem:[%s11 + $0x5f8] sm:$0xff]
  %v981 = vld [vmem:[%s11 + $0x600] sm:$0xff]
  %v982 = vld [vmem:[%s11 + $0x608] sm:$0xff]
  %v983 = vld [vmem:[%s11 + $0x610] sm:$0xff]
  %v984 = vld [vmem:[%s11 + $0x618] sm:$0xff]
  %v985 = vld [vmem:[%s11 + $0x620] sm:$0xff]
  %v986 = vld [vmem:[%s11 + $0x628] sm:$0xff]
  %v987 = vld [vmem:[%s11 + $0x630] sm:$0xff]
  %v988 = vld [vmem:[%s11 + $0x638] sm:$0xff]
  %v989 = vld [vmem:[%s11 + $0x640] sm:$0xff]
  %v990 = vld [vmem:[%s11 + $0x648] sm:$0xff]
  %v991 = vld [vmem:[%s11 + $0x650] sm:$0xff]
  %v992 = vld [vmem:[%s11 + $0x658] sm:$0xff]
  %v993 = vld [vmem:[%s11 + $0x660] sm:$0xff]
  %v994 = vld [vmem:[%s11 + $0x668] sm:$0xff]
  %v995 = vld [vmem:[%s11 + $0x670] sm:$0xff]
  %v996 = vld [vmem:[%s11 + $0x678] sm:$0xff]
  %v997 = vld [vmem:[%s11 + $0x680] sm:$0xff]
  %v998 = vld [vmem:[%s11 + $0x688] sm:$0xff]
  %v999 = vld [vmem:[%s11 + $0x690] sm:$0xff]
  %v1000 = vld [vmem:[%s11 + $0x698] sm:$0xff]
  %v1001 = vld [vmem:[%s11 + $0x6a0] sm:$0xff]
  %v1002 = vld [vmem:[%s11 + $0x6a8] sm:$0xff]
  %v1003 = vld [vmem:[%s11 + $0x6b0] sm:$0xff]
  %v1004 = vld [vmem:[%s11 + $0x6b8] sm:$0xff]
  %v1005 = vld [vmem:[%s11 + $0x6c0] sm:$0xff]
  %v1006 = vld [vmem:[%s11 + $0x6c8] sm:$0xff]
  %v1007 = vld [vmem:[%s11 + $0x6d0] sm:$0xff]
  %v1008 = vld [vmem:[%s11 + $0x6d8] sm:$0xff]
  %v1009 = vld [vmem:[%s11 + $0x6e0] sm:$0xff]
  %v1010 = vld [vmem:[%s11 + $0x6e8] sm:$0xff]
  %v1011 = vld [vmem:[%s11 + $0x6f0] sm:$0xff]
  %v1012 = vld [vmem:[%s11 + $0x6f8] sm:$0xff]
  %v1013 = vld [vmem:[%s11 + $0x700] sm:$0xff]
  %v1014 = vld [vmem:[%s11 + $0x708] sm:$0xff]
  %v1015 = vld [vmem:[%s11 + $0x710] sm:$0xff]
  %v1016 = vld [vmem:[%s11 + $0x718] sm:$0xff]
  %v1017 = vld [vmem:[%s11 + $0x720] sm:$0xff]
  %v1018 = vld [vmem:[%s11 + $0x728] sm:$0xff]
  %v1019 = vld [vmem:[%s11 + $0x730] sm:$0xff]
  %v1020 = vld [vmem:[%s11 + $0x738] sm:$0xff]
  %v1021 = vld [vmem:[%s11 + $0x740] sm:$0xff]
  %v1022 = vld [vmem:[%s11 + $0x748] sm:$0xff]
  %v1023 = vld [vmem:[%s11 + $0x750] sm:$0xff]
  %v1024 = vld [vmem:[%s11 + $0x758] sm:$0xff]
  %v1025 = vld [vmem:[%s11 + $0x760] sm:$0xff]
  %v1026 = vld [vmem:[%s11 + $0x768] sm:$0xff]
  %v1027 = vld [vmem:[%s11 + $0x770] sm:$0xff]
  %v1028 = vld [vmem:[%s11 + $0x778] sm:$0xff]
  %v1029 = vld [vmem:[%s11 + $0x780] sm:$0xff]
  %v1030 = vld [vmem:[%s11 + $0x788] sm:$0xff]
  %v1031 = vld [vmem:[%s11 + $0x790] sm:$0xff]
  %v1032 = vld [vmem:[%s11 + $0x798] sm:$0xff]
  %v1033 = vld [vmem:[%s11 + $0x7a0] sm:$0xff]
  %v1034 = vld [vmem:[%s11 + $0x7a8] sm:$0xff]
  %v1035 = vld [vmem:[%s11 + $0x7b0] sm:$0xff]
  %v1036 = vld [vmem:[%s11 + $0x7b8] sm:$0xff]
  %v1037 = vld [vmem:[%s11 + $0x7c0] sm:$0xff]
  %v1038 = vld [vmem:[%s11 + $0x7c8] sm:$0xff]
  %v1039 = vld [vmem:[%s11 + $0x7d0] sm:$0xff]
  %v1040 = vld [vmem:[%s11 + $0x7d8] sm:$0xff]
  %v1041 = vld [vmem:[%s11 + $0x7e0] sm:$0xff]
  %v1042 = vld [vmem:[%s11 + $0x7e8] sm:$0xff]
  %v1043 = vld [vmem:[%s11 + $0x7f0] sm:$0xff]
  %v1044 = vld [vmem:[%s11 + $0x7f8] sm:$0xff]
  %v1045 = vld [vmem:[%s11 + $0x800] sm:$0xff]
  %v1046 = vld [vmem:[%s11 + $0x808] sm:$0xff]
  %v1047 = vld [vmem:[%s11 + $0x810] sm:$0xff]
  %v1048 = vld [vmem:[%s11 + $0x818] sm:$0xff]
  %v1049 = vld [vmem:[%s11 + $0x820] sm:$0xff]
  %v1050 = vld [vmem:[%s11 + $0x828] sm:$0xff]
  %v1051 = vld [vmem:[%s11 + $0x830] sm:$0xff]
  %v1052 = vld [vmem:[%s11 + $0x838] sm:$0xff]
  %v1053 = vld [vmem:[%s11 + $0x840] sm:$0xff]
  %v1054 = vld [vmem:[%s11 + $0x848] sm:$0xff]
  %v1055 = vld [vmem:[%s11 + $0x850] sm:$0xff]
  %v1056 = vld [vmem:[%s11 + $0x858] sm:$0xff]
  %v1057 = vld [vmem:[%s11 + $0x860] sm:$0xff]
  %v1058 = vld [vmem:[%s11 + $0x868] sm:$0xff]
  %v1059 = vld [vmem:[%s11 + $0x870] sm:$0xff]
  %v1060 = vld [vmem:[%s11 + $0x878] sm:$0xff]
  %v1061 = vld [vmem:[%s11 + $0x880] sm:$0xff]
  %v1062 = vld [vmem:[%s11 + $0x888] sm:$0xff]
  %v1063 = vld [vmem:[%s11 + $0x890] sm:$0xff]
  %v1064 = vld [vmem:[%s11 + $0x898] sm:$0xff]
  %v1065 = vld [vmem:[%s11 + $0x8a0] sm:$0xff]
  %v1066 = vld [vmem:[%s11 + $0x8a8] sm:$0xff]
  %v1067 = vld [vmem:[%s11 + $0x8b0] sm:$0xff]
  %v1068 = vld [vmem:[%s11 + $0x8b8] sm:$0xff]
  %v1069 = vld [vmem:[%s11 + $0x8c0] sm:$0xff]
  %v1070 = vld [vmem:[%s11 + $0x8c8] sm:$0xff]
  %v1071 = vld [vmem:[%s11 + $0x8d0] sm:$0xff]
  %v1072 = vld [vmem:[%s11 + $0x8d8] sm:$0xff]
  %v1073 = vld [vmem:[%s11 + $0x8e0] sm:$0xff]
  %v1074 = vld [vmem:[%s11 + $0x8e8] sm:$0xff]
  %v1075 = vld [vmem:[%s11 + $0x8f0] sm:$0xff]
  %v1076 = vld [vmem:[%s11 + $0x8f8] sm:$0xff]
  %v1077 = vld [vmem:[%s11 + $0x900] sm:$0xff]
  %v1078 = vld [vmem:[%s11 + $0x908] sm:$0xff]
  %v1079 = vld [vmem:[%s11 + $0x910] sm:$0xff]
  %v1080 = vld [vmem:[%s11 + $0x918] sm:$0xff]
  %v1081 = vld [vmem:[%s11 + $0x920] sm:$0xff]
  %v1082 = vld [vmem:[%s11 + $0x928] sm:$0xff]
  %v1083 = vld [vmem:[%s11 + $0x930] sm:$0xff]
  %v1084 = vld [vmem:[%s11 + $0x938] sm:$0xff]
  %v1085 = vld [vmem:[%s11 + $0x940] sm:$0xff]
  %v1086 = vld [vmem:[%s11 + $0x948] sm:$0xff]
  %v1087 = vld [vmem:[%s11 + $0x950] sm:$0xff]
  %v1088 = vld [vmem:[%s11 + $0x958] sm:$0xff]
  %v1089 = vld [vmem:[%s11 + $0x960] sm:$0xff]
  %v1090 = vld [vmem:[%s11 + $0x968] sm:$0xff]
  %v1091 = vld [vmem:[%s11 + $0x970] sm:$0xff]
  %v1092 = vld [vmem:[%s11 + $0x978] sm:$0xff]
  %v1093 = vld [vmem:[%s11 + $0x980] sm:$0xff]
  %v1094 = vld [vmem:[%s11 + $0x988] sm:$0xff]
  %v1095 = vld [vmem:[%s11 + $0x990] sm:$0xff]
  %v1096 = vld [vmem:[%s11 + $0x998] sm:$0xff]
  %v1097 = vld [vmem:[%s11 + $0x9a0] sm:$0xff]
  %v1098 = vld [vmem:[%s11 + $0x9a8] sm:$0xff]
  %v1099 = vld [vmem:[%s11 + $0x9b0] sm:$0xff]
  %v1100 = vld [vmem:[%s11 + $0x9b8] sm:$0xff]
  %v1101 = vld [vmem:[%s11 + $0x9c0] sm:$0xff]
  %v1102 = vld [vmem:[%s11 + $0x9c8] sm:$0xff]
  %v1103 = vld [vmem:[%s11 + $0x9d0] sm:$0xff]
  %v1104 = vld [vmem:[%s11 + $0x9d8] sm:$0xff]
  %v1105 = vld [vmem:[%s11 + $0x9e0] sm:$0xff]
  %v1106 = vld [vmem:[%s11 + $0x9e8] sm:$0xff]
  %v1107 = vld [vmem:[%s11 + $0x9f0] sm:$0xff]
  %v1108 = vld [vmem:[%s11 + $0x9f8] sm:$0xff]
  %v1109 = vld [vmem:[%s11 + $0xa00] sm:$0xff]
  %v1110 = vld [vmem:[%s11 + $0xa08] sm:$0xff]
  %v1111 = vld [vmem:[%s11 + $0xa10] sm:$0xff]
  %v1112 = vld [vmem:[%s11 + $0xa18] sm:$0xff]
  %v1113 = vld [vmem:[%s11 + $0xa20] sm:$0xff]
  %v1114 = vld [vmem:[%s11 + $0xa28] sm:$0xff]
  %v1115 = vld [vmem:[%s11 + $0xa30] sm:$0xff]
  %v1116 = vld [vmem:[%s11 + $0xa38] sm:$0xff]
  %v1117 = vld [vmem:[%s11 + $0xa40] sm:$0xff]
  %v1118 = vld [vmem:[%s11 + $0xa48] sm:$0xff]
  %v1119 = vld [vmem:[%s11 + $0xa50] sm:$0xff]
  %v1120 = vld [vmem:[%s11 + $0xa58] sm:$0xff]
  %v1121 = vld [vmem:[%s11 + $0xa60] sm:$0xff]
  %v1122 = vld [vmem:[%s11 + $0xa68] sm:$0xff]
  %v1123 = vld [vmem:[%s11 + $0xa70] sm:$0xff]
  %v1124 = vld [vmem:[%s11 + $0xa78] sm:$0xff]
  %v1125 = vld [vmem:[%s11 + $0xa80] sm:$0xff]
  %v1126 = vld [vmem:[%s11 + $0xa88] sm:$0xff]
  %v1127 = vld [vmem:[%s11 + $0xa90] sm:$0xff]
  %v1128 = vld [vmem:[%s11 + $0xa98] sm:$0xff]
  %v1129 = vld [vmem:[%s11 + $0xaa0] sm:$0xff]
  %v1130 = vld [vmem:[%s11 + $0xaa8] sm:$0xff]
  %v1131 = vld [vmem:[%s11 + $0xab0] sm:$0xff]
  %v1132 = vld [vmem:[%s11 + $0xab8] sm:$0xff]
  %v1133 = vld [vmem:[%s11 + $0xac0] sm:$0xff]
  %v1134 = vld [vmem:[%s11 + $0xac8] sm:$0xff]
  %v1135 = vld [vmem:[%s11 + $0xad0] sm:$0xff]
  %v1136 = vld [vmem:[%s11 + $0xad8] sm:$0xff]
  %v1137 = vld [vmem:[%s11 + $0xae0] sm:$0xff]
  %v1138 = vld [vmem:[%s11 + $0xae8] sm:$0xff]
  %v1139 = vld [vmem:[%s11 + $0xaf0] sm:$0xff]
  %v1140 = vld [vmem:[%s11 + $0xaf8] sm:$0xff]
  %v1141 = vld [vmem:[%s11 + $0xb00] sm:$0xff]
  %v1142 = vld [vmem:[%s11 + $0xb08] sm:$0xff]
  %v1143 = vld [vmem:[%s11 + $0xb10] sm:$0xff]
  %v1144 = vld [vmem:[%s11 + $0xb18] sm:$0xff]
  %v1145 = vld [vmem:[%s11 + $0xb20] sm:$0xff]
  %v1146 = vld [vmem:[%s11 + $0xb28] sm:$0xff]
  %v1147 = vld [vmem:[%s11 + $0xb30] sm:$0xff]
  %v1148 = vld [vmem:[%s11 + $0xb38] sm:$0xff]
  %v1149 = vld [vmem:[%s11 + $0xb40] sm:$0xff]
  %v1150 = vld [vmem:[%s11 + $0xb48] sm:$0xff]
  %v1151 = vld [vmem:[%s11 + $0xb50] sm:$0xff]
  %v1152 = vld [vmem:[%s11 + $0xb58] sm:$0xff]
  %v1153 = vld [vmem:[%s11 + $0xb60] sm:$0xff]
  %v1154 = vld [vmem:[%s11 + $0xb68] sm:$0xff]
  %v1155 = vld [vmem:[%s11 + $0xb70] sm:$0xff]
  %v1156 = vld [vmem:[%s11 + $0xb78] sm:$0xff]
  %v1157 = vld [vmem:[%s11 + $0xb80] sm:$0xff]
  %v1158 = vld [vmem:[%s11 + $0xb88] sm:$0xff]
  %v1159 = vld [vmem:[%s11 + $0xb90] sm:$0xff]
  %v1160 = vld [vmem:[%s11 + $0xb98] sm:$0xff]
  %v1161 = vld [vmem:[%s11 + $0xba0] sm:$0xff]
  %v1162 = vld [vmem:[%s11 + $0xba8] sm:$0xff]
  %v1163 = vld [vmem:[%s11 + $0xbb0] sm:$0xff]
  %v1164 = vld [vmem:[%s11 + $0xbb8] sm:$0xff]
  %v1165 = vld [vmem:[%s11 + $0xbc0] sm:$0xff]
  %v1166 = vld [vmem:[%s11 + $0xbc8] sm:$0xff]
  %v1167 = vld [vmem:[%s11 + $0xbd0] sm:$0xff]
  %v1168 = vld [vmem:[%s11 + $0xbd8] sm:$0xff]
  %v1169 = vld [vmem:[%s11 + $0xbe0] sm:$0xff]
  %v1170 = vld [vmem:[%s11 + $0xbe8] sm:$0xff]
  %v1171 = vld [vmem:[%s11 + $0xbf0] sm:$0xff]
  %v1172 = vld [vmem:[%s11 + $0xbf8] sm:$0xff]
  %v1173 = vld [vmem:[%s11 + $0xc00] sm:$0xff]
  %v1174 = vld [vmem:[%s11 + $0xc08] sm:$0xff]
  %v1175 = vld [vmem:[%s11 + $0xc10] sm:$0xff]
  %v1176 = vld [vmem:[%s11 + $0xc18] sm:$0xff]
  %v1177 = vld [vmem:[%s11 + $0xc20] sm:$0xff]
  %v1178 = vld [vmem:[%s11 + $0xc28] sm:$0xff]
  %v1179 = vld [vmem:[%s11 + $0xc30] sm:$0xff]
  %v1180 = vld [vmem:[%s11 + $0xc38] sm:$0xff]
  %v1181 = vld [vmem:[%s11 + $0xc40] sm:$0xff]
  %v1182 = vld [vmem:[%s11 + $0xc48] sm:$0xff]
  %v1183 = vld [vmem:[%s11 + $0xc50] sm:$0xff]
  %v1184 = vld [vmem:[%s11 + $0xc58] sm:$0xff]
  %v1185 = vld [vmem:[%s11 + $0xc60] sm:$0xff]
  %v1186 = vld [vmem:[%s11 + $0xc68] sm:$0xff]
  %v1187 = vld [vmem:[%s11 + $0xc70] sm:$0xff]
  %v1188 = vld [vmem:[%s11 + $0xc78] sm:$0xff]
  %v1189 = vld [vmem:[%s11 + $0xc80] sm:$0xff]
  %v1190 = vld [vmem:[%s11 + $0xc88] sm:$0xff]
  %v1191 = vld [vmem:[%s11 + $0xc90] sm:$0xff]
  %v1192 = vld [vmem:[%s11 + $0xc98] sm:$0xff]
  %v1193 = vld [vmem:[%s11 + $0xca0] sm:$0xff]
  %v1194 = vld [vmem:[%s11 + $0xca8] sm:$0xff]
  %v1195 = vld [vmem:[%s11 + $0xcb0] sm:$0xff]
  %v1196 = vld [vmem:[%s11 + $0xcb8] sm:$0xff]
  %v1197 = vld [vmem:[%s11 + $0xcc0] sm:$0xff]
  %v1198 = vld [vmem:[%s11 + $0xcc8] sm:$0xff]
  %v1199 = vld [vmem:[%s11 + $0xcd0] sm:$0xff]
  %v1200 = vld [vmem:[%s11 + $0xcd8] sm:$0xff]
  %v1201 = vld [vmem:[%s11 + $0xce0] sm:$0xff]
  %v1202 = vld [vmem:[%s11 + $0xce8] sm:$0xff]
  %v1203 = vld [vmem:[%s11 + $0xcf0] sm:$0xff]
  %v1204 = vld [vmem:[%s11 + $0xcf8] sm:$0xff]
  %v1205 = vld [vmem:[%s11 + $0xd00] sm:$0xff]
  %v1206 = vld [vmem:[%s11 + $0xd08] sm:$0xff]
  %v1207 = vld [vmem:[%s11 + $0xd10] sm:$0xff]
  %v1208 = vld [vmem:[%s11 + $0xd18] sm:$0xff]
  %v1209 = vld [vmem:[%s11 + $0xd20] sm:$0xff]
  %v1210 = vld [vmem:[%s11 + $0xd28] sm:$0xff]
  %v1211 = vld [vmem:[%s11 + $0xd30] sm:$0xff]
  %v1212 = vld [vmem:[%s11 + $0xd38] sm:$0xff]
  %v1213 = vld [vmem:[%s11 + $0xd40] sm:$0xff]
  %v1214 = vld [vmem:[%s11 + $0xd48] sm:$0xff]
  %v1215 = vld [vmem:[%s11 + $0xd50] sm:$0xff]
  %v1216 = vld [vmem:[%s11 + $0xd58] sm:$0xff]
  %v1217 = vld [vmem:[%s11 + $0xd60] sm:$0xff]
  %v1218 = vld [vmem:[%s11 + $0xd68] sm:$0xff]
  %v1219 = vld [vmem:[%s11 + $0xd70] sm:$0xff]
  %v1220 = vld [vmem:[%s11 + $0xd78] sm:$0xff]
  %v1221 = vld [vmem:[%s11 + $0xd80] sm:$0xff]
  %v1222 = vld [vmem:[%s11 + $0xd88] sm:$0xff]
  %v1223 = vld [vmem:[%s11 + $0xd90] sm:$0xff]
  %v1224 = vld [vmem:[%s11 + $0xd98] sm:$0xff]
  %v1225 = vld [vmem:[%s11 + $0xda0] sm:$0xff]
  %v1226 = vld [vmem:[%s11 + $0xda8] sm:$0xff]
  %v1227 = vld [vmem:[%s11 + $0xdb0] sm:$0xff]
  %v1228 = vld [vmem:[%s11 + $0xdb8] sm:$0xff]
  %v1229 = vld [vmem:[%s11 + $0xdc0] sm:$0xff]
  %v1230 = vld [vmem:[%s11 + $0xdc8] sm:$0xff]
  %v1231 = vld [vmem:[%s11 + $0xdd0] sm:$0xff]
  %v1232 = vld [vmem:[%s11 + $0xdd8] sm:$0xff]
  %v1233 = vld [vmem:[%s11 + $0xde0] sm:$0xff]
  %v1234 = vld [vmem:[%s11 + $0xde8] sm:$0xff]
  %v1235 = vld [vmem:[%s11 + $0xdf0] sm:$0xff]
  %v1236 = vld [vmem:[%s11 + $0xdf8] sm:$0xff]
  %v1237 = vld [vmem:[%s11 + $0xe00] sm:$0xff]
  %v1238 = vld [vmem:[%s11 + $0xe08] sm:$0xff]
  %v1239 = vld [vmem:[%s11 + $0xe10] sm:$0xff]
  %v1240 = vld [vmem:[%s11 + $0xe18] sm:$0xff]
  %v1241 = vld [vmem:[%s11 + $0xe20] sm:$0xff]
  %v1242 = vld [vmem:[%s11 + $0xe28] sm:$0xff]
  %v1243 = vld [vmem:[%s11 + $0xe30] sm:$0xff]
  %v1244 = vld [vmem:[%s11 + $0xe38] sm:$0xff]
  %v1245 = vld [vmem:[%s11 + $0xe40] sm:$0xff]
  %v1246 = vld [vmem:[%s11 + $0xe48] sm:$0xff]
  %v1247 = vld [vmem:[%s11 + $0xe50] sm:$0xff]
  %v1248 = vld [vmem:[%s11 + $0xe58] sm:$0xff]
  %v1249 = vld [vmem:[%s11 + $0xe60] sm:$0xff]
  %v1250 = vld [vmem:[%s11 + $0xe68] sm:$0xff]
  %v1251 = vld [vmem:[%s11 + $0xe70] sm:$0xff]
  %v1252 = vld [vmem:[%s11 + $0xe78] sm:$0xff]
  %v1253 = vld [vmem:[%s11 + $0xe80] sm:$0xff]
  %v1254 = vld [vmem:[%s11 + $0xe88] sm:$0xff]
  %v1255 = vld [vmem:[%s11 + $0xe90] sm:$0xff]
  %v1256 = vld [vmem:[%s11 + $0xe98] sm:$0xff]
  %v1257 = vld [vmem:[%s11 + $0xea0] sm:$0xff]
  %v1258 = vld [vmem:[%s11 + $0xea8] sm:$0xff]
  %v1259 = vld [vmem:[%s11 + $0xeb0] sm:$0xff]
  %v1260 = vld [vmem:[%s11 + $0xeb8] sm:$0xff]
  %v1261 = vld [vmem:[%s11 + $0xec0] sm:$0xff]
  %v1262 = vld [vmem:[%s11 + $0xec8] sm:$0xff]
  %v1263 = vld [vmem:[%s11 + $0xed0] sm:$0xff]
  %v1264 = vld [vmem:[%s11 + $0xed8] sm:$0xff]
  %v1265 = vld [vmem:[%s11 + $0xee0] sm:$0xff]
  %v1266 = vld [vmem:[%s11 + $0xee8] sm:$0xff]
  %v1267 = vld [vmem:[%s11 + $0xef0] sm:$0xff]
  %v1268 = vld [vmem:[%s11 + $0xef8] sm:$0xff]
  %v1269 = vld [vmem:[%s11 + $0xf00] sm:$0xff]
  %v1270 = vld [vmem:[%s11 + $0xf08] sm:$0xff]
  %v1271 = vld [vmem:[%s11 + $0xf10] sm:$0xff]
  %v1272 = vld [vmem:[%s11 + $0xf18] sm:$0xff]
  %v1273 = vld [vmem:[%s11 + $0xf20] sm:$0xff]
  %v1274 = vld [vmem:[%s11 + $0xf28] sm:$0xff]
  %v1275 = vld [vmem:[%s11 + $0xf30] sm:$0xff]
  %v1276 = vld [vmem:[%s11 + $0xf38] sm:$0xff]
  %v1277 = vld [vmem:[%s11 + $0xf40] sm:$0xff]
  %v1278 = vld [vmem:[%s11 + $0xf48] sm:$0xff]
  %v1279 = vld [vmem:[%s11 + $0xf50] sm:$0xff]
  %v1280 = vld [vmem:[%s11 + $0xf58] sm:$0xff]
  %v1281 = vld [vmem:[%s11 + $0xf60] sm:$0xff]
  %v1282 = vld [vmem:[%s11 + $0xf68] sm:$0xff]
  %v1283 = vld [vmem:[%s11 + $0xf70] sm:$0xff]
  %v1284 = vld [vmem:[%s11 + $0xf78] sm:$0xff]
  %v1285 = vld [vmem:[%s11 + $0xf80] sm:$0xff]
  %v1286 = vld [vmem:[%s11 + $0xf88] sm:$0xff]
  %v1287 = vld [vmem:[%s11 + $0xf90] sm:$0xff]
  %v1288 = vld [vmem:[%s11 + $0xf98] sm:$0xff]
  %v1289 = vld [vmem:[%s11 + $0xfa0] sm:$0xff]
  %v1290 = vld [vmem:[%s11 + $0xfa8] sm:$0xff]
  %v1291 = vld [vmem:[%s11 + $0xfb0] sm:$0xff]
  %v1292 = vld [vmem:[%s11 + $0xfb8] sm:$0xff]
  %v1293 = vld [vmem:[%s11 + $0xfc0] sm:$0xff]
  %v1294 = vld [vmem:[%s11 + $0xfc8] sm:$0xff]
  %v1295 = vld [vmem:[%s11 + $0xfd0] sm:$0xff]
  %v1296 = vld [vmem:[%s11 + $0xfd8] sm:$0xff]
  %v1297 = vld [vmem:[%s11 + $0xfe0] sm:$0xff]
  %v1298 = vld [vmem:[%s11 + $0xfe8] sm:$0xff]
  %v1299 = vld [vmem:[%s11 + $0xff0] sm:$0xff]
  %v1300 = vld [vmem:[%s11 + $0xff8] sm:$0xff]
  %v1301 = vld [vmem:[%s12] sm:$0xff]
  %v1303 = vlaneseq
  %v1304 = vshrl.u32 %v1303, 7
  %v1305 = vsub.s32 0, %v1304
  %v1306 = vrot.slane %v1301, %v1305
  %v1307 = vlaneseq
  %v1308 = vshrl.u32 %v1307, 7
  %v1309 = vsub.s32 1, %v1308
  %v1310 = vrot.slane %v1301, %v1309
  %v1311 = vlaneseq
  %v1312 = vshrl.u32 %v1311, 7
  %v1313 = vsub.s32 2, %v1312
  %v1314 = vrot.slane %v1301, %v1313
  %v1315 = vlaneseq
  %v1316 = vshrl.u32 %v1315, 7
  %v1317 = vsub.s32 3, %v1316
  %v1318 = vrot.slane %v1301, %v1317
  %v1319 = vlaneseq
  %v1320 = vshrl.u32 %v1319, 7
  %v1321 = vsub.s32 4, %v1320
  %v1322 = vrot.slane %v1301, %v1321
  %v1323 = vlaneseq
  %v1324 = vshrl.u32 %v1323, 7
  %v1325 = vsub.s32 5, %v1324
  %v1326 = vrot.slane %v1301, %v1325
  %v1327 = vlaneseq
  %v1328 = vshrl.u32 %v1327, 7
  %v1329 = vsub.s32 6, %v1328
  %v1330 = vrot.slane %v1301, %v1329
  %v1331 = vlaneseq
  %v1332 = vshrl.u32 %v1331, 7
  %v1333 = vsub.s32 7, %v1332
  %v1334 = vrot.slane %v1301, %v1333
  %1343 = vmatprep.subr.mxu0 %v790
  %1344 = vmatpush1.msra.mxu0 %v789
  %1345 = vmatprep.subr.mxu0 %v798
  %1346 = vmatpush1.msra.mxu0 %v797
  %1347 = vmatprep.subr.mxu0 %v806
  %1348 = vmatpush1.msra.mxu0 %v805
  %1349 = vmatprep.subr.mxu0 %v814
  %1350 = vmatpush1.msra.mxu0 %v813
  %1351 = vmatprep.subr.mxu0 %v822
  %1352 = vmatpush1.msra.mxu0 %v821
  %1353 = vmatprep.subr.mxu0 %v830
  %1354 = vmatpush1.msra.mxu0 %v829
  %1355 = vmatprep.subr.mxu0 %v838
  %1356 = vmatpush1.msra.mxu0 %v837
  %1357 = vmatprep.subr.mxu0 %v846
  %1358 = vmatpush1.msra.mxu0 %v845
  %1359 = vmatprep.subr.mxu0 %v854
  %1360 = vmatpush1.msra.mxu0 %v853
  %1361 = vmatprep.subr.mxu0 %v862
  %1362 = vmatpush1.msra.mxu0 %v861
  %1363 = vmatprep.subr.mxu0 %v870
  %1364 = vmatpush1.msra.mxu0 %v869
  %1365 = vmatprep.subr.mxu0 %v878
  %1366 = vmatpush1.msra.mxu0 %v877
  %1367 = vmatprep.subr.mxu0 %v886
  %1368 = vmatpush1.msra.mxu0 %v885
  %1369 = vmatprep.subr.mxu0 %v894
  %1370 = vmatpush1.msra.mxu0 %v893
  %1371 = vmatprep.subr.mxu0 %v902
  %1372 = vmatpush1.msra.mxu0 %v901
  %1373 = vmatprep.subr.mxu0 %v910
  %1374 = vmatpush1.msra.mxu0 %v909
  %1375 = vmatprep.subr.mxu0 %v918
  %1376 = vmatpush1.msra.mxu0 %v917
  %1377 = vmatprep.subr.mxu0 %v926
  %1378 = vmatpush1.msra.mxu0 %v925
  %1379 = vmatprep.subr.mxu0 %v934
  %1380 = vmatpush1.msra.mxu0 %v933
  %1381 = vmatprep.subr.mxu0 %v942
  %1382 = vmatpush1.msra.mxu0 %v941
  %1383 = vmatprep.subr.mxu0 %v950
  %1384 = vmatpush1.msra.mxu0 %v949
  %1385 = vmatprep.subr.mxu0 %v958
  %1386 = vmatpush1.msra.mxu0 %v957
  %1387 = vmatprep.subr.mxu0 %v966
  %1388 = vmatpush1.msra.mxu0 %v965
  %1389 = vmatprep.subr.mxu0 %v974
  %1390 = vmatpush1.msra.mxu0 %v973
  %1391 = vmatprep.subr.mxu0 %v982
  %1392 = vmatpush1.msra.mxu0 %v981
  %1393 = vmatprep.subr.mxu0 %v990
  %1394 = vmatpush1.msra.mxu0 %v989
  %1395 = vmatprep.subr.mxu0 %v998
  %1396 = vmatpush1.msra.mxu0 %v997
  %1397 = vmatprep.subr.mxu0 %v1006
  %1398 = vmatpush1.msra.mxu0 %v1005
  %1399 = vmatprep.subr.mxu0 %v1014
  %1400 = vmatpush1.msra.mxu0 %v1013
  %1401 = vmatprep.subr.mxu0 %v1022
  %1402 = vmatpush1.msra.mxu0 %v1021
  %1403 = vmatprep.subr.mxu0 %v1030
  %1404 = vmatpush1.msra.mxu0 %v1029
  %1405 = vmatprep.subr.mxu0 %v1038
  %1406 = vmatpush1.msra.mxu0 %v1037
  %1407 = vmatprep.mubr.f32.mxu0 %v786
  %1408 = vmatmul.mubr.f32.gmra.mrb[0].mxu0 %v785
  %v1409 = vpop.f32.mrb[0].mxu0
  %v1410 = vadd.f32 %v1306, %v1409
  %v1411 = vpop.f32.mrb[0].mxu0
  %v1412 = vadd.f32 %v1310, %v1411
  %1413 = vdwg.mxu0
  %1414 = vmatprep.subr.mxu0 %v1046
  %1415 = vmatpush1.msra.mxu0 %v1045
  %1416 = vmatprep.subr.mxu0 %v1054
  %1417 = vmatpush1.msra.mxu0 %v1053
  %1418 = vmatprep.subr.mxu0 %v1062
  %1419 = vmatpush1.msra.mxu0 %v1061
  %1420 = vmatprep.subr.mxu0 %v1070
  %1421 = vmatpush1.msra.mxu0 %v1069
  %1422 = vmatprep.subr.mxu0 %v1078
  %1423 = vmatpush1.msra.mxu0 %v1077
  %1424 = vmatprep.subr.mxu0 %v1086
  %1425 = vmatpush1.msra.mxu0 %v1085
  %1426 = vmatprep.subr.mxu0 %v1094
  %1427 = vmatpush1.msra.mxu0 %v1093
  %1428 = vmatprep.subr.mxu0 %v1102
  %1429 = vmatpush1.msra.mxu0 %v1101
  %1430 = vmatprep.subr.mxu0 %v1110
  %1431 = vmatpush1.msra.mxu0 %v1109
  %1432 = vmatprep.subr.mxu0 %v1118
  %1433 = vmatpush1.msra.mxu0 %v1117
  %1434 = vmatprep.subr.mxu0 %v1126
  %1435 = vmatpush1.msra.mxu0 %v1125
  %1436 = vmatprep.subr.mxu0 %v1134
  %1437 = vmatpush1.msra.mxu0 %v1133
  %1438 = vmatprep.subr.mxu0 %v1142
  %1439 = vmatpush1.msra.mxu0 %v1141
  %1440 = vmatprep.subr.mxu0 %v1150
  %1441 = vmatpush1.msra.mxu0 %v1149
  %1442 = vmatprep.subr.mxu0 %v1158
  %1443 = vmatpush1.msra.mxu0 %v1157
  %1444 = vmatprep.subr.mxu0 %v1166
  %1445 = vmatpush1.msra.mxu0 %v1165
  %1446 = vmatprep.subr.mxu0 %v1174
  %1447 = vmatpush1.msra.mxu0 %v1173
  %1448 = vmatprep.subr.mxu0 %v1182
  %1449 = vmatpush1.msra.mxu0 %v1181
  %1450 = vmatprep.subr.mxu0 %v1190
  %1451 = vmatpush1.msra.mxu0 %v1189
  %1452 = vmatprep.subr.mxu0 %v1198
  %1453 = vmatpush1.msra.mxu0 %v1197
  %1454 = vmatprep.subr.mxu0 %v1206
  %1455 = vmatpush1.msra.mxu0 %v1205
  %1456 = vmatprep.subr.mxu0 %v1214
  %1457 = vmatpush1.msra.mxu0 %v1213
  %1458 = vmatprep.subr.mxu0 %v1222
  %1459 = vmatpush1.msra.mxu0 %v1221
  %1460 = vmatprep.subr.mxu0 %v1230
  %1461 = vmatpush1.msra.mxu0 %v1229
  %1462 = vmatprep.subr.mxu0 %v1238
  %1463 = vmatpush1.msra.mxu0 %v1237
  %1464 = vmatprep.subr.mxu0 %v1246
  %1465 = vmatpush1.msra.mxu0 %v1245
  %1466 = vmatprep.subr.mxu0 %v1254
  %1467 = vmatpush1.msra.mxu0 %v1253
  %1468 = vmatprep.subr.mxu0 %v1262
  %1469 = vmatpush1.msra.mxu0 %v1261
  %1470 = vmatprep.subr.mxu0 %v1270
  %1471 = vmatpush1.msra.mxu0 %v1269
  %1472 = vmatprep.subr.mxu0 %v1278
  %1473 = vmatpush1.msra.mxu0 %v1277
  %1474 = vmatprep.subr.mxu0 %v1286
  %1475 = vmatpush1.msra.mxu0 %v1285
  %1476 = vmatprep.subr.mxu0 %v1294
  %1477 = vmatpush1.msra.mxu0 %v1293
  %1478 = vmatprep.mubr.f32.mxu0 %v788
  %1479 = vmatmul.mubr.f32.gmra.mrb[0].mxu0 %v787
  %v1480 = vpop.f32.mrb[0].mxu0
  %v1481 = vadd.f32 %v1410, %v1480
  %v1482 = vpop.f32.mrb[0].mxu0
  %v1483 = vadd.f32 %v1412, %v1482
  %1484 = vdwg.mxu0
  %1485 = vmatprep.subr.mxu0 %v792
  %1486 = vmatpush1.msra.mxu0 %v791
  %1487 = vmatprep.subr.mxu0 %v800
  %1488 = vmatpush1.msra.mxu0 %v799
  %1489 = vmatprep.subr.mxu0 %v808
  %1490 = vmatpush1.msra.mxu0 %v807
  %1491 = vmatprep.subr.mxu0 %v816
  %1492 = vmatpush1.msra.mxu0 %v815
  %1493 = vmatprep.subr.mxu0 %v824
  %1494 = vmatpush1.msra.mxu0 %v823
  %1495 = vmatprep.subr.mxu0 %v832
  %1496 = vmatpush1.msra.mxu0 %v831
  %1497 = vmatprep.subr.mxu0 %v840
  %1498 = vmatpush1.msra.mxu0 %v839
  %1499 = vmatprep.subr.mxu0 %v848
  %1500 = vmatpush1.msra.mxu0 %v847
  %1501 = vmatprep.subr.mxu0 %v856
  %1502 = vmatpush1.msra.mxu0 %v855
  %1503 = vmatprep.subr.mxu0 %v864
  %1504 = vmatpush1.msra.mxu0 %v863
  %1505 = vmatprep.subr.mxu0 %v872
  %1506 = vmatpush1.msra.mxu0 %v871
  %1507 = vmatprep.subr.mxu0 %v880
  %1508 = vmatpush1.msra.mxu0 %v879
  %1509 = vmatprep.subr.mxu0 %v888
  %1510 = vmatpush1.msra.mxu0 %v887
  %1511 = vmatprep.subr.mxu0 %v896
  %1512 = vmatpush1.msra.mxu0 %v895
  %1513 = vmatprep.subr.mxu0 %v904
  %1514 = vmatpush1.msra.mxu0 %v903
  %1515 = vmatprep.subr.mxu0 %v912
  %1516 = vmatpush1.msra.mxu0 %v911
  %1517 = vmatprep.subr.mxu0 %v920
  %1518 = vmatpush1.msra.mxu0 %v919
  %1519 = vmatprep.subr.mxu0 %v928
  %1520 = vmatpush1.msra.mxu0 %v927
  %1521 = vmatprep.subr.mxu0 %v936
  %1522 = vmatpush1.msra.mxu0 %v935
  %1523 = vmatprep.subr.mxu0 %v944
  %1524 = vmatpush1.msra.mxu0 %v943
  %1525 = vmatprep.subr.mxu0 %v952
  %1526 = vmatpush1.msra.mxu0 %v951
  %1527 = vmatprep.subr.mxu0 %v960
  %1528 = vmatpush1.msra.mxu0 %v959
  %1529 = vmatprep.subr.mxu0 %v968
  %1530 = vmatpush1.msra.mxu0 %v967
  %1531 = vmatprep.subr.mxu0 %v976
  %1532 = vmatpush1.msra.mxu0 %v975
  %1533 = vmatprep.subr.mxu0 %v984
  %1534 = vmatpush1.msra.mxu0 %v983
  %1535 = vmatprep.subr.mxu0 %v992
  %1536 = vmatpush1.msra.mxu0 %v991
  %1537 = vmatprep.subr.mxu0 %v1000
  %1538 = vmatpush1.msra.mxu0 %v999
  %1539 = vmatprep.subr.mxu0 %v1008
  %1540 = vmatpush1.msra.mxu0 %v1007
  %1541 = vmatprep.subr.mxu0 %v1016
  %1542 = vmatpush1.msra.mxu0 %v1015
  %1543 = vmatprep.subr.mxu0 %v1024
  %1544 = vmatpush1.msra.mxu0 %v1023
  %1545 = vmatprep.subr.mxu0 %v1032
  %1546 = vmatpush1.msra.mxu0 %v1031
  %1547 = vmatprep.subr.mxu0 %v1040
  %1548 = vmatpush1.msra.mxu0 %v1039
  %1549 = vmatprep.mubr.f32.mxu0 %v786
  %1550 = vmatmul.mubr.f32.gmra.mrb[0].mxu0 %v785
  %v1551 = vpop.f32.mrb[0].mxu0
  %v1552 = vadd.f32 %v1314, %v1551
  %v1553 = vpop.f32.mrb[0].mxu0
  %v1554 = vadd.f32 %v1318, %v1553
  %1555 = vdwg.mxu0
  %1556 = vmatprep.subr.mxu0 %v1048
  %1557 = vmatpush1.msra.mxu0 %v1047
  %1558 = vmatprep.subr.mxu0 %v1056
  %1559 = vmatpush1.msra.mxu0 %v1055
  %1560 = vmatprep.subr.mxu0 %v1064
  %1561 = vmatpush1.msra.mxu0 %v1063
  %1562 = vmatprep.subr.mxu0 %v1072
  %1563 = vmatpush1.msra.mxu0 %v1071
  %1564 = vmatprep.subr.mxu0 %v1080
  %1565 = vmatpush1.msra.mxu0 %v1079
  %1566 = vmatprep.subr.mxu0 %v1088
  %1567 = vmatpush1.msra.mxu0 %v1087
  %1568 = vmatprep.subr.mxu0 %v1096
  %1569 = vmatpush1.msra.mxu0 %v1095
  %1570 = vmatprep.subr.mxu0 %v1104
  %1571 = vmatpush1.msra.mxu0 %v1103
  %1572 = vmatprep.subr.mxu0 %v1112
  %1573 = vmatpush1.msra.mxu0 %v1111
  %1574 = vmatprep.subr.mxu0 %v1120
  %1575 = vmatpush1.msra.mxu0 %v1119
  %1576 = vmatprep.subr.mxu0 %v1128
  %1577 = vmatpush1.msra.mxu0 %v1127
  %1578 = vmatprep.subr.mxu0 %v1136
  %1579 = vmatpush1.msra.mxu0 %v1135
  %1580 = vmatprep.subr.mxu0 %v1144
  %1581 = vmatpush1.msra.mxu0 %v1143
  %1582 = vmatprep.subr.mxu0 %v1152
  %1583 = vmatpush1.msra.mxu0 %v1151
  %1584 = vmatprep.subr.mxu0 %v1160
  %1585 = vmatpush1.msra.mxu0 %v1159
  %1586 = vmatprep.subr.mxu0 %v1168
  %1587 = vmatpush1.msra.mxu0 %v1167
  %1588 = vmatprep.subr.mxu0 %v1176
  %1589 = vmatpush1.msra.mxu0 %v1175
  %1590 = vmatprep.subr.mxu0 %v1184
  %1591 = vmatpush1.msra.mxu0 %v1183
  %1592 = vmatprep.subr.mxu0 %v1192
  %1593 = vmatpush1.msra.mxu0 %v1191
  %1594 = vmatprep.subr.mxu0 %v1200
  %1595 = vmatpush1.msra.mxu0 %v1199
  %1596 = vmatprep.subr.mxu0 %v1208
  %1597 = vmatpush1.msra.mxu0 %v1207
  %1598 = vmatprep.subr.mxu0 %v1216
  %1599 = vmatpush1.msra.mxu0 %v1215
  %1600 = vmatprep.subr.mxu0 %v1224
  %1601 = vmatpush1.msra.mxu0 %v1223
  %1602 = vmatprep.subr.mxu0 %v1232
  %1603 = vmatpush1.msra.mxu0 %v1231
  %1604 = vmatprep.subr.mxu0 %v1240
  %1605 = vmatpush1.msra.mxu0 %v1239
  %1606 = vmatprep.subr.mxu0 %v1248
  %1607 = vmatpush1.msra.mxu0 %v1247
  %1608 = vmatprep.subr.mxu0 %v1256
  %1609 = vmatpush1.msra.mxu0 %v1255
  %1610 = vmatprep.subr.mxu0 %v1264
  %1611 = vmatpush1.msra.mxu0 %v1263
  %1612 = vmatprep.subr.mxu0 %v1272
  %1613 = vmatpush1.msra.mxu0 %v1271
  %1614 = vmatprep.subr.mxu0 %v1280
  %1615 = vmatpush1.msra.mxu0 %v1279
  %1616 = vmatprep.subr.mxu0 %v1288
  %1617 = vmatpush1.msra.mxu0 %v1287
  %1618 = vmatprep.subr.mxu0 %v1296
  %1619 = vmatpush1.msra.mxu0 %v1295
  %1620 = vmatprep.mubr.f32.mxu0 %v788
  %1621 = vmatmul.mubr.f32.gmra.mrb[0].mxu0 %v787
  %v1622 = vpop.f32.mrb[0].mxu0
  %v1623 = vadd.f32 %v1552, %v1622
  %v1624 = vpop.f32.mrb[0].mxu0
  %v1625 = vadd.f32 %v1554, %v1624
  %1626 = vdwg.mxu0
  %1627 = vmatprep.subr.mxu0 %v794
  %1628 = vmatpush1.msra.mxu0 %v793
  %1629 = vmatprep.subr.mxu0 %v802
  %1630 = vmatpush1.msra.mxu0 %v801
  %1631 = vmatprep.subr.mxu0 %v810
  %1632 = vmatpush1.msra.mxu0 %v809
  %1633 = vmatprep.subr.mxu0 %v818
  %1634 = vmatpush1.msra.mxu0 %v817
  %1635 = vmatprep.subr.mxu0 %v826
  %1636 = vmatpush1.msra.mxu0 %v825
  %1637 = vmatprep.subr.mxu0 %v834
  %1638 = vmatpush1.msra.mxu0 %v833
  %1639 = vmatprep.subr.mxu0 %v842
  %1640 = vmatpush1.msra.mxu0 %v841
  %1641 = vmatprep.subr.mxu0 %v850
  %1642 = vmatpush1.msra.mxu0 %v849
  %1643 = vmatprep.subr.mxu0 %v858
  %1644 = vmatpush1.msra.mxu0 %v857
  %1645 = vmatprep.subr.mxu0 %v866
  %1646 = vmatpush1.msra.mxu0 %v865
  %1647 = vmatprep.subr.mxu0 %v874
  %1648 = vmatpush1.msra.mxu0 %v873
  %1649 = vmatprep.subr.mxu0 %v882
  %1650 = vmatpush1.msra.mxu0 %v881
  %1651 = vmatprep.subr.mxu0 %v890
  %1652 = vmatpush1.msra.mxu0 %v889
  %1653 = vmatprep.subr.mxu0 %v898
  %1654 = vmatpush1.msra.mxu0 %v897
  %1655 = vmatprep.subr.mxu0 %v906
  %1656 = vmatpush1.msra.mxu0 %v905
  %1657 = vmatprep.subr.mxu0 %v914
  %1658 = vmatpush1.msra.mxu0 %v913
  %1659 = vmatprep.subr.mxu0 %v922
  %1660 = vmatpush1.msra.mxu0 %v921
  %1661 = vmatprep.subr.mxu0 %v930
  %1662 = vmatpush1.msra.mxu0 %v929
  %1663 = vmatprep.subr.mxu0 %v938
  %1664 = vmatpush1.msra.mxu0 %v937
  %1665 = vmatprep.subr.mxu0 %v946
  %1666 = vmatpush1.msra.mxu0 %v945
  %1667 = vmatprep.subr.mxu0 %v954
  %1668 = vmatpush1.msra.mxu0 %v953
  %1669 = vmatprep.subr.mxu0 %v962
  %1670 = vmatpush1.msra.mxu0 %v961
  %1671 = vmatprep.subr.mxu0 %v970
  %1672 = vmatpush1.msra.mxu0 %v969
  %1673 = vmatprep.subr.mxu0 %v978
  %1674 = vmatpush1.msra.mxu0 %v977
  %1675 = vmatprep.subr.mxu0 %v986
  %1676 = vmatpush1.msra.mxu0 %v985
  %1677 = vmatprep.subr.mxu0 %v994
  %1678 = vmatpush1.msra.mxu0 %v993
  %1679 = vmatprep.subr.mxu0 %v1002
  %1680 = vmatpush1.msra.mxu0 %v1001
  %1681 = vmatprep.subr.mxu0 %v1010
  %1682 = vmatpush1.msra.mxu0 %v1009
  %1683 = vmatprep.subr.mxu0 %v1018
  %1684 = vmatpush1.msra.mxu0 %v1017
  %1685 = vmatprep.subr.mxu0 %v1026
  %1686 = vmatpush1.msra.mxu0 %v1025
  %1687 = vmatprep.subr.mxu0 %v1034
  %1688 = vmatpush1.msra.mxu0 %v1033
  %1689 = vmatprep.subr.mxu0 %v1042
  %1690 = vmatpush1.msra.mxu0 %v1041
  %1691 = vmatprep.mubr.f32.mxu0 %v786
  %1692 = vmatmul.mubr.f32.gmra.mrb[0].mxu0 %v785
  %v1693 = vpop.f32.mrb[0].mxu0
  %v1694 = vadd.f32 %v1322, %v1693
  %v1695 = vpop.f32.mrb[0].mxu0
  %v1696 = vadd.f32 %v1326, %v1695
  %1697 = vdwg.mxu0
  %1698 = vmatprep.subr.mxu0 %v1050
  %1699 = vmatpush1.msra.mxu0 %v1049
  %1700 = vmatprep.subr.mxu0 %v1058
  %1701 = vmatpush1.msra.mxu0 %v1057
  %1702 = vmatprep.subr.mxu0 %v1066
  %1703 = vmatpush1.msra.mxu0 %v1065
  %1704 = vmatprep.subr.mxu0 %v1074
  %1705 = vmatpush1.msra.mxu0 %v1073
  %1706 = vmatprep.subr.mxu0 %v1082
  %1707 = vmatpush1.msra.mxu0 %v1081
  %1708 = vmatprep.subr.mxu0 %v1090
  %1709 = vmatpush1.msra.mxu0 %v1089
  %1710 = vmatprep.subr.mxu0 %v1098
  %1711 = vmatpush1.msra.mxu0 %v1097
  %1712 = vmatprep.subr.mxu0 %v1106
  %1713 = vmatpush1.msra.mxu0 %v1105
  %1714 = vmatprep.subr.mxu0 %v1114
  %1715 = vmatpush1.msra.mxu0 %v1113
  %1716 = vmatprep.subr.mxu0 %v1122
  %1717 = vmatpush1.msra.mxu0 %v1121
  %1718 = vmatprep.subr.mxu0 %v1130
  %1719 = vmatpush1.msra.mxu0 %v1129
  %1720 = vmatprep.subr.mxu0 %v1138
  %1721 = vmatpush1.msra.mxu0 %v1137
  %1722 = vmatprep.subr.mxu0 %v1146
  %1723 = vmatpush1.msra.mxu0 %v1145
  %1724 = vmatprep.subr.mxu0 %v1154
  %1725 = vmatpush1.msra.mxu0 %v1153
  %1726 = vmatprep.subr.mxu0 %v1162
  %1727 = vmatpush1.msra.mxu0 %v1161
  %1728 = vmatprep.subr.mxu0 %v1170
  %1729 = vmatpush1.msra.mxu0 %v1169
  %1730 = vmatprep.subr.mxu0 %v1178
  %1731 = vmatpush1.msra.mxu0 %v1177
  %1732 = vmatprep.subr.mxu0 %v1186
  %1733 = vmatpush1.msra.mxu0 %v1185
  %1734 = vmatprep.subr.mxu0 %v1194
  %1735 = vmatpush1.msra.mxu0 %v1193
  %1736 = vmatprep.subr.mxu0 %v1202
  %1737 = vmatpush1.msra.mxu0 %v1201
  %1738 = vmatprep.subr.mxu0 %v1210
  %1739 = vmatpush1.msra.mxu0 %v1209
  %1740 = vmatprep.subr.mxu0 %v1218
  %1741 = vmatpush1.msra.mxu0 %v1217
  %1742 = vmatprep.subr.mxu0 %v1226
  %1743 = vmatpush1.msra.mxu0 %v1225
  %1744 = vmatprep.subr.mxu0 %v1234
  %1745 = vmatpush1.msra.mxu0 %v1233
  %1746 = vmatprep.subr.mxu0 %v1242
  %1747 = vmatpush1.msra.mxu0 %v1241
  %1748 = vmatprep.subr.mxu0 %v1250
  %1749 = vmatpush1.msra.mxu0 %v1249
  %1750 = vmatprep.subr.mxu0 %v1258
  %1751 = vmatpush1.msra.mxu0 %v1257
  %1752 = vmatprep.subr.mxu0 %v1266
  %1753 = vmatpush1.msra.mxu0 %v1265
  %1754 = vmatprep.subr.mxu0 %v1274
  %1755 = vmatpush1.msra.mxu0 %v1273
  %1756 = vmatprep.subr.mxu0 %v1282
  %1757 = vmatpush1.msra.mxu0 %v1281
  %1758 = vmatprep.subr.mxu0 %v1290
  %1759 = vmatpush1.msra.mxu0 %v1289
  %1760 = vmatprep.subr.mxu0 %v1298
  %1761 = vmatpush1.msra.mxu0 %v1297
  %1762 = vmatprep.mubr.f32.mxu0 %v788
  %1763 = vmatmul.mubr.f32.gmra.mrb[0].mxu0 %v787
  %v1764 = vpop.f32.mrb[0].mxu0
  %v1765 = vadd.f32 %v1694, %v1764
  %v1766 = vpop.f32.mrb[0].mxu0
  %v1767 = vadd.f32 %v1696, %v1766
  %1768 = vdwg.mxu0
  %1769 = vmatprep.subr.mxu0 %v796
  %1770 = vmatpush1.msra.mxu0 %v795
  %1771 = vmatprep.subr.mxu0 %v804
  %1772 = vmatpush1.msra.mxu0 %v803
  %1773 = vmatprep.subr.mxu0 %v812
  %1774 = vmatpush1.msra.mxu0 %v811
  %1775 = vmatprep.subr.mxu0 %v820
  %1776 = vmatpush1.msra.mxu0 %v819
  %1777 = vmatprep.subr.mxu0 %v828
  %1778 = vmatpush1.msra.mxu0 %v827
  %1779 = vmatprep.subr.mxu0 %v836
  %1780 = vmatpush1.msra.mxu0 %v835
  %1781 = vmatprep.subr.mxu0 %v844
  %1782 = vmatpush1.msra.mxu0 %v843
  %1783 = vmatprep.subr.mxu0 %v852
  %1784 = vmatpush1.msra.mxu0 %v851
  %1785 = vmatprep.subr.mxu0 %v860
  %1786 = vmatpush1.msra.mxu0 %v859
  %1787 = vmatprep.subr.mxu0 %v868
  %1788 = vmatpush1.msra.mxu0 %v867
  %1789 = vmatprep.subr.mxu0 %v876
  %1790 = vmatpush1.msra.mxu0 %v875
  %1791 = vmatprep.subr.mxu0 %v884
  %1792 = vmatpush1.msra.mxu0 %v883
  %1793 = vmatprep.subr.mxu0 %v892
  %1794 = vmatpush1.msra.mxu0 %v891
  %1795 = vmatprep.subr.mxu0 %v900
  %1796 = vmatpush1.msra.mxu0 %v899
  %1797 = vmatprep.subr.mxu0 %v908
  %1798 = vmatpush1.msra.mxu0 %v907
  %1799 = vmatprep.subr.mxu0 %v916
  %1800 = vmatpush1.msra.mxu0 %v915
  %1801 = vmatprep.subr.mxu0 %v924
  %1802 = vmatpush1.msra.mxu0 %v923
  %1803 = vmatprep.subr.mxu0 %v932
  %1804 = vmatpush1.msra.mxu0 %v931
  %1805 = vmatprep.subr.mxu0 %v940
  %1806 = vmatpush1.msra.mxu0 %v939
  %1807 = vmatprep.subr.mxu0 %v948
  %1808 = vmatpush1.msra.mxu0 %v947
  %1809 = vmatprep.subr.mxu0 %v956
  %1810 = vmatpush1.msra.mxu0 %v955
  %1811 = vmatprep.subr.mxu0 %v964
  %1812 = vmatpush1.msra.mxu0 %v963
  %1813 = vmatprep.subr.mxu0 %v972
  %1814 = vmatpush1.msra.mxu0 %v971
  %1815 = vmatprep.subr.mxu0 %v980
  %1816 = vmatpush1.msra.mxu0 %v979
  %1817 = vmatprep.subr.mxu0 %v988
  %1818 = vmatpush1.msra.mxu0 %v987
  %1819 = vmatprep.subr.mxu0 %v996
  %1820 = vmatpush1.msra.mxu0 %v995
  %1821 = vmatprep.subr.mxu0 %v1004
  %1822 = vmatpush1.msra.mxu0 %v1003
  %1823 = vmatprep.subr.mxu0 %v1012
  %1824 = vmatpush1.msra.mxu0 %v1011
  %1825 = vmatprep.subr.mxu0 %v1020
  %1826 = vmatpush1.msra.mxu0 %v1019
  %1827 = vmatprep.subr.mxu0 %v1028
  %1828 = vmatpush1.msra.mxu0 %v1027
  %1829 = vmatprep.subr.mxu0 %v1036
  %1830 = vmatpush1.msra.mxu0 %v1035
  %1831 = vmatprep.subr.mxu0 %v1044
  %1832 = vmatpush1.msra.mxu0 %v1043
  %1833 = vmatprep.mubr.f32.mxu0 %v786
  %1834 = vmatmul.mubr.f32.gmra.mrb[0].mxu0 %v785
  %v1835 = vpop.f32.mrb[0].mxu0
  %v1836 = vadd.f32 %v1330, %v1835
  %v1837 = vpop.f32.mrb[0].mxu0
  %v1838 = vadd.f32 %v1334, %v1837
  %1839 = vdwg.mxu0
  %1840 = vmatprep.subr.mxu0 %v1052
  %1841 = vmatpush1.msra.mxu0 %v1051
  %1842 = vmatprep.subr.mxu0 %v1060
  %1843 = vmatpush1.msra.mxu0 %v1059
  %1844 = vmatprep.subr.mxu0 %v1068
  %1845 = vmatpush1.msra.mxu0 %v1067
  %1846 = vmatprep.subr.mxu0 %v1076
  %1847 = vmatpush1.msra.mxu0 %v1075
  %1848 = vmatprep.subr.mxu0 %v1084
  %1849 = vmatpush1.msra.mxu0 %v1083
  %1850 = vmatprep.subr.mxu0 %v1092
  %1851 = vmatpush1.msra.mxu0 %v1091
  %1852 = vmatprep.subr.mxu0 %v1100
  %1853 = vmatpush1.msra.mxu0 %v1099
  %1854 = vmatprep.subr.mxu0 %v1108
  %1855 = vmatpush1.msra.mxu0 %v1107
  %1856 = vmatprep.subr.mxu0 %v1116
  %1857 = vmatpush1.msra.mxu0 %v1115
  %1858 = vmatprep.subr.mxu0 %v1124
  %1859 = vmatpush1.msra.mxu0 %v1123
  %1860 = vmatprep.subr.mxu0 %v1132
  %1861 = vmatpush1.msra.mxu0 %v1131
  %1862 = vmatprep.subr.mxu0 %v1140
  %1863 = vmatpush1.msra.mxu0 %v1139
  %1864 = vmatprep.subr.mxu0 %v1148
  %1865 = vmatpush1.msra.mxu0 %v1147
  %1866 = vmatprep.subr.mxu0 %v1156
  %1867 = vmatpush1.msra.mxu0 %v1155
  %1868 = vmatprep.subr.mxu0 %v1164
  %1869 = vmatpush1.msra.mxu0 %v1163
  %1870 = vmatprep.subr.mxu0 %v1172
  %1871 = vmatpush1.msra.mxu0 %v1171
  %1872 = vmatprep.subr.mxu0 %v1180
  %1873 = vmatpush1.msra.mxu0 %v1179
  %1874 = vmatprep.subr.mxu0 %v1188
  %1875 = vmatpush1.msra.mxu0 %v1187
  %1876 = vmatprep.subr.mxu0 %v1196
  %1877 = vmatpush1.msra.mxu0 %v1195
  %1878 = vmatprep.subr.mxu0 %v1204
  %1879 = vmatpush1.msra.mxu0 %v1203
  %1880 = vmatprep.subr.mxu0 %v1212
  %1881 = vmatpush1.msra.mxu0 %v1211
  %1882 = vmatprep.subr.mxu0 %v1220
  %1883 = vmatpush1.msra.mxu0 %v1219
  %1884 = vmatprep.subr.mxu0 %v1228
  %1885 = vmatpush1.msra.mxu0 %v1227
  %1886 = vmatprep.subr.mxu0 %v1236
  %1887 = vmatpush1.msra.mxu0 %v1235
  %1888 = vmatprep.subr.mxu0 %v1244
  %1889 = vmatpush1.msra.mxu0 %v1243
  %1890 = vmatprep.subr.mxu0 %v1252
  %1891 = vmatpush1.msra.mxu0 %v1251
  %1892 = vmatprep.subr.mxu0 %v1260
  %1893 = vmatpush1.msra.mxu0 %v1259
  %1894 = vmatprep.subr.mxu0 %v1268
  %1895 = vmatpush1.msra.mxu0 %v1267
  %1896 = vmatprep.subr.mxu0 %v1276
  %1897 = vmatpush1.msra.mxu0 %v1275
  %1898 = vmatprep.subr.mxu0 %v1284
  %1899 = vmatpush1.msra.mxu0 %v1283
  %1900 = vmatprep.subr.mxu0 %v1292
  %1901 = vmatpush1.msra.mxu0 %v1291
  %1902 = vmatprep.subr.mxu0 %v1300
  %1903 = vmatpush1.msra.mxu0 %v1299
  %1904 = vmatprep.mubr.f32.mxu0 %v788
  %1905 = vmatmul.mubr.f32.gmra.mrb[0].mxu0 %v787
  %v1906 = vpop.f32.mrb[0].mxu0
  %v1907 = vadd.f32 %v1836, %v1906
  %v1908 = vpop.f32.mrb[0].mxu0
  %v1909 = vadd.f32 %v1838, %v1908
  %1910 = vdwg.mxu0
  %v1911 = vld [vmem:[%s13] sm:$0xff]
  %v1912 = vld [vmem:[%s14] sm:$0xff]
  %v1913 = vmul.f32 %v1481, %v60
  %v1914 = vmul.f32 %v1483, %v60
  %v1915 = vmul.f32 %v1623, %v60
  %v1916 = vmul.f32 %v1625, %v60
  %v1917 = vmul.f32 %v1765, %v60
  %v1918 = vmul.f32 %v1767, %v60
  %v1919 = vmul.f32 %v1907, %v60
  %v1920 = vmul.f32 %v1909, %v60
  %v1921 = vrot.slane %v1913, 4
  %v1922 = vadd.f32 %v1913, %v1921
  %v1923 = vrot.slane %v1922, 2
  %v1924 = vadd.f32 %v1922, %v1923
  %v1925 = vrot.slane %v1924, 1
  %v1926 = vadd.f32 %v1924, %v1925
  %v1927 = vrot.slane %v1914, 4
  %v1928 = vadd.f32 %v1914, %v1927
  %v1929 = vrot.slane %v1928, 2
  %v1930 = vadd.f32 %v1928, %v1929
  %v1931 = vrot.slane %v1930, 1
  %v1932 = vadd.f32 %v1930, %v1931
  %v1933 = vrot.slane %v1915, 4
  %v1934 = vadd.f32 %v1915, %v1933
  %v1935 = vrot.slane %v1934, 2
  %v1936 = vadd.f32 %v1934, %v1935
  %v1937 = vrot.slane %v1936, 1
  %v1938 = vadd.f32 %v1936, %v1937
  %v1939 = vrot.slane %v1916, 4
  %v1940 = vadd.f32 %v1916, %v1939
  %v1941 = vrot.slane %v1940, 2
  %v1942 = vadd.f32 %v1940, %v1941
  %v1943 = vrot.slane %v1942, 1
  %v1944 = vadd.f32 %v1942, %v1943
  %v1945 = vrot.slane %v1917, 4
  %v1946 = vadd.f32 %v1917, %v1945
  %v1947 = vrot.slane %v1946, 2
  %v1948 = vadd.f32 %v1946, %v1947
  %v1949 = vrot.slane %v1948, 1
  %v1950 = vadd.f32 %v1948, %v1949
  %v1951 = vrot.slane %v1918, 4
  %v1952 = vadd.f32 %v1918, %v1951
  %v1953 = vrot.slane %v1952, 2
  %v1954 = vadd.f32 %v1952, %v1953
  %v1955 = vrot.slane %v1954, 1
  %v1956 = vadd.f32 %v1954, %v1955
  %v1957 = vrot.slane %v1919, 4
  %v1958 = vadd.f32 %v1919, %v1957
  %v1959 = vrot.slane %v1958, 2
  %v1960 = vadd.f32 %v1958, %v1959
  %v1961 = vrot.slane %v1960, 1
  %v1962 = vadd.f32 %v1960, %v1961
  %v1963 = vrot.slane %v1920, 4
  %v1964 = vadd.f32 %v1920, %v1963
  %v1965 = vrot.slane %v1964, 2
  %v1966 = vadd.f32 %v1964, %v1965
  %v1967 = vrot.slane %v1966, 1
  %v1968 = vadd.f32 %v1966, %v1967
  %v1969 = vmul.f32 %v1926, 0.125
  %v1970 = vmul.f32 %v1932, 0.125
  %v1971 = vmul.f32 %v1938, 0.125
  %v1972 = vmul.f32 %v1944, 0.125
  %v1973 = vmul.f32 %v1950, 0.125
  %v1974 = vmul.f32 %v1956, 0.125
  %v1975 = vmul.f32 %v1962, 0.125
  %v1976 = vmul.f32 %v1968, 0.125
  %v1977 = vsub.f32 %v1481, %v1969
  %v1978 = vsub.f32 %v1483, %v1970
  %v1979 = vsub.f32 %v1623, %v1971
  %v1980 = vsub.f32 %v1625, %v1972
  %v1981 = vsub.f32 %v1765, %v1973
  %v1982 = vsub.f32 %v1767, %v1974
  %v1983 = vsub.f32 %v1907, %v1975
  %v1984 = vsub.f32 %v1909, %v1976
  %v1985 = vmul.f32 %v1977, %v60
  %v1986 = vmul.f32 %v1978, %v60
  %v1987 = vmul.f32 %v1979, %v60
  %v1988 = vmul.f32 %v1980, %v60
  %v1989 = vmul.f32 %v1981, %v60
  %v1990 = vmul.f32 %v1982, %v60
  %v1991 = vmul.f32 %v1983, %v60
  %v1992 = vmul.f32 %v1984, %v60
  %v1993 = vmul.f32 %v1985, %v1985
  %v1994 = vmul.f32 %v1986, %v1986
  %v1995 = vmul.f32 %v1987, %v1987
  %v1996 = vmul.f32 %v1988, %v1988
  %v1997 = vmul.f32 %v1989, %v1989
  %v1998 = vmul.f32 %v1990, %v1990
  %v1999 = vmul.f32 %v1991, %v1991
  %v2000 = vmul.f32 %v1992, %v1992
  %v2001 = vrot.slane %v1993, 4
  %v2002 = vadd.f32 %v1993, %v2001
  %v2003 = vrot.slane %v2002, 2
  %v2004 = vadd.f32 %v2002, %v2003
  %v2005 = vrot.slane %v2004, 1
  %v2006 = vadd.f32 %v2004, %v2005
  %v2007 = vrot.slane %v1994, 4
  %v2008 = vadd.f32 %v1994, %v2007
  %v2009 = vrot.slane %v2008, 2
  %v2010 = vadd.f32 %v2008, %v2009
  %v2011 = vrot.slane %v2010, 1
  %v2012 = vadd.f32 %v2010, %v2011
  %v2013 = vrot.slane %v1995, 4
  %v2014 = vadd.f32 %v1995, %v2013
  %v2015 = vrot.slane %v2014, 2
  %v2016 = vadd.f32 %v2014, %v2015
  %v2017 = vrot.slane %v2016, 1
  %v2018 = vadd.f32 %v2016, %v2017
  %v2019 = vrot.slane %v1996, 4
  %v2020 = vadd.f32 %v1996, %v2019
  %v2021 = vrot.slane %v2020, 2
  %v2022 = vadd.f32 %v2020, %v2021
  %v2023 = vrot.slane %v2022, 1
  %v2024 = vadd.f32 %v2022, %v2023
  %v2025 = vrot.slane %v1997, 4
  %v2026 = vadd.f32 %v1997, %v2025
  %v2027 = vrot.slane %v2026, 2
  %v2028 = vadd.f32 %v2026, %v2027
  %v2029 = vrot.slane %v2028, 1
  %v2030 = vadd.f32 %v2028, %v2029
  %v2031 = vrot.slane %v1998, 4
  %v2032 = vadd.f32 %v1998, %v2031
  %v2033 = vrot.slane %v2032, 2
  %v2034 = vadd.f32 %v2032, %v2033
  %v2035 = vrot.slane %v2034, 1
  %v2036 = vadd.f32 %v2034, %v2035
  %v2037 = vrot.slane %v1999, 4
  %v2038 = vadd.f32 %v1999, %v2037
  %v2039 = vrot.slane %v2038, 2
  %v2040 = vadd.f32 %v2038, %v2039
  %v2041 = vrot.slane %v2040, 1
  %v2042 = vadd.f32 %v2040, %v2041
  %v2043 = vrot.slane %v2000, 4
  %v2044 = vadd.f32 %v2000, %v2043
  %v2045 = vrot.slane %v2044, 2
  %v2046 = vadd.f32 %v2044, %v2045
  %v2047 = vrot.slane %v2046, 1
  %v2048 = vadd.f32 %v2046, %v2047
  %v2049 = vmul.f32 %v2006, 0.125
  %v2050 = vmul.f32 %v2012, 0.125
  %v2051 = vmul.f32 %v2018, 0.125
  %v2052 = vmul.f32 %v2024, 0.125
  %v2053 = vmul.f32 %v2030, 0.125
  %v2054 = vmul.f32 %v2036, 0.125
  %v2055 = vmul.f32 %v2042, 0.125
  %v2056 = vmul.f32 %v2048, 0.125
  %v2057 = vadd.f32 %v2049, 0.8
  %v2058 = vadd.f32 %v2050, 0.8
  %v2059 = vadd.f32 %v2051, 0.8
  %v2060 = vadd.f32 %v2052, 0.8
  %v2061 = vadd.f32 %v2053, 0.8
  %v2062 = vadd.f32 %v2054, 0.8
  %v2063 = vadd.f32 %v2055, 0.8
  %v2064 = vadd.f32 %v2056, 0.8
  %v2065 = vrsqrt.pop %v2057
  %v2066 = vrsqrt.pop %v2058
  %v2067 = vrsqrt.pop %v2059
  %v2068 = vrsqrt.pop %v2060
  %v2069 = vrsqrt.pop %v2061
  %v2070 = vrsqrt.pop %v2062
  %v2071 = vrsqrt.pop %v2063
  %v2072 = vrsqrt.pop %v2064
  %v2073 = vmul.f32 %v1977, %v2065
  %v2074 = vmul.f32 %v1978, %v2066
  %v2075 = vmul.f32 %v1979, %v2067
  %v2076 = vmul.f32 %v1980, %v2068
  %v2077 = vmul.f32 %v1981, %v2069
  %v2078 = vmul.f32 %v1982, %v2070
  %v2079 = vmul.f32 %v1983, %v2071
  %v2080 = vmul.f32 %v1984, %v2072
  %v2082 = vlaneseq
  %v2083 = vshrl.u32 %v2082, 7
  %v2084 = vsub.s32 0, %v2083
  %v2085 = vrot.slane %v1911, %v2084
  %v2086 = vlaneseq
  %v2087 = vshrl.u32 %v2086, 7
  %v2088 = vsub.s32 1, %v2087
  %v2089 = vrot.slane %v1911, %v2088
  %v2090 = vlaneseq
  %v2091 = vshrl.u32 %v2090, 7
  %v2092 = vsub.s32 2, %v2091
  %v2093 = vrot.slane %v1911, %v2092
  %v2094 = vlaneseq
  %v2095 = vshrl.u32 %v2094, 7
  %v2096 = vsub.s32 3, %v2095
  %v2097 = vrot.slane %v1911, %v2096
  %v2098 = vlaneseq
  %v2099 = vshrl.u32 %v2098, 7
  %v2100 = vsub.s32 4, %v2099
  %v2101 = vrot.slane %v1911, %v2100
  %v2102 = vlaneseq
  %v2103 = vshrl.u32 %v2102, 7
  %v2104 = vsub.s32 5, %v2103
  %v2105 = vrot.slane %v1911, %v2104
  %v2106 = vlaneseq
  %v2107 = vshrl.u32 %v2106, 7
  %v2108 = vsub.s32 6, %v2107
  %v2109 = vrot.slane %v1911, %v2108
  %v2110 = vlaneseq
  %v2111 = vshrl.u32 %v2110, 7
  %v2112 = vsub.s32 7, %v2111
  %v2113 = vrot.slane %v1911, %v2112
  %v2122 = vmul.f32 %v2073, %v2085
  %v2123 = vmul.f32 %v2074, %v2089
  %v2124 = vmul.f32 %v2075, %v2093
  %v2125 = vmul.f32 %v2076, %v2097
  %v2126 = vmul.f32 %v2077, %v2101
  %v2127 = vmul.f32 %v2078, %v2105
  %v2128 = vmul.f32 %v2079, %v2109
  %v2129 = vmul.f32 %v2080, %v2113
  %v2131 = vlaneseq
  %v2132 = vshrl.u32 %v2131, 7
  %v2133 = vsub.s32 0, %v2132
  %v2134 = vrot.slane %v1912, %v2133
  %v2135 = vlaneseq
  %v2136 = vshrl.u32 %v2135, 7
  %v2137 = vsub.s32 1, %v2136
  %v2138 = vrot.slane %v1912, %v2137
  %v2139 = vlaneseq
  %v2140 = vshrl.u32 %v2139, 7
  %v2141 = vsub.s32 2, %v2140
  %v2142 = vrot.slane %v1912, %v2141
  %v2143 = vlaneseq
  %v2144 = vshrl.u32 %v2143, 7
  %v2145 = vsub.s32 3, %v2144
  %v2146 = vrot.slane %v1912, %v2145
  %v2147 = vlaneseq
  %v2148 = vshrl.u32 %v2147, 7
  %v2149 = vsub.s32 4, %v2148
  %v2150 = vrot.slane %v1912, %v2149
  %v2151 = vlaneseq
  %v2152 = vshrl.u32 %v2151, 7
  %v2153 = vsub.s32 5, %v2152
  %v2154 = vrot.slane %v1912, %v2153
  %v2155 = vlaneseq
  %v2156 = vshrl.u32 %v2155, 7
  %v2157 = vsub.s32 6, %v2156
  %v2158 = vrot.slane %v1912, %v2157
  %v2159 = vlaneseq
  %v2160 = vshrl.u32 %v2159, 7
  %v2161 = vsub.s32 7, %v2160
  %v2162 = vrot.slane %v1912, %v2161
  %v2171 = vadd.f32 %v2122, %v2134
  %v2172 = vadd.f32 %v2123, %v2138
  %v2173 = vadd.f32 %v2124, %v2142
  %v2174 = vadd.f32 %v2125, %v2146
  %v2175 = vadd.f32 %v2126, %v2150
  %v2176 = vadd.f32 %v2127, %v2154
  %v2177 = vadd.f32 %v2128, %v2158
  %v2178 = vadd.f32 %v2129, %v2162
  %vm2179 = vcmp.ge.f32.partialorder %v2171, 0.0
  %vm2180 = vcmp.ge.f32.partialorder %v2172, 0.0
  %vm2181 = vcmp.ge.f32.partialorder %v2173, 0.0
  %vm2182 = vcmp.ge.f32.partialorder %v2174, 0.0
  %vm2183 = vcmp.ge.f32.partialorder %v2175, 0.0
  %vm2184 = vcmp.ge.f32.partialorder %v2176, 0.0
  %vm2185 = vcmp.ge.f32.partialorder %v2177, 0.0
  %vm2186 = vcmp.ge.f32.partialorder %v2178, 0.0
  %v2187 = vmul.f32 %v2171, 0.2
  %v2188 = vmul.f32 %v2172, 0.2
  %v2189 = vmul.f32 %v2173, 0.2
  %v2190 = vmul.f32 %v2174, 0.2
  %v2191 = vmul.f32 %v2175, 0.2
  %v2192 = vmul.f32 %v2176, 0.2
  %v2193 = vmul.f32 %v2177, 0.2
  %v2194 = vmul.f32 %v2178, 0.2
  %v2195 = vsel %vm2179, %v2171, %v2187
  %v2196 = vsel %vm2180, %v2172, %v2188
  %v2197 = vsel %vm2181, %v2173, %v2189
  %v2198 = vsel %vm2182, %v2174, %v2190
  %v2199 = vsel %vm2183, %v2175, %v2191
  %v2200 = vsel %vm2184, %v2176, %v2192
  %v2201 = vsel %vm2185, %v2177, %v2193
  %v2202 = vsel %vm2186, %v2178, %v2194
  %v2203 = vld [vmem:[%s15] sm:$0xff]
  %v2204 = vld [vmem:[%s15 + $0x8] sm:$0xff]
  %v2205 = vld [vmem:[%s15 + $0x10] sm:$0xff]
  %v2206 = vld [vmem:[%s15 + $0x18] sm:$0xff]
  %v2207 = vld [vmem:[%s15 + $0x20] sm:$0xff]
  %v2208 = vld [vmem:[%s15 + $0x28] sm:$0xff]
  %v2209 = vld [vmem:[%s15 + $0x30] sm:$0xff]
  %v2210 = vld [vmem:[%s15 + $0x38] sm:$0xff]
  %v2211 = vld [vmem:[%s15 + $0x40] sm:$0xff]
  %v2212 = vld [vmem:[%s15 + $0x48] sm:$0xff]
  %v2213 = vld [vmem:[%s15 + $0x50] sm:$0xff]
  %v2214 = vld [vmem:[%s15 + $0x58] sm:$0xff]
  %v2215 = vld [vmem:[%s15 + $0x60] sm:$0xff]
  %v2216 = vld [vmem:[%s15 + $0x68] sm:$0xff]
  %v2217 = vld [vmem:[%s15 + $0x70] sm:$0xff]
  %v2218 = vld [vmem:[%s15 + $0x78] sm:$0xff]
  %v2219 = vld [vmem:[%s15 + $0x80] sm:$0xff]
  %v2220 = vld [vmem:[%s15 + $0x88] sm:$0xff]
  %v2221 = vld [vmem:[%s15 + $0x90] sm:$0xff]
  %v2222 = vld [vmem:[%s15 + $0x98] sm:$0xff]
  %v2223 = vld [vmem:[%s15 + $0xa0] sm:$0xff]
  %v2224 = vld [vmem:[%s15 + $0xa8] sm:$0xff]
  %v2225 = vld [vmem:[%s15 + $0xb0] sm:$0xff]
  %v2226 = vld [vmem:[%s15 + $0xb8] sm:$0xff]
  %v2227 = vld [vmem:[%s15 + $0xc0] sm:$0xff]
  %v2228 = vld [vmem:[%s15 + $0xc8] sm:$0xff]
  %v2229 = vld [vmem:[%s15 + $0xd0] sm:$0xff]
  %v2230 = vld [vmem:[%s15 + $0xd8] sm:$0xff]
  %v2231 = vld [vmem:[%s15 + $0xe0] sm:$0xff]
  %v2232 = vld [vmem:[%s15 + $0xe8] sm:$0xff]
  %v2233 = vld [vmem:[%s15 + $0xf0] sm:$0xff]
  %v2234 = vld [vmem:[%s15 + $0xf8] sm:$0xff]
  %v2235 = vld [vmem:[%s15 + $0x100] sm:$0xff]
  %v2236 = vld [vmem:[%s15 + $0x108] sm:$0xff]
  %v2237 = vld [vmem:[%s15 + $0x110] sm:$0xff]
  %v2238 = vld [vmem:[%s15 + $0x118] sm:$0xff]
  %v2239 = vld [vmem:[%s15 + $0x120] sm:$0xff]
  %v2240 = vld [vmem:[%s15 + $0x128] sm:$0xff]
  %v2241 = vld [vmem:[%s15 + $0x130] sm:$0xff]
  %v2242 = vld [vmem:[%s15 + $0x138] sm:$0xff]
  %v2243 = vld [vmem:[%s15 + $0x140] sm:$0xff]
  %v2244 = vld [vmem:[%s15 + $0x148] sm:$0xff]
  %v2245 = vld [vmem:[%s15 + $0x150] sm:$0xff]
  %v2246 = vld [vmem:[%s15 + $0x158] sm:$0xff]
  %v2247 = vld [vmem:[%s15 + $0x160] sm:$0xff]
  %v2248 = vld [vmem:[%s15 + $0x168] sm:$0xff]
  %v2249 = vld [vmem:[%s15 + $0x170] sm:$0xff]
  %v2250 = vld [vmem:[%s15 + $0x178] sm:$0xff]
  %v2251 = vld [vmem:[%s15 + $0x180] sm:$0xff]
  %v2252 = vld [vmem:[%s15 + $0x188] sm:$0xff]
  %v2253 = vld [vmem:[%s15 + $0x190] sm:$0xff]
  %v2254 = vld [vmem:[%s15 + $0x198] sm:$0xff]
  %v2255 = vld [vmem:[%s15 + $0x1a0] sm:$0xff]
  %v2256 = vld [vmem:[%s15 + $0x1a8] sm:$0xff]
  %v2257 = vld [vmem:[%s15 + $0x1b0] sm:$0xff]
  %v2258 = vld [vmem:[%s15 + $0x1b8] sm:$0xff]
  %v2259 = vld [vmem:[%s15 + $0x1c0] sm:$0xff]
  %v2260 = vld [vmem:[%s15 + $0x1c8] sm:$0xff]
  %v2261 = vld [vmem:[%s15 + $0x1d0] sm:$0xff]
  %v2262 = vld [vmem:[%s15 + $0x1d8] sm:$0xff]
  %v2263 = vld [vmem:[%s15 + $0x1e0] sm:$0xff]
  %v2264 = vld [vmem:[%s15 + $0x1e8] sm:$0xff]
  %v2265 = vld [vmem:[%s15 + $0x1f0] sm:$0xff]
  %v2266 = vld [vmem:[%s15 + $0x1f8] sm:$0xff]
  %v2267 = vld [vmem:[%s15 + $0x200] sm:$0xff]
  %v2268 = vld [vmem:[%s15 + $0x208] sm:$0xff]
  %v2269 = vld [vmem:[%s15 + $0x210] sm:$0xff]
  %v2270 = vld [vmem:[%s15 + $0x218] sm:$0xff]
  %v2271 = vld [vmem:[%s15 + $0x220] sm:$0xff]
  %v2272 = vld [vmem:[%s15 + $0x228] sm:$0xff]
  %v2273 = vld [vmem:[%s15 + $0x230] sm:$0xff]
  %v2274 = vld [vmem:[%s15 + $0x238] sm:$0xff]
  %v2275 = vld [vmem:[%s15 + $0x240] sm:$0xff]
  %v2276 = vld [vmem:[%s15 + $0x248] sm:$0xff]
  %v2277 = vld [vmem:[%s15 + $0x250] sm:$0xff]
  %v2278 = vld [vmem:[%s15 + $0x258] sm:$0xff]
  %v2279 = vld [vmem:[%s15 + $0x260] sm:$0xff]
  %v2280 = vld [vmem:[%s15 + $0x268] sm:$0xff]
  %v2281 = vld [vmem:[%s15 + $0x270] sm:$0xff]
  %v2282 = vld [vmem:[%s15 + $0x278] sm:$0xff]
  %v2283 = vld [vmem:[%s15 + $0x280] sm:$0xff]
  %v2284 = vld [vmem:[%s15 + $0x288] sm:$0xff]
  %v2285 = vld [vmem:[%s15 + $0x290] sm:$0xff]
  %v2286 = vld [vmem:[%s15 + $0x298] sm:$0xff]
  %v2287 = vld [vmem:[%s15 + $0x2a0] sm:$0xff]
  %v2288 = vld [vmem:[%s15 + $0x2a8] sm:$0xff]
  %v2289 = vld [vmem:[%s15 + $0x2b0] sm:$0xff]
  %v2290 = vld [vmem:[%s15 + $0x2b8] sm:$0xff]
  %v2291 = vld [vmem:[%s15 + $0x2c0] sm:$0xff]
  %v2292 = vld [vmem:[%s15 + $0x2c8] sm:$0xff]
  %v2293 = vld [vmem:[%s15 + $0x2d0] sm:$0xff]
  %v2294 = vld [vmem:[%s15 + $0x2d8] sm:$0xff]
  %v2295 = vld [vmem:[%s15 + $0x2e0] sm:$0xff]
  %v2296 = vld [vmem:[%s15 + $0x2e8] sm:$0xff]
  %v2297 = vld [vmem:[%s15 + $0x2f0] sm:$0xff]
  %v2298 = vld [vmem:[%s15 + $0x2f8] sm:$0xff]
  %v2299 = vld [vmem:[%s15 + $0x300] sm:$0xff]
  %v2300 = vld [vmem:[%s15 + $0x308] sm:$0xff]
  %v2301 = vld [vmem:[%s15 + $0x310] sm:$0xff]
  %v2302 = vld [vmem:[%s15 + $0x318] sm:$0xff]
  %v2303 = vld [vmem:[%s15 + $0x320] sm:$0xff]
  %v2304 = vld [vmem:[%s15 + $0x328] sm:$0xff]
  %v2305 = vld [vmem:[%s15 + $0x330] sm:$0xff]
  %v2306 = vld [vmem:[%s15 + $0x338] sm:$0xff]
  %v2307 = vld [vmem:[%s15 + $0x340] sm:$0xff]
  %v2308 = vld [vmem:[%s15 + $0x348] sm:$0xff]
  %v2309 = vld [vmem:[%s15 + $0x350] sm:$0xff]
  %v2310 = vld [vmem:[%s15 + $0x358] sm:$0xff]
  %v2311 = vld [vmem:[%s15 + $0x360] sm:$0xff]
  %v2312 = vld [vmem:[%s15 + $0x368] sm:$0xff]
  %v2313 = vld [vmem:[%s15 + $0x370] sm:$0xff]
  %v2314 = vld [vmem:[%s15 + $0x378] sm:$0xff]
  %v2315 = vld [vmem:[%s15 + $0x380] sm:$0xff]
  %v2316 = vld [vmem:[%s15 + $0x388] sm:$0xff]
  %v2317 = vld [vmem:[%s15 + $0x390] sm:$0xff]
  %v2318 = vld [vmem:[%s15 + $0x398] sm:$0xff]
  %v2319 = vld [vmem:[%s15 + $0x3a0] sm:$0xff]
  %v2320 = vld [vmem:[%s15 + $0x3a8] sm:$0xff]
  %v2321 = vld [vmem:[%s15 + $0x3b0] sm:$0xff]
  %v2322 = vld [vmem:[%s15 + $0x3b8] sm:$0xff]
  %v2323 = vld [vmem:[%s15 + $0x3c0] sm:$0xff]
  %v2324 = vld [vmem:[%s15 + $0x3c8] sm:$0xff]
  %v2325 = vld [vmem:[%s15 + $0x3d0] sm:$0xff]
  %v2326 = vld [vmem:[%s15 + $0x3d8] sm:$0xff]
  %v2327 = vld [vmem:[%s15 + $0x3e0] sm:$0xff]
  %v2328 = vld [vmem:[%s15 + $0x3e8] sm:$0xff]
  %v2329 = vld [vmem:[%s15 + $0x3f0] sm:$0xff]
  %v2330 = vld [vmem:[%s15 + $0x3f8] sm:$0xff]
  %v2331 = vld [vmem:[%s15 + $0x400] sm:$0xff]
  %v2332 = vld [vmem:[%s15 + $0x408] sm:$0xff]
  %v2333 = vld [vmem:[%s15 + $0x410] sm:$0xff]
  %v2334 = vld [vmem:[%s15 + $0x418] sm:$0xff]
  %v2335 = vld [vmem:[%s15 + $0x420] sm:$0xff]
  %v2336 = vld [vmem:[%s15 + $0x428] sm:$0xff]
  %v2337 = vld [vmem:[%s15 + $0x430] sm:$0xff]
  %v2338 = vld [vmem:[%s15 + $0x438] sm:$0xff]
  %v2339 = vld [vmem:[%s15 + $0x440] sm:$0xff]
  %v2340 = vld [vmem:[%s15 + $0x448] sm:$0xff]
  %v2341 = vld [vmem:[%s15 + $0x450] sm:$0xff]
  %v2342 = vld [vmem:[%s15 + $0x458] sm:$0xff]
  %v2343 = vld [vmem:[%s15 + $0x460] sm:$0xff]
  %v2344 = vld [vmem:[%s15 + $0x468] sm:$0xff]
  %v2345 = vld [vmem:[%s15 + $0x470] sm:$0xff]
  %v2346 = vld [vmem:[%s15 + $0x478] sm:$0xff]
  %v2347 = vld [vmem:[%s15 + $0x480] sm:$0xff]
  %v2348 = vld [vmem:[%s15 + $0x488] sm:$0xff]
  %v2349 = vld [vmem:[%s15 + $0x490] sm:$0xff]
  %v2350 = vld [vmem:[%s15 + $0x498] sm:$0xff]
  %v2351 = vld [vmem:[%s15 + $0x4a0] sm:$0xff]
  %v2352 = vld [vmem:[%s15 + $0x4a8] sm:$0xff]
  %v2353 = vld [vmem:[%s15 + $0x4b0] sm:$0xff]
  %v2354 = vld [vmem:[%s15 + $0x4b8] sm:$0xff]
  %v2355 = vld [vmem:[%s15 + $0x4c0] sm:$0xff]
  %v2356 = vld [vmem:[%s15 + $0x4c8] sm:$0xff]
  %v2357 = vld [vmem:[%s15 + $0x4d0] sm:$0xff]
  %v2358 = vld [vmem:[%s15 + $0x4d8] sm:$0xff]
  %v2359 = vld [vmem:[%s15 + $0x4e0] sm:$0xff]
  %v2360 = vld [vmem:[%s15 + $0x4e8] sm:$0xff]
  %v2361 = vld [vmem:[%s15 + $0x4f0] sm:$0xff]
  %v2362 = vld [vmem:[%s15 + $0x4f8] sm:$0xff]
  %v2363 = vld [vmem:[%s15 + $0x500] sm:$0xff]
  %v2364 = vld [vmem:[%s15 + $0x508] sm:$0xff]
  %v2365 = vld [vmem:[%s15 + $0x510] sm:$0xff]
  %v2366 = vld [vmem:[%s15 + $0x518] sm:$0xff]
  %v2367 = vld [vmem:[%s15 + $0x520] sm:$0xff]
  %v2368 = vld [vmem:[%s15 + $0x528] sm:$0xff]
  %v2369 = vld [vmem:[%s15 + $0x530] sm:$0xff]
  %v2370 = vld [vmem:[%s15 + $0x538] sm:$0xff]
  %v2371 = vld [vmem:[%s15 + $0x540] sm:$0xff]
  %v2372 = vld [vmem:[%s15 + $0x548] sm:$0xff]
  %v2373 = vld [vmem:[%s15 + $0x550] sm:$0xff]
  %v2374 = vld [vmem:[%s15 + $0x558] sm:$0xff]
  %v2375 = vld [vmem:[%s15 + $0x560] sm:$0xff]
  %v2376 = vld [vmem:[%s15 + $0x568] sm:$0xff]
  %v2377 = vld [vmem:[%s15 + $0x570] sm:$0xff]
  %v2378 = vld [vmem:[%s15 + $0x578] sm:$0xff]
  %v2379 = vld [vmem:[%s15 + $0x580] sm:$0xff]
  %v2380 = vld [vmem:[%s15 + $0x588] sm:$0xff]
  %v2381 = vld [vmem:[%s15 + $0x590] sm:$0xff]
  %v2382 = vld [vmem:[%s15 + $0x598] sm:$0xff]
  %v2383 = vld [vmem:[%s15 + $0x5a0] sm:$0xff]
  %v2384 = vld [vmem:[%s15 + $0x5a8] sm:$0xff]
  %v2385 = vld [vmem:[%s15 + $0x5b0] sm:$0xff]
  %v2386 = vld [vmem:[%s15 + $0x5b8] sm:$0xff]
  %v2387 = vld [vmem:[%s15 + $0x5c0] sm:$0xff]
  %v2388 = vld [vmem:[%s15 + $0x5c8] sm:$0xff]
  %v2389 = vld [vmem:[%s15 + $0x5d0] sm:$0xff]
  %v2390 = vld [vmem:[%s15 + $0x5d8] sm:$0xff]
  %v2391 = vld [vmem:[%s15 + $0x5e0] sm:$0xff]
  %v2392 = vld [vmem:[%s15 + $0x5e8] sm:$0xff]
  %v2393 = vld [vmem:[%s15 + $0x5f0] sm:$0xff]
  %v2394 = vld [vmem:[%s15 + $0x5f8] sm:$0xff]
  %v2395 = vld [vmem:[%s15 + $0x600] sm:$0xff]
  %v2396 = vld [vmem:[%s15 + $0x608] sm:$0xff]
  %v2397 = vld [vmem:[%s15 + $0x610] sm:$0xff]
  %v2398 = vld [vmem:[%s15 + $0x618] sm:$0xff]
  %v2399 = vld [vmem:[%s15 + $0x620] sm:$0xff]
  %v2400 = vld [vmem:[%s15 + $0x628] sm:$0xff]
  %v2401 = vld [vmem:[%s15 + $0x630] sm:$0xff]
  %v2402 = vld [vmem:[%s15 + $0x638] sm:$0xff]
  %v2403 = vld [vmem:[%s15 + $0x640] sm:$0xff]
  %v2404 = vld [vmem:[%s15 + $0x648] sm:$0xff]
  %v2405 = vld [vmem:[%s15 + $0x650] sm:$0xff]
  %v2406 = vld [vmem:[%s15 + $0x658] sm:$0xff]
  %v2407 = vld [vmem:[%s15 + $0x660] sm:$0xff]
  %v2408 = vld [vmem:[%s15 + $0x668] sm:$0xff]
  %v2409 = vld [vmem:[%s15 + $0x670] sm:$0xff]
  %v2410 = vld [vmem:[%s15 + $0x678] sm:$0xff]
  %v2411 = vld [vmem:[%s15 + $0x680] sm:$0xff]
  %v2412 = vld [vmem:[%s15 + $0x688] sm:$0xff]
  %v2413 = vld [vmem:[%s15 + $0x690] sm:$0xff]
  %v2414 = vld [vmem:[%s15 + $0x698] sm:$0xff]
  %v2415 = vld [vmem:[%s15 + $0x6a0] sm:$0xff]
  %v2416 = vld [vmem:[%s15 + $0x6a8] sm:$0xff]
  %v2417 = vld [vmem:[%s15 + $0x6b0] sm:$0xff]
  %v2418 = vld [vmem:[%s15 + $0x6b8] sm:$0xff]
  %v2419 = vld [vmem:[%s15 + $0x6c0] sm:$0xff]
  %v2420 = vld [vmem:[%s15 + $0x6c8] sm:$0xff]
  %v2421 = vld [vmem:[%s15 + $0x6d0] sm:$0xff]
  %v2422 = vld [vmem:[%s15 + $0x6d8] sm:$0xff]
  %v2423 = vld [vmem:[%s15 + $0x6e0] sm:$0xff]
  %v2424 = vld [vmem:[%s15 + $0x6e8] sm:$0xff]
  %v2425 = vld [vmem:[%s15 + $0x6f0] sm:$0xff]
  %v2426 = vld [vmem:[%s15 + $0x6f8] sm:$0xff]
  %v2427 = vld [vmem:[%s15 + $0x700] sm:$0xff]
  %v2428 = vld [vmem:[%s15 + $0x708] sm:$0xff]
  %v2429 = vld [vmem:[%s15 + $0x710] sm:$0xff]
  %v2430 = vld [vmem:[%s15 + $0x718] sm:$0xff]
  %v2431 = vld [vmem:[%s15 + $0x720] sm:$0xff]
  %v2432 = vld [vmem:[%s15 + $0x728] sm:$0xff]
  %v2433 = vld [vmem:[%s15 + $0x730] sm:$0xff]
  %v2434 = vld [vmem:[%s15 + $0x738] sm:$0xff]
  %v2435 = vld [vmem:[%s15 + $0x740] sm:$0xff]
  %v2436 = vld [vmem:[%s15 + $0x748] sm:$0xff]
  %v2437 = vld [vmem:[%s15 + $0x750] sm:$0xff]
  %v2438 = vld [vmem:[%s15 + $0x758] sm:$0xff]
  %v2439 = vld [vmem:[%s15 + $0x760] sm:$0xff]
  %v2440 = vld [vmem:[%s15 + $0x768] sm:$0xff]
  %v2441 = vld [vmem:[%s15 + $0x770] sm:$0xff]
  %v2442 = vld [vmem:[%s15 + $0x778] sm:$0xff]
  %v2443 = vld [vmem:[%s15 + $0x780] sm:$0xff]
  %v2444 = vld [vmem:[%s15 + $0x788] sm:$0xff]
  %v2445 = vld [vmem:[%s15 + $0x790] sm:$0xff]
  %v2446 = vld [vmem:[%s15 + $0x798] sm:$0xff]
  %v2447 = vld [vmem:[%s15 + $0x7a0] sm:$0xff]
  %v2448 = vld [vmem:[%s15 + $0x7a8] sm:$0xff]
  %v2449 = vld [vmem:[%s15 + $0x7b0] sm:$0xff]
  %v2450 = vld [vmem:[%s15 + $0x7b8] sm:$0xff]
  %v2451 = vld [vmem:[%s15 + $0x7c0] sm:$0xff]
  %v2452 = vld [vmem:[%s15 + $0x7c8] sm:$0xff]
  %v2453 = vld [vmem:[%s15 + $0x7d0] sm:$0xff]
  %v2454 = vld [vmem:[%s15 + $0x7d8] sm:$0xff]
  %v2455 = vld [vmem:[%s15 + $0x7e0] sm:$0xff]
  %v2456 = vld [vmem:[%s15 + $0x7e8] sm:$0xff]
  %v2457 = vld [vmem:[%s15 + $0x7f0] sm:$0xff]
  %v2458 = vld [vmem:[%s15 + $0x7f8] sm:$0xff]
  %v2459 = vld [vmem:[%s15 + $0x800] sm:$0xff]
  %v2460 = vld [vmem:[%s15 + $0x808] sm:$0xff]
  %v2461 = vld [vmem:[%s15 + $0x810] sm:$0xff]
  %v2462 = vld [vmem:[%s15 + $0x818] sm:$0xff]
  %v2463 = vld [vmem:[%s15 + $0x820] sm:$0xff]
  %v2464 = vld [vmem:[%s15 + $0x828] sm:$0xff]
  %v2465 = vld [vmem:[%s15 + $0x830] sm:$0xff]
  %v2466 = vld [vmem:[%s15 + $0x838] sm:$0xff]
  %v2467 = vld [vmem:[%s15 + $0x840] sm:$0xff]
  %v2468 = vld [vmem:[%s15 + $0x848] sm:$0xff]
  %v2469 = vld [vmem:[%s15 + $0x850] sm:$0xff]
  %v2470 = vld [vmem:[%s15 + $0x858] sm:$0xff]
  %v2471 = vld [vmem:[%s15 + $0x860] sm:$0xff]
  %v2472 = vld [vmem:[%s15 + $0x868] sm:$0xff]
  %v2473 = vld [vmem:[%s15 + $0x870] sm:$0xff]
  %v2474 = vld [vmem:[%s15 + $0x878] sm:$0xff]
  %v2475 = vld [vmem:[%s15 + $0x880] sm:$0xff]
  %v2476 = vld [vmem:[%s15 + $0x888] sm:$0xff]
  %v2477 = vld [vmem:[%s15 + $0x890] sm:$0xff]
  %v2478 = vld [vmem:[%s15 + $0x898] sm:$0xff]
  %v2479 = vld [vmem:[%s15 + $0x8a0] sm:$0xff]
  %v2480 = vld [vmem:[%s15 + $0x8a8] sm:$0xff]
  %v2481 = vld [vmem:[%s15 + $0x8b0] sm:$0xff]
  %v2482 = vld [vmem:[%s15 + $0x8b8] sm:$0xff]
  %v2483 = vld [vmem:[%s15 + $0x8c0] sm:$0xff]
  %v2484 = vld [vmem:[%s15 + $0x8c8] sm:$0xff]
  %v2485 = vld [vmem:[%s15 + $0x8d0] sm:$0xff]
  %v2486 = vld [vmem:[%s15 + $0x8d8] sm:$0xff]
  %v2487 = vld [vmem:[%s15 + $0x8e0] sm:$0xff]
  %v2488 = vld [vmem:[%s15 + $0x8e8] sm:$0xff]
  %v2489 = vld [vmem:[%s15 + $0x8f0] sm:$0xff]
  %v2490 = vld [vmem:[%s15 + $0x8f8] sm:$0xff]
  %v2491 = vld [vmem:[%s15 + $0x900] sm:$0xff]
  %v2492 = vld [vmem:[%s15 + $0x908] sm:$0xff]
  %v2493 = vld [vmem:[%s15 + $0x910] sm:$0xff]
  %v2494 = vld [vmem:[%s15 + $0x918] sm:$0xff]
  %v2495 = vld [vmem:[%s15 + $0x920] sm:$0xff]
  %v2496 = vld [vmem:[%s15 + $0x928] sm:$0xff]
  %v2497 = vld [vmem:[%s15 + $0x930] sm:$0xff]
  %v2498 = vld [vmem:[%s15 + $0x938] sm:$0xff]
  %v2499 = vld [vmem:[%s15 + $0x940] sm:$0xff]
  %v2500 = vld [vmem:[%s15 + $0x948] sm:$0xff]
  %v2501 = vld [vmem:[%s15 + $0x950] sm:$0xff]
  %v2502 = vld [vmem:[%s15 + $0x958] sm:$0xff]
  %v2503 = vld [vmem:[%s15 + $0x960] sm:$0xff]
  %v2504 = vld [vmem:[%s15 + $0x968] sm:$0xff]
  %v2505 = vld [vmem:[%s15 + $0x970] sm:$0xff]
  %v2506 = vld [vmem:[%s15 + $0x978] sm:$0xff]
  %v2507 = vld [vmem:[%s15 + $0x980] sm:$0xff]
  %v2508 = vld [vmem:[%s15 + $0x988] sm:$0xff]
  %v2509 = vld [vmem:[%s15 + $0x990] sm:$0xff]
  %v2510 = vld [vmem:[%s15 + $0x998] sm:$0xff]
  %v2511 = vld [vmem:[%s15 + $0x9a0] sm:$0xff]
  %v2512 = vld [vmem:[%s15 + $0x9a8] sm:$0xff]
  %v2513 = vld [vmem:[%s15 + $0x9b0] sm:$0xff]
  %v2514 = vld [vmem:[%s15 + $0x9b8] sm:$0xff]
  %v2515 = vld [vmem:[%s15 + $0x9c0] sm:$0xff]
  %v2516 = vld [vmem:[%s15 + $0x9c8] sm:$0xff]
  %v2517 = vld [vmem:[%s15 + $0x9d0] sm:$0xff]
  %v2518 = vld [vmem:[%s15 + $0x9d8] sm:$0xff]
  %v2519 = vld [vmem:[%s15 + $0x9e0] sm:$0xff]
  %v2520 = vld [vmem:[%s15 + $0x9e8] sm:$0xff]
  %v2521 = vld [vmem:[%s15 + $0x9f0] sm:$0xff]
  %v2522 = vld [vmem:[%s15 + $0x9f8] sm:$0xff]
  %v2523 = vld [vmem:[%s15 + $0xa00] sm:$0xff]
  %v2524 = vld [vmem:[%s15 + $0xa08] sm:$0xff]
  %v2525 = vld [vmem:[%s15 + $0xa10] sm:$0xff]
  %v2526 = vld [vmem:[%s15 + $0xa18] sm:$0xff]
  %v2527 = vld [vmem:[%s15 + $0xa20] sm:$0xff]
  %v2528 = vld [vmem:[%s15 + $0xa28] sm:$0xff]
  %v2529 = vld [vmem:[%s15 + $0xa30] sm:$0xff]
  %v2530 = vld [vmem:[%s15 + $0xa38] sm:$0xff]
  %v2531 = vld [vmem:[%s15 + $0xa40] sm:$0xff]
  %v2532 = vld [vmem:[%s15 + $0xa48] sm:$0xff]
  %v2533 = vld [vmem:[%s15 + $0xa50] sm:$0xff]
  %v2534 = vld [vmem:[%s15 + $0xa58] sm:$0xff]
  %v2535 = vld [vmem:[%s15 + $0xa60] sm:$0xff]
  %v2536 = vld [vmem:[%s15 + $0xa68] sm:$0xff]
  %v2537 = vld [vmem:[%s15 + $0xa70] sm:$0xff]
  %v2538 = vld [vmem:[%s15 + $0xa78] sm:$0xff]
  %v2539 = vld [vmem:[%s15 + $0xa80] sm:$0xff]
  %v2540 = vld [vmem:[%s15 + $0xa88] sm:$0xff]
  %v2541 = vld [vmem:[%s15 + $0xa90] sm:$0xff]
  %v2542 = vld [vmem:[%s15 + $0xa98] sm:$0xff]
  %v2543 = vld [vmem:[%s15 + $0xaa0] sm:$0xff]
  %v2544 = vld [vmem:[%s15 + $0xaa8] sm:$0xff]
  %v2545 = vld [vmem:[%s15 + $0xab0] sm:$0xff]
  %v2546 = vld [vmem:[%s15 + $0xab8] sm:$0xff]
  %v2547 = vld [vmem:[%s15 + $0xac0] sm:$0xff]
  %v2548 = vld [vmem:[%s15 + $0xac8] sm:$0xff]
  %v2549 = vld [vmem:[%s15 + $0xad0] sm:$0xff]
  %v2550 = vld [vmem:[%s15 + $0xad8] sm:$0xff]
  %v2551 = vld [vmem:[%s15 + $0xae0] sm:$0xff]
  %v2552 = vld [vmem:[%s15 + $0xae8] sm:$0xff]
  %v2553 = vld [vmem:[%s15 + $0xaf0] sm:$0xff]
  %v2554 = vld [vmem:[%s15 + $0xaf8] sm:$0xff]
  %v2555 = vld [vmem:[%s15 + $0xb00] sm:$0xff]
  %v2556 = vld [vmem:[%s15 + $0xb08] sm:$0xff]
  %v2557 = vld [vmem:[%s15 + $0xb10] sm:$0xff]
  %v2558 = vld [vmem:[%s15 + $0xb18] sm:$0xff]
  %v2559 = vld [vmem:[%s15 + $0xb20] sm:$0xff]
  %v2560 = vld [vmem:[%s15 + $0xb28] sm:$0xff]
  %v2561 = vld [vmem:[%s15 + $0xb30] sm:$0xff]
  %v2562 = vld [vmem:[%s15 + $0xb38] sm:$0xff]
  %v2563 = vld [vmem:[%s15 + $0xb40] sm:$0xff]
  %v2564 = vld [vmem:[%s15 + $0xb48] sm:$0xff]
  %v2565 = vld [vmem:[%s15 + $0xb50] sm:$0xff]
  %v2566 = vld [vmem:[%s15 + $0xb58] sm:$0xff]
  %v2567 = vld [vmem:[%s15 + $0xb60] sm:$0xff]
  %v2568 = vld [vmem:[%s15 + $0xb68] sm:$0xff]
  %v2569 = vld [vmem:[%s15 + $0xb70] sm:$0xff]
  %v2570 = vld [vmem:[%s15 + $0xb78] sm:$0xff]
  %v2571 = vld [vmem:[%s15 + $0xb80] sm:$0xff]
  %v2572 = vld [vmem:[%s15 + $0xb88] sm:$0xff]
  %v2573 = vld [vmem:[%s15 + $0xb90] sm:$0xff]
  %v2574 = vld [vmem:[%s15 + $0xb98] sm:$0xff]
  %v2575 = vld [vmem:[%s15 + $0xba0] sm:$0xff]
  %v2576 = vld [vmem:[%s15 + $0xba8] sm:$0xff]
  %v2577 = vld [vmem:[%s15 + $0xbb0] sm:$0xff]
  %v2578 = vld [vmem:[%s15 + $0xbb8] sm:$0xff]
  %v2579 = vld [vmem:[%s15 + $0xbc0] sm:$0xff]
  %v2580 = vld [vmem:[%s15 + $0xbc8] sm:$0xff]
  %v2581 = vld [vmem:[%s15 + $0xbd0] sm:$0xff]
  %v2582 = vld [vmem:[%s15 + $0xbd8] sm:$0xff]
  %v2583 = vld [vmem:[%s15 + $0xbe0] sm:$0xff]
  %v2584 = vld [vmem:[%s15 + $0xbe8] sm:$0xff]
  %v2585 = vld [vmem:[%s15 + $0xbf0] sm:$0xff]
  %v2586 = vld [vmem:[%s15 + $0xbf8] sm:$0xff]
  %v2587 = vld [vmem:[%s15 + $0xc00] sm:$0xff]
  %v2588 = vld [vmem:[%s15 + $0xc08] sm:$0xff]
  %v2589 = vld [vmem:[%s15 + $0xc10] sm:$0xff]
  %v2590 = vld [vmem:[%s15 + $0xc18] sm:$0xff]
  %v2591 = vld [vmem:[%s15 + $0xc20] sm:$0xff]
  %v2592 = vld [vmem:[%s15 + $0xc28] sm:$0xff]
  %v2593 = vld [vmem:[%s15 + $0xc30] sm:$0xff]
  %v2594 = vld [vmem:[%s15 + $0xc38] sm:$0xff]
  %v2595 = vld [vmem:[%s15 + $0xc40] sm:$0xff]
  %v2596 = vld [vmem:[%s15 + $0xc48] sm:$0xff]
  %v2597 = vld [vmem:[%s15 + $0xc50] sm:$0xff]
  %v2598 = vld [vmem:[%s15 + $0xc58] sm:$0xff]
  %v2599 = vld [vmem:[%s15 + $0xc60] sm:$0xff]
  %v2600 = vld [vmem:[%s15 + $0xc68] sm:$0xff]
  %v2601 = vld [vmem:[%s15 + $0xc70] sm:$0xff]
  %v2602 = vld [vmem:[%s15 + $0xc78] sm:$0xff]
  %v2603 = vld [vmem:[%s15 + $0xc80] sm:$0xff]
  %v2604 = vld [vmem:[%s15 + $0xc88] sm:$0xff]
  %v2605 = vld [vmem:[%s15 + $0xc90] sm:$0xff]
  %v2606 = vld [vmem:[%s15 + $0xc98] sm:$0xff]
  %v2607 = vld [vmem:[%s15 + $0xca0] sm:$0xff]
  %v2608 = vld [vmem:[%s15 + $0xca8] sm:$0xff]
  %v2609 = vld [vmem:[%s15 + $0xcb0] sm:$0xff]
  %v2610 = vld [vmem:[%s15 + $0xcb8] sm:$0xff]
  %v2611 = vld [vmem:[%s15 + $0xcc0] sm:$0xff]
  %v2612 = vld [vmem:[%s15 + $0xcc8] sm:$0xff]
  %v2613 = vld [vmem:[%s15 + $0xcd0] sm:$0xff]
  %v2614 = vld [vmem:[%s15 + $0xcd8] sm:$0xff]
  %v2615 = vld [vmem:[%s15 + $0xce0] sm:$0xff]
  %v2616 = vld [vmem:[%s15 + $0xce8] sm:$0xff]
  %v2617 = vld [vmem:[%s15 + $0xcf0] sm:$0xff]
  %v2618 = vld [vmem:[%s15 + $0xcf8] sm:$0xff]
  %v2619 = vld [vmem:[%s15 + $0xd00] sm:$0xff]
  %v2620 = vld [vmem:[%s15 + $0xd08] sm:$0xff]
  %v2621 = vld [vmem:[%s15 + $0xd10] sm:$0xff]
  %v2622 = vld [vmem:[%s15 + $0xd18] sm:$0xff]
  %v2623 = vld [vmem:[%s15 + $0xd20] sm:$0xff]
  %v2624 = vld [vmem:[%s15 + $0xd28] sm:$0xff]
  %v2625 = vld [vmem:[%s15 + $0xd30] sm:$0xff]
  %v2626 = vld [vmem:[%s15 + $0xd38] sm:$0xff]
  %v2627 = vld [vmem:[%s15 + $0xd40] sm:$0xff]
  %v2628 = vld [vmem:[%s15 + $0xd48] sm:$0xff]
  %v2629 = vld [vmem:[%s15 + $0xd50] sm:$0xff]
  %v2630 = vld [vmem:[%s15 + $0xd58] sm:$0xff]
  %v2631 = vld [vmem:[%s15 + $0xd60] sm:$0xff]
  %v2632 = vld [vmem:[%s15 + $0xd68] sm:$0xff]
  %v2633 = vld [vmem:[%s15 + $0xd70] sm:$0xff]
  %v2634 = vld [vmem:[%s15 + $0xd78] sm:$0xff]
  %v2635 = vld [vmem:[%s15 + $0xd80] sm:$0xff]
  %v2636 = vld [vmem:[%s15 + $0xd88] sm:$0xff]
  %v2637 = vld [vmem:[%s15 + $0xd90] sm:$0xff]
  %v2638 = vld [vmem:[%s15 + $0xd98] sm:$0xff]
  %v2639 = vld [vmem:[%s15 + $0xda0] sm:$0xff]
  %v2640 = vld [vmem:[%s15 + $0xda8] sm:$0xff]
  %v2641 = vld [vmem:[%s15 + $0xdb0] sm:$0xff]
  %v2642 = vld [vmem:[%s15 + $0xdb8] sm:$0xff]
  %v2643 = vld [vmem:[%s15 + $0xdc0] sm:$0xff]
  %v2644 = vld [vmem:[%s15 + $0xdc8] sm:$0xff]
  %v2645 = vld [vmem:[%s15 + $0xdd0] sm:$0xff]
  %v2646 = vld [vmem:[%s15 + $0xdd8] sm:$0xff]
  %v2647 = vld [vmem:[%s15 + $0xde0] sm:$0xff]
  %v2648 = vld [vmem:[%s15 + $0xde8] sm:$0xff]
  %v2649 = vld [vmem:[%s15 + $0xdf0] sm:$0xff]
  %v2650 = vld [vmem:[%s15 + $0xdf8] sm:$0xff]
  %v2651 = vld [vmem:[%s15 + $0xe00] sm:$0xff]
  %v2652 = vld [vmem:[%s15 + $0xe08] sm:$0xff]
  %v2653 = vld [vmem:[%s15 + $0xe10] sm:$0xff]
  %v2654 = vld [vmem:[%s15 + $0xe18] sm:$0xff]
  %v2655 = vld [vmem:[%s15 + $0xe20] sm:$0xff]
  %v2656 = vld [vmem:[%s15 + $0xe28] sm:$0xff]
  %v2657 = vld [vmem:[%s15 + $0xe30] sm:$0xff]
  %v2658 = vld [vmem:[%s15 + $0xe38] sm:$0xff]
  %v2659 = vld [vmem:[%s15 + $0xe40] sm:$0xff]
  %v2660 = vld [vmem:[%s15 + $0xe48] sm:$0xff]
  %v2661 = vld [vmem:[%s15 + $0xe50] sm:$0xff]
  %v2662 = vld [vmem:[%s15 + $0xe58] sm:$0xff]
  %v2663 = vld [vmem:[%s15 + $0xe60] sm:$0xff]
  %v2664 = vld [vmem:[%s15 + $0xe68] sm:$0xff]
  %v2665 = vld [vmem:[%s15 + $0xe70] sm:$0xff]
  %v2666 = vld [vmem:[%s15 + $0xe78] sm:$0xff]
  %v2667 = vld [vmem:[%s15 + $0xe80] sm:$0xff]
  %v2668 = vld [vmem:[%s15 + $0xe88] sm:$0xff]
  %v2669 = vld [vmem:[%s15 + $0xe90] sm:$0xff]
  %v2670 = vld [vmem:[%s15 + $0xe98] sm:$0xff]
  %v2671 = vld [vmem:[%s15 + $0xea0] sm:$0xff]
  %v2672 = vld [vmem:[%s15 + $0xea8] sm:$0xff]
  %v2673 = vld [vmem:[%s15 + $0xeb0] sm:$0xff]
  %v2674 = vld [vmem:[%s15 + $0xeb8] sm:$0xff]
  %v2675 = vld [vmem:[%s15 + $0xec0] sm:$0xff]
  %v2676 = vld [vmem:[%s15 + $0xec8] sm:$0xff]
  %v2677 = vld [vmem:[%s15 + $0xed0] sm:$0xff]
  %v2678 = vld [vmem:[%s15 + $0xed8] sm:$0xff]
  %v2679 = vld [vmem:[%s15 + $0xee0] sm:$0xff]
  %v2680 = vld [vmem:[%s15 + $0xee8] sm:$0xff]
  %v2681 = vld [vmem:[%s15 + $0xef0] sm:$0xff]
  %v2682 = vld [vmem:[%s15 + $0xef8] sm:$0xff]
  %v2683 = vld [vmem:[%s15 + $0xf00] sm:$0xff]
  %v2684 = vld [vmem:[%s15 + $0xf08] sm:$0xff]
  %v2685 = vld [vmem:[%s15 + $0xf10] sm:$0xff]
  %v2686 = vld [vmem:[%s15 + $0xf18] sm:$0xff]
  %v2687 = vld [vmem:[%s15 + $0xf20] sm:$0xff]
  %v2688 = vld [vmem:[%s15 + $0xf28] sm:$0xff]
  %v2689 = vld [vmem:[%s15 + $0xf30] sm:$0xff]
  %v2690 = vld [vmem:[%s15 + $0xf38] sm:$0xff]
  %v2691 = vld [vmem:[%s15 + $0xf40] sm:$0xff]
  %v2692 = vld [vmem:[%s15 + $0xf48] sm:$0xff]
  %v2693 = vld [vmem:[%s15 + $0xf50] sm:$0xff]
  %v2694 = vld [vmem:[%s15 + $0xf58] sm:$0xff]
  %v2695 = vld [vmem:[%s15 + $0xf60] sm:$0xff]
  %v2696 = vld [vmem:[%s15 + $0xf68] sm:$0xff]
  %v2697 = vld [vmem:[%s15 + $0xf70] sm:$0xff]
  %v2698 = vld [vmem:[%s15 + $0xf78] sm:$0xff]
  %v2699 = vld [vmem:[%s15 + $0xf80] sm:$0xff]
  %v2700 = vld [vmem:[%s15 + $0xf88] sm:$0xff]
  %v2701 = vld [vmem:[%s15 + $0xf90] sm:$0xff]
  %v2702 = vld [vmem:[%s15 + $0xf98] sm:$0xff]
  %v2703 = vld [vmem:[%s15 + $0xfa0] sm:$0xff]
  %v2704 = vld [vmem:[%s15 + $0xfa8] sm:$0xff]
  %v2705 = vld [vmem:[%s15 + $0xfb0] sm:$0xff]
  %v2706 = vld [vmem:[%s15 + $0xfb8] sm:$0xff]
  %v2707 = vld [vmem:[%s15 + $0xfc0] sm:$0xff]
  %v2708 = vld [vmem:[%s15 + $0xfc8] sm:$0xff]
  %v2709 = vld [vmem:[%s15 + $0xfd0] sm:$0xff]
  %v2710 = vld [vmem:[%s15 + $0xfd8] sm:$0xff]
  %v2711 = vld [vmem:[%s15 + $0xfe0] sm:$0xff]
  %v2712 = vld [vmem:[%s15 + $0xfe8] sm:$0xff]
  %v2713 = vld [vmem:[%s15 + $0xff0] sm:$0xff]
  %v2714 = vld [vmem:[%s15 + $0xff8] sm:$0xff]
  %v2715 = vld [vmem:[%s15 + $0x1000] sm:$0xff]
  %v2716 = vld [vmem:[%s15 + $0x1008] sm:$0xff]
  %v2717 = vld [vmem:[%s15 + $0x1010] sm:$0xff]
  %v2718 = vld [vmem:[%s15 + $0x1018] sm:$0xff]
  %v2719 = vld [vmem:[%s15 + $0x1020] sm:$0xff]
  %v2720 = vld [vmem:[%s15 + $0x1028] sm:$0xff]
  %v2721 = vld [vmem:[%s15 + $0x1030] sm:$0xff]
  %v2722 = vld [vmem:[%s15 + $0x1038] sm:$0xff]
  %v2723 = vld [vmem:[%s15 + $0x1040] sm:$0xff]
  %v2724 = vld [vmem:[%s15 + $0x1048] sm:$0xff]
  %v2725 = vld [vmem:[%s15 + $0x1050] sm:$0xff]
  %v2726 = vld [vmem:[%s15 + $0x1058] sm:$0xff]
  %v2727 = vld [vmem:[%s15 + $0x1060] sm:$0xff]
  %v2728 = vld [vmem:[%s15 + $0x1068] sm:$0xff]
  %v2729 = vld [vmem:[%s15 + $0x1070] sm:$0xff]
  %v2730 = vld [vmem:[%s15 + $0x1078] sm:$0xff]
  %v2731 = vld [vmem:[%s15 + $0x1080] sm:$0xff]
  %v2732 = vld [vmem:[%s15 + $0x1088] sm:$0xff]
  %v2733 = vld [vmem:[%s15 + $0x1090] sm:$0xff]
  %v2734 = vld [vmem:[%s15 + $0x1098] sm:$0xff]
  %v2735 = vld [vmem:[%s15 + $0x10a0] sm:$0xff]
  %v2736 = vld [vmem:[%s15 + $0x10a8] sm:$0xff]
  %v2737 = vld [vmem:[%s15 + $0x10b0] sm:$0xff]
  %v2738 = vld [vmem:[%s15 + $0x10b8] sm:$0xff]
  %v2739 = vld [vmem:[%s15 + $0x10c0] sm:$0xff]
  %v2740 = vld [vmem:[%s15 + $0x10c8] sm:$0xff]
  %v2741 = vld [vmem:[%s15 + $0x10d0] sm:$0xff]
  %v2742 = vld [vmem:[%s15 + $0x10d8] sm:$0xff]
  %v2743 = vld [vmem:[%s15 + $0x10e0] sm:$0xff]
  %v2744 = vld [vmem:[%s15 + $0x10e8] sm:$0xff]
  %v2745 = vld [vmem:[%s15 + $0x10f0] sm:$0xff]
  %v2746 = vld [vmem:[%s15 + $0x10f8] sm:$0xff]
  %v2747 = vld [vmem:[%s15 + $0x1100] sm:$0xff]
  %v2748 = vld [vmem:[%s15 + $0x1108] sm:$0xff]
  %v2749 = vld [vmem:[%s15 + $0x1110] sm:$0xff]
  %v2750 = vld [vmem:[%s15 + $0x1118] sm:$0xff]
  %v2751 = vld [vmem:[%s15 + $0x1120] sm:$0xff]
  %v2752 = vld [vmem:[%s15 + $0x1128] sm:$0xff]
  %v2753 = vld [vmem:[%s15 + $0x1130] sm:$0xff]
  %v2754 = vld [vmem:[%s15 + $0x1138] sm:$0xff]
  %v2755 = vld [vmem:[%s15 + $0x1140] sm:$0xff]
  %v2756 = vld [vmem:[%s15 + $0x1148] sm:$0xff]
  %v2757 = vld [vmem:[%s15 + $0x1150] sm:$0xff]
  %v2758 = vld [vmem:[%s15 + $0x1158] sm:$0xff]
  %v2759 = vld [vmem:[%s15 + $0x1160] sm:$0xff]
  %v2760 = vld [vmem:[%s15 + $0x1168] sm:$0xff]
  %v2761 = vld [vmem:[%s15 + $0x1170] sm:$0xff]
  %v2762 = vld [vmem:[%s15 + $0x1178] sm:$0xff]
  %v2763 = vld [vmem:[%s15 + $0x1180] sm:$0xff]
  %v2764 = vld [vmem:[%s15 + $0x1188] sm:$0xff]
  %v2765 = vld [vmem:[%s15 + $0x1190] sm:$0xff]
  %v2766 = vld [vmem:[%s15 + $0x1198] sm:$0xff]
  %v2767 = vld [vmem:[%s15 + $0x11a0] sm:$0xff]
  %v2768 = vld [vmem:[%s15 + $0x11a8] sm:$0xff]
  %v2769 = vld [vmem:[%s15 + $0x11b0] sm:$0xff]
  %v2770 = vld [vmem:[%s15 + $0x11b8] sm:$0xff]
  %v2771 = vld [vmem:[%s15 + $0x11c0] sm:$0xff]
  %v2772 = vld [vmem:[%s15 + $0x11c8] sm:$0xff]
  %v2773 = vld [vmem:[%s15 + $0x11d0] sm:$0xff]
  %v2774 = vld [vmem:[%s15 + $0x11d8] sm:$0xff]
  %v2775 = vld [vmem:[%s15 + $0x11e0] sm:$0xff]
  %v2776 = vld [vmem:[%s15 + $0x11e8] sm:$0xff]
  %v2777 = vld [vmem:[%s15 + $0x11f0] sm:$0xff]
  %v2778 = vld [vmem:[%s15 + $0x11f8] sm:$0xff]
  %v2779 = vld [vmem:[%s15 + $0x1200] sm:$0xff]
  %v2780 = vld [vmem:[%s15 + $0x1208] sm:$0xff]
  %v2781 = vld [vmem:[%s15 + $0x1210] sm:$0xff]
  %v2782 = vld [vmem:[%s15 + $0x1218] sm:$0xff]
  %v2783 = vld [vmem:[%s15 + $0x1220] sm:$0xff]
  %v2784 = vld [vmem:[%s15 + $0x1228] sm:$0xff]
  %v2785 = vld [vmem:[%s15 + $0x1230] sm:$0xff]
  %v2786 = vld [vmem:[%s15 + $0x1238] sm:$0xff]
  %v2787 = vld [vmem:[%s15 + $0x1240] sm:$0xff]
  %v2788 = vld [vmem:[%s15 + $0x1248] sm:$0xff]
  %v2789 = vld [vmem:[%s15 + $0x1250] sm:$0xff]
  %v2790 = vld [vmem:[%s15 + $0x1258] sm:$0xff]
  %v2791 = vld [vmem:[%s15 + $0x1260] sm:$0xff]
  %v2792 = vld [vmem:[%s15 + $0x1268] sm:$0xff]
  %v2793 = vld [vmem:[%s15 + $0x1270] sm:$0xff]
  %v2794 = vld [vmem:[%s15 + $0x1278] sm:$0xff]
  %v2795 = vld [vmem:[%s15 + $0x1280] sm:$0xff]
  %v2796 = vld [vmem:[%s15 + $0x1288] sm:$0xff]
  %v2797 = vld [vmem:[%s15 + $0x1290] sm:$0xff]
  %v2798 = vld [vmem:[%s15 + $0x1298] sm:$0xff]
  %v2799 = vld [vmem:[%s15 + $0x12a0] sm:$0xff]
  %v2800 = vld [vmem:[%s15 + $0x12a8] sm:$0xff]
  %v2801 = vld [vmem:[%s15 + $0x12b0] sm:$0xff]
  %v2802 = vld [vmem:[%s15 + $0x12b8] sm:$0xff]
  %v2803 = vld [vmem:[%s15 + $0x12c0] sm:$0xff]
  %v2804 = vld [vmem:[%s15 + $0x12c8] sm:$0xff]
  %v2805 = vld [vmem:[%s15 + $0x12d0] sm:$0xff]
  %v2806 = vld [vmem:[%s15 + $0x12d8] sm:$0xff]
  %v2807 = vld [vmem:[%s15 + $0x12e0] sm:$0xff]
  %v2808 = vld [vmem:[%s15 + $0x12e8] sm:$0xff]
  %v2809 = vld [vmem:[%s15 + $0x12f0] sm:$0xff]
  %v2810 = vld [vmem:[%s15 + $0x12f8] sm:$0xff]
  %v2811 = vld [vmem:[%s15 + $0x1300] sm:$0xff]
  %v2812 = vld [vmem:[%s15 + $0x1308] sm:$0xff]
  %v2813 = vld [vmem:[%s15 + $0x1310] sm:$0xff]
  %v2814 = vld [vmem:[%s15 + $0x1318] sm:$0xff]
  %v2815 = vld [vmem:[%s15 + $0x1320] sm:$0xff]
  %v2816 = vld [vmem:[%s15 + $0x1328] sm:$0xff]
  %v2817 = vld [vmem:[%s15 + $0x1330] sm:$0xff]
  %v2818 = vld [vmem:[%s15 + $0x1338] sm:$0xff]
  %v2819 = vld [vmem:[%s15 + $0x1340] sm:$0xff]
  %v2820 = vld [vmem:[%s15 + $0x1348] sm:$0xff]
  %v2821 = vld [vmem:[%s15 + $0x1350] sm:$0xff]
  %v2822 = vld [vmem:[%s15 + $0x1358] sm:$0xff]
  %v2823 = vld [vmem:[%s15 + $0x1360] sm:$0xff]
  %v2824 = vld [vmem:[%s15 + $0x1368] sm:$0xff]
  %v2825 = vld [vmem:[%s15 + $0x1370] sm:$0xff]
  %v2826 = vld [vmem:[%s15 + $0x1378] sm:$0xff]
  %v2827 = vld [vmem:[%s15 + $0x1380] sm:$0xff]
  %v2828 = vld [vmem:[%s15 + $0x1388] sm:$0xff]
  %v2829 = vld [vmem:[%s15 + $0x1390] sm:$0xff]
  %v2830 = vld [vmem:[%s15 + $0x1398] sm:$0xff]
  %v2831 = vld [vmem:[%s15 + $0x13a0] sm:$0xff]
  %v2832 = vld [vmem:[%s15 + $0x13a8] sm:$0xff]
  %v2833 = vld [vmem:[%s15 + $0x13b0] sm:$0xff]
  %v2834 = vld [vmem:[%s15 + $0x13b8] sm:$0xff]
  %v2835 = vld [vmem:[%s15 + $0x13c0] sm:$0xff]
  %v2836 = vld [vmem:[%s15 + $0x13c8] sm:$0xff]
  %v2837 = vld [vmem:[%s15 + $0x13d0] sm:$0xff]
  %v2838 = vld [vmem:[%s15 + $0x13d8] sm:$0xff]
  %v2839 = vld [vmem:[%s15 + $0x13e0] sm:$0xff]
  %v2840 = vld [vmem:[%s15 + $0x13e8] sm:$0xff]
  %v2841 = vld [vmem:[%s15 + $0x13f0] sm:$0xff]
  %v2842 = vld [vmem:[%s15 + $0x13f8] sm:$0xff]
  %v2843 = vld [vmem:[%s15 + $0x1400] sm:$0xff]
  %v2844 = vld [vmem:[%s15 + $0x1408] sm:$0xff]
  %v2845 = vld [vmem:[%s15 + $0x1410] sm:$0xff]
  %v2846 = vld [vmem:[%s15 + $0x1418] sm:$0xff]
  %v2847 = vld [vmem:[%s15 + $0x1420] sm:$0xff]
  %v2848 = vld [vmem:[%s15 + $0x1428] sm:$0xff]
  %v2849 = vld [vmem:[%s15 + $0x1430] sm:$0xff]
  %v2850 = vld [vmem:[%s15 + $0x1438] sm:$0xff]
  %v2851 = vld [vmem:[%s15 + $0x1440] sm:$0xff]
  %v2852 = vld [vmem:[%s15 + $0x1448] sm:$0xff]
  %v2853 = vld [vmem:[%s15 + $0x1450] sm:$0xff]
  %v2854 = vld [vmem:[%s15 + $0x1458] sm:$0xff]
  %v2855 = vld [vmem:[%s15 + $0x1460] sm:$0xff]
  %v2856 = vld [vmem:[%s15 + $0x1468] sm:$0xff]
  %v2857 = vld [vmem:[%s15 + $0x1470] sm:$0xff]
  %v2858 = vld [vmem:[%s15 + $0x1478] sm:$0xff]
  %v2859 = vld [vmem:[%s15 + $0x1480] sm:$0xff]
  %v2860 = vld [vmem:[%s15 + $0x1488] sm:$0xff]
  %v2861 = vld [vmem:[%s15 + $0x1490] sm:$0xff]
  %v2862 = vld [vmem:[%s15 + $0x1498] sm:$0xff]
  %v2863 = vld [vmem:[%s15 + $0x14a0] sm:$0xff]
  %v2864 = vld [vmem:[%s15 + $0x14a8] sm:$0xff]
  %v2865 = vld [vmem:[%s15 + $0x14b0] sm:$0xff]
  %v2866 = vld [vmem:[%s15 + $0x14b8] sm:$0xff]
  %v2867 = vld [vmem:[%s15 + $0x14c0] sm:$0xff]
  %v2868 = vld [vmem:[%s15 + $0x14c8] sm:$0xff]
  %v2869 = vld [vmem:[%s15 + $0x14d0] sm:$0xff]
  %v2870 = vld [vmem:[%s15 + $0x14d8] sm:$0xff]
  %v2871 = vld [vmem:[%s15 + $0x14e0] sm:$0xff]
  %v2872 = vld [vmem:[%s15 + $0x14e8] sm:$0xff]
  %v2873 = vld [vmem:[%s15 + $0x14f0] sm:$0xff]
  %v2874 = vld [vmem:[%s15 + $0x14f8] sm:$0xff]
  %v2875 = vld [vmem:[%s15 + $0x1500] sm:$0xff]
  %v2876 = vld [vmem:[%s15 + $0x1508] sm:$0xff]
  %v2877 = vld [vmem:[%s15 + $0x1510] sm:$0xff]
  %v2878 = vld [vmem:[%s15 + $0x1518] sm:$0xff]
  %v2879 = vld [vmem:[%s15 + $0x1520] sm:$0xff]
  %v2880 = vld [vmem:[%s15 + $0x1528] sm:$0xff]
  %v2881 = vld [vmem:[%s15 + $0x1530] sm:$0xff]
  %v2882 = vld [vmem:[%s15 + $0x1538] sm:$0xff]
  %v2883 = vld [vmem:[%s15 + $0x1540] sm:$0xff]
  %v2884 = vld [vmem:[%s15 + $0x1548] sm:$0xff]
  %v2885 = vld [vmem:[%s15 + $0x1550] sm:$0xff]
  %v2886 = vld [vmem:[%s15 + $0x1558] sm:$0xff]
  %v2887 = vld [vmem:[%s15 + $0x1560] sm:$0xff]
  %v2888 = vld [vmem:[%s15 + $0x1568] sm:$0xff]
  %v2889 = vld [vmem:[%s15 + $0x1570] sm:$0xff]
  %v2890 = vld [vmem:[%s15 + $0x1578] sm:$0xff]
  %v2891 = vld [vmem:[%s15 + $0x1580] sm:$0xff]
  %v2892 = vld [vmem:[%s15 + $0x1588] sm:$0xff]
  %v2893 = vld [vmem:[%s15 + $0x1590] sm:$0xff]
  %v2894 = vld [vmem:[%s15 + $0x1598] sm:$0xff]
  %v2895 = vld [vmem:[%s15 + $0x15a0] sm:$0xff]
  %v2896 = vld [vmem:[%s15 + $0x15a8] sm:$0xff]
  %v2897 = vld [vmem:[%s15 + $0x15b0] sm:$0xff]
  %v2898 = vld [vmem:[%s15 + $0x15b8] sm:$0xff]
  %v2899 = vld [vmem:[%s15 + $0x15c0] sm:$0xff]
  %v2900 = vld [vmem:[%s15 + $0x15c8] sm:$0xff]
  %v2901 = vld [vmem:[%s15 + $0x15d0] sm:$0xff]
  %v2902 = vld [vmem:[%s15 + $0x15d8] sm:$0xff]
  %v2903 = vld [vmem:[%s15 + $0x15e0] sm:$0xff]
  %v2904 = vld [vmem:[%s15 + $0x15e8] sm:$0xff]
  %v2905 = vld [vmem:[%s15 + $0x15f0] sm:$0xff]
  %v2906 = vld [vmem:[%s15 + $0x15f8] sm:$0xff]
  %v2907 = vld [vmem:[%s15 + $0x1600] sm:$0xff]
  %v2908 = vld [vmem:[%s15 + $0x1608] sm:$0xff]
  %v2909 = vld [vmem:[%s15 + $0x1610] sm:$0xff]
  %v2910 = vld [vmem:[%s15 + $0x1618] sm:$0xff]
  %v2911 = vld [vmem:[%s15 + $0x1620] sm:$0xff]
  %v2912 = vld [vmem:[%s15 + $0x1628] sm:$0xff]
  %v2913 = vld [vmem:[%s15 + $0x1630] sm:$0xff]
  %v2914 = vld [vmem:[%s15 + $0x1638] sm:$0xff]
  %v2915 = vld [vmem:[%s15 + $0x1640] sm:$0xff]
  %v2916 = vld [vmem:[%s15 + $0x1648] sm:$0xff]
  %v2917 = vld [vmem:[%s15 + $0x1650] sm:$0xff]
  %v2918 = vld [vmem:[%s15 + $0x1658] sm:$0xff]
  %v2919 = vld [vmem:[%s15 + $0x1660] sm:$0xff]
  %v2920 = vld [vmem:[%s15 + $0x1668] sm:$0xff]
  %v2921 = vld [vmem:[%s15 + $0x1670] sm:$0xff]
  %v2922 = vld [vmem:[%s15 + $0x1678] sm:$0xff]
  %v2923 = vld [vmem:[%s15 + $0x1680] sm:$0xff]
  %v2924 = vld [vmem:[%s15 + $0x1688] sm:$0xff]
  %v2925 = vld [vmem:[%s15 + $0x1690] sm:$0xff]
  %v2926 = vld [vmem:[%s15 + $0x1698] sm:$0xff]
  %v2927 = vld [vmem:[%s15 + $0x16a0] sm:$0xff]
  %v2928 = vld [vmem:[%s15 + $0x16a8] sm:$0xff]
  %v2929 = vld [vmem:[%s15 + $0x16b0] sm:$0xff]
  %v2930 = vld [vmem:[%s15 + $0x16b8] sm:$0xff]
  %v2931 = vld [vmem:[%s15 + $0x16c0] sm:$0xff]
  %v2932 = vld [vmem:[%s15 + $0x16c8] sm:$0xff]
  %v2933 = vld [vmem:[%s15 + $0x16d0] sm:$0xff]
  %v2934 = vld [vmem:[%s15 + $0x16d8] sm:$0xff]
  %v2935 = vld [vmem:[%s15 + $0x16e0] sm:$0xff]
  %v2936 = vld [vmem:[%s15 + $0x16e8] sm:$0xff]
  %v2937 = vld [vmem:[%s15 + $0x16f0] sm:$0xff]
  %v2938 = vld [vmem:[%s15 + $0x16f8] sm:$0xff]
  %v2939 = vld [vmem:[%s15 + $0x1700] sm:$0xff]
  %v2940 = vld [vmem:[%s15 + $0x1708] sm:$0xff]
  %v2941 = vld [vmem:[%s15 + $0x1710] sm:$0xff]
  %v2942 = vld [vmem:[%s15 + $0x1718] sm:$0xff]
  %v2943 = vld [vmem:[%s15 + $0x1720] sm:$0xff]
  %v2944 = vld [vmem:[%s15 + $0x1728] sm:$0xff]
  %v2945 = vld [vmem:[%s15 + $0x1730] sm:$0xff]
  %v2946 = vld [vmem:[%s15 + $0x1738] sm:$0xff]
  %v2947 = vld [vmem:[%s15 + $0x1740] sm:$0xff]
  %v2948 = vld [vmem:[%s15 + $0x1748] sm:$0xff]
  %v2949 = vld [vmem:[%s15 + $0x1750] sm:$0xff]
  %v2950 = vld [vmem:[%s15 + $0x1758] sm:$0xff]
  %v2951 = vld [vmem:[%s15 + $0x1760] sm:$0xff]
  %v2952 = vld [vmem:[%s15 + $0x1768] sm:$0xff]
  %v2953 = vld [vmem:[%s15 + $0x1770] sm:$0xff]
  %v2954 = vld [vmem:[%s15 + $0x1778] sm:$0xff]
  %v2955 = vld [vmem:[%s15 + $0x1780] sm:$0xff]
  %v2956 = vld [vmem:[%s15 + $0x1788] sm:$0xff]
  %v2957 = vld [vmem:[%s15 + $0x1790] sm:$0xff]
  %v2958 = vld [vmem:[%s15 + $0x1798] sm:$0xff]
  %v2959 = vld [vmem:[%s15 + $0x17a0] sm:$0xff]
  %v2960 = vld [vmem:[%s15 + $0x17a8] sm:$0xff]
  %v2961 = vld [vmem:[%s15 + $0x17b0] sm:$0xff]
  %v2962 = vld [vmem:[%s15 + $0x17b8] sm:$0xff]
  %v2963 = vld [vmem:[%s15 + $0x17c0] sm:$0xff]
  %v2964 = vld [vmem:[%s15 + $0x17c8] sm:$0xff]
  %v2965 = vld [vmem:[%s15 + $0x17d0] sm:$0xff]
  %v2966 = vld [vmem:[%s15 + $0x17d8] sm:$0xff]
  %v2967 = vld [vmem:[%s15 + $0x17e0] sm:$0xff]
  %v2968 = vld [vmem:[%s15 + $0x17e8] sm:$0xff]
  %v2969 = vld [vmem:[%s15 + $0x17f0] sm:$0xff]
  %v2970 = vld [vmem:[%s15 + $0x17f8] sm:$0xff]
  %v2971 = vld [vmem:[%s15 + $0x1800] sm:$0xff]
  %v2972 = vld [vmem:[%s15 + $0x1808] sm:$0xff]
  %v2973 = vld [vmem:[%s15 + $0x1810] sm:$0xff]
  %v2974 = vld [vmem:[%s15 + $0x1818] sm:$0xff]
  %v2975 = vld [vmem:[%s15 + $0x1820] sm:$0xff]
  %v2976 = vld [vmem:[%s15 + $0x1828] sm:$0xff]
  %v2977 = vld [vmem:[%s15 + $0x1830] sm:$0xff]
  %v2978 = vld [vmem:[%s15 + $0x1838] sm:$0xff]
  %v2979 = vld [vmem:[%s15 + $0x1840] sm:$0xff]
  %v2980 = vld [vmem:[%s15 + $0x1848] sm:$0xff]
  %v2981 = vld [vmem:[%s15 + $0x1850] sm:$0xff]
  %v2982 = vld [vmem:[%s15 + $0x1858] sm:$0xff]
  %v2983 = vld [vmem:[%s15 + $0x1860] sm:$0xff]
  %v2984 = vld [vmem:[%s15 + $0x1868] sm:$0xff]
  %v2985 = vld [vmem:[%s15 + $0x1870] sm:$0xff]
  %v2986 = vld [vmem:[%s15 + $0x1878] sm:$0xff]
  %v2987 = vld [vmem:[%s15 + $0x1880] sm:$0xff]
  %v2988 = vld [vmem:[%s15 + $0x1888] sm:$0xff]
  %v2989 = vld [vmem:[%s15 + $0x1890] sm:$0xff]
  %v2990 = vld [vmem:[%s15 + $0x1898] sm:$0xff]
  %v2991 = vld [vmem:[%s15 + $0x18a0] sm:$0xff]
  %v2992 = vld [vmem:[%s15 + $0x18a8] sm:$0xff]
  %v2993 = vld [vmem:[%s15 + $0x18b0] sm:$0xff]
  %v2994 = vld [vmem:[%s15 + $0x18b8] sm:$0xff]
  %v2995 = vld [vmem:[%s15 + $0x18c0] sm:$0xff]
  %v2996 = vld [vmem:[%s15 + $0x18c8] sm:$0xff]
  %v2997 = vld [vmem:[%s15 + $0x18d0] sm:$0xff]
  %v2998 = vld [vmem:[%s15 + $0x18d8] sm:$0xff]
  %v2999 = vld [vmem:[%s15 + $0x18e0] sm:$0xff]
  %v3000 = vld [vmem:[%s15 + $0x18e8] sm:$0xff]
  %v3001 = vld [vmem:[%s15 + $0x18f0] sm:$0xff]
  %v3002 = vld [vmem:[%s15 + $0x18f8] sm:$0xff]
  %v3003 = vld [vmem:[%s15 + $0x1900] sm:$0xff]
  %v3004 = vld [vmem:[%s15 + $0x1908] sm:$0xff]
  %v3005 = vld [vmem:[%s15 + $0x1910] sm:$0xff]
  %v3006 = vld [vmem:[%s15 + $0x1918] sm:$0xff]
  %v3007 = vld [vmem:[%s15 + $0x1920] sm:$0xff]
  %v3008 = vld [vmem:[%s15 + $0x1928] sm:$0xff]
  %v3009 = vld [vmem:[%s15 + $0x1930] sm:$0xff]
  %v3010 = vld [vmem:[%s15 + $0x1938] sm:$0xff]
  %v3011 = vld [vmem:[%s15 + $0x1940] sm:$0xff]
  %v3012 = vld [vmem:[%s15 + $0x1948] sm:$0xff]
  %v3013 = vld [vmem:[%s15 + $0x1950] sm:$0xff]
  %v3014 = vld [vmem:[%s15 + $0x1958] sm:$0xff]
  %v3015 = vld [vmem:[%s15 + $0x1960] sm:$0xff]
  %v3016 = vld [vmem:[%s15 + $0x1968] sm:$0xff]
  %v3017 = vld [vmem:[%s15 + $0x1970] sm:$0xff]
  %v3018 = vld [vmem:[%s15 + $0x1978] sm:$0xff]
  %v3019 = vld [vmem:[%s15 + $0x1980] sm:$0xff]
  %v3020 = vld [vmem:[%s15 + $0x1988] sm:$0xff]
  %v3021 = vld [vmem:[%s15 + $0x1990] sm:$0xff]
  %v3022 = vld [vmem:[%s15 + $0x1998] sm:$0xff]
  %v3023 = vld [vmem:[%s15 + $0x19a0] sm:$0xff]
  %v3024 = vld [vmem:[%s15 + $0x19a8] sm:$0xff]
  %v3025 = vld [vmem:[%s15 + $0x19b0] sm:$0xff]
  %v3026 = vld [vmem:[%s15 + $0x19b8] sm:$0xff]
  %v3027 = vld [vmem:[%s15 + $0x19c0] sm:$0xff]
  %v3028 = vld [vmem:[%s15 + $0x19c8] sm:$0xff]
  %v3029 = vld [vmem:[%s15 + $0x19d0] sm:$0xff]
  %v3030 = vld [vmem:[%s15 + $0x19d8] sm:$0xff]
  %v3031 = vld [vmem:[%s15 + $0x19e0] sm:$0xff]
  %v3032 = vld [vmem:[%s15 + $0x19e8] sm:$0xff]
  %v3033 = vld [vmem:[%s15 + $0x19f0] sm:$0xff]
  %v3034 = vld [vmem:[%s15 + $0x19f8] sm:$0xff]
  %v3035 = vld [vmem:[%s15 + $0x1a00] sm:$0xff]
  %v3036 = vld [vmem:[%s15 + $0x1a08] sm:$0xff]
  %v3037 = vld [vmem:[%s15 + $0x1a10] sm:$0xff]
  %v3038 = vld [vmem:[%s15 + $0x1a18] sm:$0xff]
  %v3039 = vld [vmem:[%s15 + $0x1a20] sm:$0xff]
  %v3040 = vld [vmem:[%s15 + $0x1a28] sm:$0xff]
  %v3041 = vld [vmem:[%s15 + $0x1a30] sm:$0xff]
  %v3042 = vld [vmem:[%s15 + $0x1a38] sm:$0xff]
  %v3043 = vld [vmem:[%s15 + $0x1a40] sm:$0xff]
  %v3044 = vld [vmem:[%s15 + $0x1a48] sm:$0xff]
  %v3045 = vld [vmem:[%s15 + $0x1a50] sm:$0xff]
  %v3046 = vld [vmem:[%s15 + $0x1a58] sm:$0xff]
  %v3047 = vld [vmem:[%s15 + $0x1a60] sm:$0xff]
  %v3048 = vld [vmem:[%s15 + $0x1a68] sm:$0xff]
  %v3049 = vld [vmem:[%s15 + $0x1a70] sm:$0xff]
  %v3050 = vld [vmem:[%s15 + $0x1a78] sm:$0xff]
  %v3051 = vld [vmem:[%s15 + $0x1a80] sm:$0xff]
  %v3052 = vld [vmem:[%s15 + $0x1a88] sm:$0xff]
  %v3053 = vld [vmem:[%s15 + $0x1a90] sm:$0xff]
  %v3054 = vld [vmem:[%s15 + $0x1a98] sm:$0xff]
  %v3055 = vld [vmem:[%s15 + $0x1aa0] sm:$0xff]
  %v3056 = vld [vmem:[%s15 + $0x1aa8] sm:$0xff]
  %v3057 = vld [vmem:[%s15 + $0x1ab0] sm:$0xff]
  %v3058 = vld [vmem:[%s15 + $0x1ab8] sm:$0xff]
  %v3059 = vld [vmem:[%s15 + $0x1ac0] sm:$0xff]
  %v3060 = vld [vmem:[%s15 + $0x1ac8] sm:$0xff]
  %v3061 = vld [vmem:[%s15 + $0x1ad0] sm:$0xff]
  %v3062 = vld [vmem:[%s15 + $0x1ad8] sm:$0xff]
  %v3063 = vld [vmem:[%s15 + $0x1ae0] sm:$0xff]
  %v3064 = vld [vmem:[%s15 + $0x1ae8] sm:$0xff]
  %v3065 = vld [vmem:[%s15 + $0x1af0] sm:$0xff]
  %v3066 = vld [vmem:[%s15 + $0x1af8] sm:$0xff]
  %v3067 = vld [vmem:[%s15 + $0x1b00] sm:$0xff]
  %v3068 = vld [vmem:[%s15 + $0x1b08] sm:$0xff]
  %v3069 = vld [vmem:[%s15 + $0x1b10] sm:$0xff]
  %v3070 = vld [vmem:[%s15 + $0x1b18] sm:$0xff]
  %v3071 = vld [vmem:[%s15 + $0x1b20] sm:$0xff]
  %v3072 = vld [vmem:[%s15 + $0x1b28] sm:$0xff]
  %v3073 = vld [vmem:[%s15 + $0x1b30] sm:$0xff]
  %v3074 = vld [vmem:[%s15 + $0x1b38] sm:$0xff]
  %v3075 = vld [vmem:[%s15 + $0x1b40] sm:$0xff]
  %v3076 = vld [vmem:[%s15 + $0x1b48] sm:$0xff]
  %v3077 = vld [vmem:[%s15 + $0x1b50] sm:$0xff]
  %v3078 = vld [vmem:[%s15 + $0x1b58] sm:$0xff]
  %v3079 = vld [vmem:[%s15 + $0x1b60] sm:$0xff]
  %v3080 = vld [vmem:[%s15 + $0x1b68] sm:$0xff]
  %v3081 = vld [vmem:[%s15 + $0x1b70] sm:$0xff]
  %v3082 = vld [vmem:[%s15 + $0x1b78] sm:$0xff]
  %v3083 = vld [vmem:[%s15 + $0x1b80] sm:$0xff]
  %v3084 = vld [vmem:[%s15 + $0x1b88] sm:$0xff]
  %v3085 = vld [vmem:[%s15 + $0x1b90] sm:$0xff]
  %v3086 = vld [vmem:[%s15 + $0x1b98] sm:$0xff]
  %v3087 = vld [vmem:[%s15 + $0x1ba0] sm:$0xff]
  %v3088 = vld [vmem:[%s15 + $0x1ba8] sm:$0xff]
  %v3089 = vld [vmem:[%s15 + $0x1bb0] sm:$0xff]
  %v3090 = vld [vmem:[%s15 + $0x1bb8] sm:$0xff]
  %v3091 = vld [vmem:[%s15 + $0x1bc0] sm:$0xff]
  %v3092 = vld [vmem:[%s15 + $0x1bc8] sm:$0xff]
  %v3093 = vld [vmem:[%s15 + $0x1bd0] sm:$0xff]
  %v3094 = vld [vmem:[%s15 + $0x1bd8] sm:$0xff]
  %v3095 = vld [vmem:[%s15 + $0x1be0] sm:$0xff]
  %v3096 = vld [vmem:[%s15 + $0x1be8] sm:$0xff]
  %v3097 = vld [vmem:[%s15 + $0x1bf0] sm:$0xff]
  %v3098 = vld [vmem:[%s15 + $0x1bf8] sm:$0xff]
  %v3099 = vld [vmem:[%s16] sm:$0xff]
  %v3101 = vlaneseq
  %v3102 = vshrl.u32 %v3101, 7
  %v3103 = vsub.s32 0, %v3102
  %v3104 = vrot.slane %v3099, %v3103
  %v3105 = vlaneseq
  %v3106 = vshrl.u32 %v3105, 7
  %v3107 = vsub.s32 1, %v3106
  %v3108 = vrot.slane %v3099, %v3107
  %v3109 = vlaneseq
  %v3110 = vshrl.u32 %v3109, 7
  %v3111 = vsub.s32 2, %v3110
  %v3112 = vrot.slane %v3099, %v3111
  %v3113 = vlaneseq
  %v3114 = vshrl.u32 %v3113, 7
  %v3115 = vsub.s32 3, %v3114
  %v3116 = vrot.slane %v3099, %v3115
  %v3117 = vlaneseq
  %v3118 = vshrl.u32 %v3117, 7
  %v3119 = vsub.s32 4, %v3118
  %v3120 = vrot.slane %v3099, %v3119
  %v3121 = vlaneseq
  %v3122 = vshrl.u32 %v3121, 7
  %v3123 = vsub.s32 5, %v3122
  %v3124 = vrot.slane %v3099, %v3123
  %v3125 = vlaneseq
  %v3126 = vshrl.u32 %v3125, 7
  %v3127 = vsub.s32 6, %v3126
  %v3128 = vrot.slane %v3099, %v3127
  %3136 = vmatprep.subr.mxu0 %v2204
  %3137 = vmatpush1.msra.mxu0 %v2203
  %3138 = vmatprep.subr.mxu0 %v2211
  %3139 = vmatpush1.msra.mxu0 %v2210
  %3140 = vmatprep.subr.mxu0 %v2218
  %3141 = vmatpush1.msra.mxu0 %v2217
  %3142 = vmatprep.subr.mxu0 %v2225
  %3143 = vmatpush1.msra.mxu0 %v2224
  %3144 = vmatprep.subr.mxu0 %v2232
  %3145 = vmatpush1.msra.mxu0 %v2231
  %3146 = vmatprep.subr.mxu0 %v2239
  %3147 = vmatpush1.msra.mxu0 %v2238
  %3148 = vmatprep.subr.mxu0 %v2246
  %3149 = vmatpush1.msra.mxu0 %v2245
  %3150 = vmatprep.subr.mxu0 %v2253
  %3151 = vmatpush1.msra.mxu0 %v2252
  %3152 = vmatprep.subr.mxu0 %v2260
  %3153 = vmatpush1.msra.mxu0 %v2259
  %3154 = vmatprep.subr.mxu0 %v2267
  %3155 = vmatpush1.msra.mxu0 %v2266
  %3156 = vmatprep.subr.mxu0 %v2274
  %3157 = vmatpush1.msra.mxu0 %v2273
  %3158 = vmatprep.subr.mxu0 %v2281
  %3159 = vmatpush1.msra.mxu0 %v2280
  %3160 = vmatprep.subr.mxu0 %v2288
  %3161 = vmatpush1.msra.mxu0 %v2287
  %3162 = vmatprep.subr.mxu0 %v2295
  %3163 = vmatpush1.msra.mxu0 %v2294
  %3164 = vmatprep.subr.mxu0 %v2302
  %3165 = vmatpush1.msra.mxu0 %v2301
  %3166 = vmatprep.subr.mxu0 %v2309
  %3167 = vmatpush1.msra.mxu0 %v2308
  %3168 = vmatprep.subr.mxu0 %v2316
  %3169 = vmatpush1.msra.mxu0 %v2315
  %3170 = vmatprep.subr.mxu0 %v2323
  %3171 = vmatpush1.msra.mxu0 %v2322
  %3172 = vmatprep.subr.mxu0 %v2330
  %3173 = vmatpush1.msra.mxu0 %v2329
  %3174 = vmatprep.subr.mxu0 %v2337
  %3175 = vmatpush1.msra.mxu0 %v2336
  %3176 = vmatprep.subr.mxu0 %v2344
  %3177 = vmatpush1.msra.mxu0 %v2343
  %3178 = vmatprep.subr.mxu0 %v2351
  %3179 = vmatpush1.msra.mxu0 %v2350
  %3180 = vmatprep.subr.mxu0 %v2358
  %3181 = vmatpush1.msra.mxu0 %v2357
  %3182 = vmatprep.subr.mxu0 %v2365
  %3183 = vmatpush1.msra.mxu0 %v2364
  %3184 = vmatprep.subr.mxu0 %v2372
  %3185 = vmatpush1.msra.mxu0 %v2371
  %3186 = vmatprep.subr.mxu0 %v2379
  %3187 = vmatpush1.msra.mxu0 %v2378
  %3188 = vmatprep.subr.mxu0 %v2386
  %3189 = vmatpush1.msra.mxu0 %v2385
  %3190 = vmatprep.subr.mxu0 %v2393
  %3191 = vmatpush1.msra.mxu0 %v2392
  %3192 = vmatprep.subr.mxu0 %v2400
  %3193 = vmatpush1.msra.mxu0 %v2399
  %3194 = vmatprep.subr.mxu0 %v2407
  %3195 = vmatpush1.msra.mxu0 %v2406
  %3196 = vmatprep.subr.mxu0 %v2414
  %3197 = vmatpush1.msra.mxu0 %v2413
  %3198 = vmatprep.subr.mxu0 %v2421
  %3199 = vmatpush1.msra.mxu0 %v2420
  %3200 = vmatprep.mubr.f32.mxu0 %v2196
  %3201 = vmatmul.mubr.f32.gmra.mrb[0].mxu0 %v2195
  %v3202 = vpop.f32.mrb[0].mxu0
  %v3203 = vadd.f32 %v3104, %v3202
  %v3204 = vpop.f32.mrb[0].mxu0
  %v3205 = vadd.f32 %v3108, %v3204
  %3206 = vdwg.mxu0
  %3207 = vmatprep.subr.mxu0 %v2428
  %3208 = vmatpush1.msra.mxu0 %v2427
  %3209 = vmatprep.subr.mxu0 %v2435
  %3210 = vmatpush1.msra.mxu0 %v2434
  %3211 = vmatprep.subr.mxu0 %v2442
  %3212 = vmatpush1.msra.mxu0 %v2441
  %3213 = vmatprep.subr.mxu0 %v2449
  %3214 = vmatpush1.msra.mxu0 %v2448
  %3215 = vmatprep.subr.mxu0 %v2456
  %3216 = vmatpush1.msra.mxu0 %v2455
  %3217 = vmatprep.subr.mxu0 %v2463
  %3218 = vmatpush1.msra.mxu0 %v2462
  %3219 = vmatprep.subr.mxu0 %v2470
  %3220 = vmatpush1.msra.mxu0 %v2469
  %3221 = vmatprep.subr.mxu0 %v2477
  %3222 = vmatpush1.msra.mxu0 %v2476
  %3223 = vmatprep.subr.mxu0 %v2484
  %3224 = vmatpush1.msra.mxu0 %v2483
  %3225 = vmatprep.subr.mxu0 %v2491
  %3226 = vmatpush1.msra.mxu0 %v2490
  %3227 = vmatprep.subr.mxu0 %v2498
  %3228 = vmatpush1.msra.mxu0 %v2497
  %3229 = vmatprep.subr.mxu0 %v2505
  %3230 = vmatpush1.msra.mxu0 %v2504
  %3231 = vmatprep.subr.mxu0 %v2512
  %3232 = vmatpush1.msra.mxu0 %v2511
  %3233 = vmatprep.subr.mxu0 %v2519
  %3234 = vmatpush1.msra.mxu0 %v2518
  %3235 = vmatprep.subr.mxu0 %v2526
  %3236 = vmatpush1.msra.mxu0 %v2525
  %3237 = vmatprep.subr.mxu0 %v2533
  %3238 = vmatpush1.msra.mxu0 %v2532
  %3239 = vmatprep.subr.mxu0 %v2540
  %3240 = vmatpush1.msra.mxu0 %v2539
  %3241 = vmatprep.subr.mxu0 %v2547
  %3242 = vmatpush1.msra.mxu0 %v2546
  %3243 = vmatprep.subr.mxu0 %v2554
  %3244 = vmatpush1.msra.mxu0 %v2553
  %3245 = vmatprep.subr.mxu0 %v2561
  %3246 = vmatpush1.msra.mxu0 %v2560
  %3247 = vmatprep.subr.mxu0 %v2568
  %3248 = vmatpush1.msra.mxu0 %v2567
  %3249 = vmatprep.subr.mxu0 %v2575
  %3250 = vmatpush1.msra.mxu0 %v2574
  %3251 = vmatprep.subr.mxu0 %v2582
  %3252 = vmatpush1.msra.mxu0 %v2581
  %3253 = vmatprep.subr.mxu0 %v2589
  %3254 = vmatpush1.msra.mxu0 %v2588
  %3255 = vmatprep.subr.mxu0 %v2596
  %3256 = vmatpush1.msra.mxu0 %v2595
  %3257 = vmatprep.subr.mxu0 %v2603
  %3258 = vmatpush1.msra.mxu0 %v2602
  %3259 = vmatprep.subr.mxu0 %v2610
  %3260 = vmatpush1.msra.mxu0 %v2609
  %3261 = vmatprep.subr.mxu0 %v2617
  %3262 = vmatpush1.msra.mxu0 %v2616
  %3263 = vmatprep.subr.mxu0 %v2624
  %3264 = vmatpush1.msra.mxu0 %v2623
  %3265 = vmatprep.subr.mxu0 %v2631
  %3266 = vmatpush1.msra.mxu0 %v2630
  %3267 = vmatprep.subr.mxu0 %v2638
  %3268 = vmatpush1.msra.mxu0 %v2637
  %3269 = vmatprep.subr.mxu0 %v2645
  %3270 = vmatpush1.msra.mxu0 %v2644
  %3271 = vmatprep.mubr.f32.mxu0 %v2198
  %3272 = vmatmul.mubr.f32.gmra.mrb[0].mxu0 %v2197
  %v3273 = vpop.f32.mrb[0].mxu0
  %v3274 = vadd.f32 %v3203, %v3273
  %v3275 = vpop.f32.mrb[0].mxu0
  %v3276 = vadd.f32 %v3205, %v3275
  %3277 = vdwg.mxu0
  %3278 = vmatprep.subr.mxu0 %v2652
  %3279 = vmatpush1.msra.mxu0 %v2651
  %3280 = vmatprep.subr.mxu0 %v2659
  %3281 = vmatpush1.msra.mxu0 %v2658
  %3282 = vmatprep.subr.mxu0 %v2666
  %3283 = vmatpush1.msra.mxu0 %v2665
  %3284 = vmatprep.subr.mxu0 %v2673
  %3285 = vmatpush1.msra.mxu0 %v2672
  %3286 = vmatprep.subr.mxu0 %v2680
  %3287 = vmatpush1.msra.mxu0 %v2679
  %3288 = vmatprep.subr.mxu0 %v2687
  %3289 = vmatpush1.msra.mxu0 %v2686
  %3290 = vmatprep.subr.mxu0 %v2694
  %3291 = vmatpush1.msra.mxu0 %v2693
  %3292 = vmatprep.subr.mxu0 %v2701
  %3293 = vmatpush1.msra.mxu0 %v2700
  %3294 = vmatprep.subr.mxu0 %v2708
  %3295 = vmatpush1.msra.mxu0 %v2707
  %3296 = vmatprep.subr.mxu0 %v2715
  %3297 = vmatpush1.msra.mxu0 %v2714
  %3298 = vmatprep.subr.mxu0 %v2722
  %3299 = vmatpush1.msra.mxu0 %v2721
  %3300 = vmatprep.subr.mxu0 %v2729
  %3301 = vmatpush1.msra.mxu0 %v2728
  %3302 = vmatprep.subr.mxu0 %v2736
  %3303 = vmatpush1.msra.mxu0 %v2735
  %3304 = vmatprep.subr.mxu0 %v2743
  %3305 = vmatpush1.msra.mxu0 %v2742
  %3306 = vmatprep.subr.mxu0 %v2750
  %3307 = vmatpush1.msra.mxu0 %v2749
  %3308 = vmatprep.subr.mxu0 %v2757
  %3309 = vmatpush1.msra.mxu0 %v2756
  %3310 = vmatprep.subr.mxu0 %v2764
  %3311 = vmatpush1.msra.mxu0 %v2763
  %3312 = vmatprep.subr.mxu0 %v2771
  %3313 = vmatpush1.msra.mxu0 %v2770
  %3314 = vmatprep.subr.mxu0 %v2778
  %3315 = vmatpush1.msra.mxu0 %v2777
  %3316 = vmatprep.subr.mxu0 %v2785
  %3317 = vmatpush1.msra.mxu0 %v2784
  %3318 = vmatprep.subr.mxu0 %v2792
  %3319 = vmatpush1.msra.mxu0 %v2791
  %3320 = vmatprep.subr.mxu0 %v2799
  %3321 = vmatpush1.msra.mxu0 %v2798
  %3322 = vmatprep.subr.mxu0 %v2806
  %3323 = vmatpush1.msra.mxu0 %v2805
  %3324 = vmatprep.subr.mxu0 %v2813
  %3325 = vmatpush1.msra.mxu0 %v2812
  %3326 = vmatprep.subr.mxu0 %v2820
  %3327 = vmatpush1.msra.mxu0 %v2819
  %3328 = vmatprep.subr.mxu0 %v2827
  %3329 = vmatpush1.msra.mxu0 %v2826
  %3330 = vmatprep.subr.mxu0 %v2834
  %3331 = vmatpush1.msra.mxu0 %v2833
  %3332 = vmatprep.subr.mxu0 %v2841
  %3333 = vmatpush1.msra.mxu0 %v2840
  %3334 = vmatprep.subr.mxu0 %v2848
  %3335 = vmatpush1.msra.mxu0 %v2847
  %3336 = vmatprep.subr.mxu0 %v2855
  %3337 = vmatpush1.msra.mxu0 %v2854
  %3338 = vmatprep.subr.mxu0 %v2862
  %3339 = vmatpush1.msra.mxu0 %v2861
  %3340 = vmatprep.subr.mxu0 %v2869
  %3341 = vmatpush1.msra.mxu0 %v2868
  %3342 = vmatprep.mubr.f32.mxu0 %v2200
  %3343 = vmatmul.mubr.f32.gmra.mrb[0].mxu0 %v2199
  %v3344 = vpop.f32.mrb[0].mxu0
  %v3345 = vadd.f32 %v3274, %v3344
  %v3346 = vpop.f32.mrb[0].mxu0
  %v3347 = vadd.f32 %v3276, %v3346
  %3348 = vdwg.mxu0
  %3349 = vmatprep.subr.mxu0 %v2876
  %3350 = vmatpush1.msra.mxu0 %v2875
  %3351 = vmatprep.subr.mxu0 %v2883
  %3352 = vmatpush1.msra.mxu0 %v2882
  %3353 = vmatprep.subr.mxu0 %v2890
  %3354 = vmatpush1.msra.mxu0 %v2889
  %3355 = vmatprep.subr.mxu0 %v2897
  %3356 = vmatpush1.msra.mxu0 %v2896
  %3357 = vmatprep.subr.mxu0 %v2904
  %3358 = vmatpush1.msra.mxu0 %v2903
  %3359 = vmatprep.subr.mxu0 %v2911
  %3360 = vmatpush1.msra.mxu0 %v2910
  %3361 = vmatprep.subr.mxu0 %v2918
  %3362 = vmatpush1.msra.mxu0 %v2917
  %3363 = vmatprep.subr.mxu0 %v2925
  %3364 = vmatpush1.msra.mxu0 %v2924
  %3365 = vmatprep.subr.mxu0 %v2932
  %3366 = vmatpush1.msra.mxu0 %v2931
  %3367 = vmatprep.subr.mxu0 %v2939
  %3368 = vmatpush1.msra.mxu0 %v2938
  %3369 = vmatprep.subr.mxu0 %v2946
  %3370 = vmatpush1.msra.mxu0 %v2945
  %3371 = vmatprep.subr.mxu0 %v2953
  %3372 = vmatpush1.msra.mxu0 %v2952
  %3373 = vmatprep.subr.mxu0 %v2960
  %3374 = vmatpush1.msra.mxu0 %v2959
  %3375 = vmatprep.subr.mxu0 %v2967
  %3376 = vmatpush1.msra.mxu0 %v2966
  %3377 = vmatprep.subr.mxu0 %v2974
  %3378 = vmatpush1.msra.mxu0 %v2973
  %3379 = vmatprep.subr.mxu0 %v2981
  %3380 = vmatpush1.msra.mxu0 %v2980
  %3381 = vmatprep.subr.mxu0 %v2988
  %3382 = vmatpush1.msra.mxu0 %v2987
  %3383 = vmatprep.subr.mxu0 %v2995
  %3384 = vmatpush1.msra.mxu0 %v2994
  %3385 = vmatprep.subr.mxu0 %v3002
  %3386 = vmatpush1.msra.mxu0 %v3001
  %3387 = vmatprep.subr.mxu0 %v3009
  %3388 = vmatpush1.msra.mxu0 %v3008
  %3389 = vmatprep.subr.mxu0 %v3016
  %3390 = vmatpush1.msra.mxu0 %v3015
  %3391 = vmatprep.subr.mxu0 %v3023
  %3392 = vmatpush1.msra.mxu0 %v3022
  %3393 = vmatprep.subr.mxu0 %v3030
  %3394 = vmatpush1.msra.mxu0 %v3029
  %3395 = vmatprep.subr.mxu0 %v3037
  %3396 = vmatpush1.msra.mxu0 %v3036
  %3397 = vmatprep.subr.mxu0 %v3044
  %3398 = vmatpush1.msra.mxu0 %v3043
  %3399 = vmatprep.subr.mxu0 %v3051
  %3400 = vmatpush1.msra.mxu0 %v3050
  %3401 = vmatprep.subr.mxu0 %v3058
  %3402 = vmatpush1.msra.mxu0 %v3057
  %3403 = vmatprep.subr.mxu0 %v3065
  %3404 = vmatpush1.msra.mxu0 %v3064
  %3405 = vmatprep.subr.mxu0 %v3072
  %3406 = vmatpush1.msra.mxu0 %v3071
  %3407 = vmatprep.subr.mxu0 %v3079
  %3408 = vmatpush1.msra.mxu0 %v3078
  %3409 = vmatprep.subr.mxu0 %v3086
  %3410 = vmatpush1.msra.mxu0 %v3085
  %3411 = vmatprep.subr.mxu0 %v3093
  %3412 = vmatpush1.msra.mxu0 %v3092
  %3413 = vmatprep.mubr.f32.mxu0 %v2202
  %3414 = vmatmul.mubr.f32.gmra.mrb[0].mxu0 %v2201
  %v3415 = vpop.f32.mrb[0].mxu0
  %v3416 = vadd.f32 %v3345, %v3415
  %v3417 = vpop.f32.mrb[0].mxu0
  %v3418 = vadd.f32 %v3347, %v3417
  %3419 = vdwg.mxu0
  %3420 = vmatprep.subr.mxu0 %v2206
  %3421 = vmatpush1.msra.mxu0 %v2205
  %3422 = vmatprep.subr.mxu0 %v2213
  %3423 = vmatpush1.msra.mxu0 %v2212
  %3424 = vmatprep.subr.mxu0 %v2220
  %3425 = vmatpush1.msra.mxu0 %v2219
  %3426 = vmatprep.subr.mxu0 %v2227
  %3427 = vmatpush1.msra.mxu0 %v2226
  %3428 = vmatprep.subr.mxu0 %v2234
  %3429 = vmatpush1.msra.mxu0 %v2233
  %3430 = vmatprep.subr.mxu0 %v2241
  %3431 = vmatpush1.msra.mxu0 %v2240
  %3432 = vmatprep.subr.mxu0 %v2248
  %3433 = vmatpush1.msra.mxu0 %v2247
  %3434 = vmatprep.subr.mxu0 %v2255
  %3435 = vmatpush1.msra.mxu0 %v2254
  %3436 = vmatprep.subr.mxu0 %v2262
  %3437 = vmatpush1.msra.mxu0 %v2261
  %3438 = vmatprep.subr.mxu0 %v2269
  %3439 = vmatpush1.msra.mxu0 %v2268
  %3440 = vmatprep.subr.mxu0 %v2276
  %3441 = vmatpush1.msra.mxu0 %v2275
  %3442 = vmatprep.subr.mxu0 %v2283
  %3443 = vmatpush1.msra.mxu0 %v2282
  %3444 = vmatprep.subr.mxu0 %v2290
  %3445 = vmatpush1.msra.mxu0 %v2289
  %3446 = vmatprep.subr.mxu0 %v2297
  %3447 = vmatpush1.msra.mxu0 %v2296
  %3448 = vmatprep.subr.mxu0 %v2304
  %3449 = vmatpush1.msra.mxu0 %v2303
  %3450 = vmatprep.subr.mxu0 %v2311
  %3451 = vmatpush1.msra.mxu0 %v2310
  %3452 = vmatprep.subr.mxu0 %v2318
  %3453 = vmatpush1.msra.mxu0 %v2317
  %3454 = vmatprep.subr.mxu0 %v2325
  %3455 = vmatpush1.msra.mxu0 %v2324
  %3456 = vmatprep.subr.mxu0 %v2332
  %3457 = vmatpush1.msra.mxu0 %v2331
  %3458 = vmatprep.subr.mxu0 %v2339
  %3459 = vmatpush1.msra.mxu0 %v2338
  %3460 = vmatprep.subr.mxu0 %v2346
  %3461 = vmatpush1.msra.mxu0 %v2345
  %3462 = vmatprep.subr.mxu0 %v2353
  %3463 = vmatpush1.msra.mxu0 %v2352
  %3464 = vmatprep.subr.mxu0 %v2360
  %3465 = vmatpush1.msra.mxu0 %v2359
  %3466 = vmatprep.subr.mxu0 %v2367
  %3467 = vmatpush1.msra.mxu0 %v2366
  %3468 = vmatprep.subr.mxu0 %v2374
  %3469 = vmatpush1.msra.mxu0 %v2373
  %3470 = vmatprep.subr.mxu0 %v2381
  %3471 = vmatpush1.msra.mxu0 %v2380
  %3472 = vmatprep.subr.mxu0 %v2388
  %3473 = vmatpush1.msra.mxu0 %v2387
  %3474 = vmatprep.subr.mxu0 %v2395
  %3475 = vmatpush1.msra.mxu0 %v2394
  %3476 = vmatprep.subr.mxu0 %v2402
  %3477 = vmatpush1.msra.mxu0 %v2401
  %3478 = vmatprep.subr.mxu0 %v2409
  %3479 = vmatpush1.msra.mxu0 %v2408
  %3480 = vmatprep.subr.mxu0 %v2416
  %3481 = vmatpush1.msra.mxu0 %v2415
  %3482 = vmatprep.subr.mxu0 %v2423
  %3483 = vmatpush1.msra.mxu0 %v2422
  %3484 = vmatprep.mubr.f32.mxu0 %v2196
  %3485 = vmatmul.mubr.f32.gmra.mrb[0].mxu0 %v2195
  %v3486 = vpop.f32.mrb[0].mxu0
  %v3487 = vadd.f32 %v3112, %v3486
  %v3488 = vpop.f32.mrb[0].mxu0
  %v3489 = vadd.f32 %v3116, %v3488
  %3490 = vdwg.mxu0
  %3491 = vmatprep.subr.mxu0 %v2430
  %3492 = vmatpush1.msra.mxu0 %v2429
  %3493 = vmatprep.subr.mxu0 %v2437
  %3494 = vmatpush1.msra.mxu0 %v2436
  %3495 = vmatprep.subr.mxu0 %v2444
  %3496 = vmatpush1.msra.mxu0 %v2443
  %3497 = vmatprep.subr.mxu0 %v2451
  %3498 = vmatpush1.msra.mxu0 %v2450
  %3499 = vmatprep.subr.mxu0 %v2458
  %3500 = vmatpush1.msra.mxu0 %v2457
  %3501 = vmatprep.subr.mxu0 %v2465
  %3502 = vmatpush1.msra.mxu0 %v2464
  %3503 = vmatprep.subr.mxu0 %v2472
  %3504 = vmatpush1.msra.mxu0 %v2471
  %3505 = vmatprep.subr.mxu0 %v2479
  %3506 = vmatpush1.msra.mxu0 %v2478
  %3507 = vmatprep.subr.mxu0 %v2486
  %3508 = vmatpush1.msra.mxu0 %v2485
  %3509 = vmatprep.subr.mxu0 %v2493
  %3510 = vmatpush1.msra.mxu0 %v2492
  %3511 = vmatprep.subr.mxu0 %v2500
  %3512 = vmatpush1.msra.mxu0 %v2499
  %3513 = vmatprep.subr.mxu0 %v2507
  %3514 = vmatpush1.msra.mxu0 %v2506
  %3515 = vmatprep.subr.mxu0 %v2514
  %3516 = vmatpush1.msra.mxu0 %v2513
  %3517 = vmatprep.subr.mxu0 %v2521
  %3518 = vmatpush1.msra.mxu0 %v2520
  %3519 = vmatprep.subr.mxu0 %v2528
  %3520 = vmatpush1.msra.mxu0 %v2527
  %3521 = vmatprep.subr.mxu0 %v2535
  %3522 = vmatpush1.msra.mxu0 %v2534
  %3523 = vmatprep.subr.mxu0 %v2542
  %3524 = vmatpush1.msra.mxu0 %v2541
  %3525 = vmatprep.subr.mxu0 %v2549
  %3526 = vmatpush1.msra.mxu0 %v2548
  %3527 = vmatprep.subr.mxu0 %v2556
  %3528 = vmatpush1.msra.mxu0 %v2555
  %3529 = vmatprep.subr.mxu0 %v2563
  %3530 = vmatpush1.msra.mxu0 %v2562
  %3531 = vmatprep.subr.mxu0 %v2570
  %3532 = vmatpush1.msra.mxu0 %v2569
  %3533 = vmatprep.subr.mxu0 %v2577
  %3534 = vmatpush1.msra.mxu0 %v2576
  %3535 = vmatprep.subr.mxu0 %v2584
  %3536 = vmatpush1.msra.mxu0 %v2583
  %3537 = vmatprep.subr.mxu0 %v2591
  %3538 = vmatpush1.msra.mxu0 %v2590
  %3539 = vmatprep.subr.mxu0 %v2598
  %3540 = vmatpush1.msra.mxu0 %v2597
  %3541 = vmatprep.subr.mxu0 %v2605
  %3542 = vmatpush1.msra.mxu0 %v2604
  %3543 = vmatprep.subr.mxu0 %v2612
  %3544 = vmatpush1.msra.mxu0 %v2611
  %3545 = vmatprep.subr.mxu0 %v2619
  %3546 = vmatpush1.msra.mxu0 %v2618
  %3547 = vmatprep.subr.mxu0 %v2626
  %3548 = vmatpush1.msra.mxu0 %v2625
  %3549 = vmatprep.subr.mxu0 %v2633
  %3550 = vmatpush1.msra.mxu0 %v2632
  %3551 = vmatprep.subr.mxu0 %v2640
  %3552 = vmatpush1.msra.mxu0 %v2639
  %3553 = vmatprep.subr.mxu0 %v2647
  %3554 = vmatpush1.msra.mxu0 %v2646
  %3555 = vmatprep.mubr.f32.mxu0 %v2198
  %3556 = vmatmul.mubr.f32.gmra.mrb[0].mxu0 %v2197
  %v3557 = vpop.f32.mrb[0].mxu0
  %v3558 = vadd.f32 %v3487, %v3557
  %v3559 = vpop.f32.mrb[0].mxu0
  %v3560 = vadd.f32 %v3489, %v3559
  %3561 = vdwg.mxu0
  %3562 = vmatprep.subr.mxu0 %v2654
  %3563 = vmatpush1.msra.mxu0 %v2653
  %3564 = vmatprep.subr.mxu0 %v2661
  %3565 = vmatpush1.msra.mxu0 %v2660
  %3566 = vmatprep.subr.mxu0 %v2668
  %3567 = vmatpush1.msra.mxu0 %v2667
  %3568 = vmatprep.subr.mxu0 %v2675
  %3569 = vmatpush1.msra.mxu0 %v2674
  %3570 = vmatprep.subr.mxu0 %v2682
  %3571 = vmatpush1.msra.mxu0 %v2681
  %3572 = vmatprep.subr.mxu0 %v2689
  %3573 = vmatpush1.msra.mxu0 %v2688
  %3574 = vmatprep.subr.mxu0 %v2696
  %3575 = vmatpush1.msra.mxu0 %v2695
  %3576 = vmatprep.subr.mxu0 %v2703
  %3577 = vmatpush1.msra.mxu0 %v2702
  %3578 = vmatprep.subr.mxu0 %v2710
  %3579 = vmatpush1.msra.mxu0 %v2709
  %3580 = vmatprep.subr.mxu0 %v2717
  %3581 = vmatpush1.msra.mxu0 %v2716
  %3582 = vmatprep.subr.mxu0 %v2724
  %3583 = vmatpush1.msra.mxu0 %v2723
  %3584 = vmatprep.subr.mxu0 %v2731
  %3585 = vmatpush1.msra.mxu0 %v2730
  %3586 = vmatprep.subr.mxu0 %v2738
  %3587 = vmatpush1.msra.mxu0 %v2737
  %3588 = vmatprep.subr.mxu0 %v2745
  %3589 = vmatpush1.msra.mxu0 %v2744
  %3590 = vmatprep.subr.mxu0 %v2752
  %3591 = vmatpush1.msra.mxu0 %v2751
  %3592 = vmatprep.subr.mxu0 %v2759
  %3593 = vmatpush1.msra.mxu0 %v2758
  %3594 = vmatprep.subr.mxu0 %v2766
  %3595 = vmatpush1.msra.mxu0 %v2765
  %3596 = vmatprep.subr.mxu0 %v2773
  %3597 = vmatpush1.msra.mxu0 %v2772
  %3598 = vmatprep.subr.mxu0 %v2780
  %3599 = vmatpush1.msra.mxu0 %v2779
  %3600 = vmatprep.subr.mxu0 %v2787
  %3601 = vmatpush1.msra.mxu0 %v2786
  %3602 = vmatprep.subr.mxu0 %v2794
  %3603 = vmatpush1.msra.mxu0 %v2793
  %3604 = vmatprep.subr.mxu0 %v2801
  %3605 = vmatpush1.msra.mxu0 %v2800
  %3606 = vmatprep.subr.mxu0 %v2808
  %3607 = vmatpush1.msra.mxu0 %v2807
  %3608 = vmatprep.subr.mxu0 %v2815
  %3609 = vmatpush1.msra.mxu0 %v2814
  %3610 = vmatprep.subr.mxu0 %v2822
  %3611 = vmatpush1.msra.mxu0 %v2821
  %3612 = vmatprep.subr.mxu0 %v2829
  %3613 = vmatpush1.msra.mxu0 %v2828
  %3614 = vmatprep.subr.mxu0 %v2836
  %3615 = vmatpush1.msra.mxu0 %v2835
  %3616 = vmatprep.subr.mxu0 %v2843
  %3617 = vmatpush1.msra.mxu0 %v2842
  %3618 = vmatprep.subr.mxu0 %v2850
  %3619 = vmatpush1.msra.mxu0 %v2849
  %3620 = vmatprep.subr.mxu0 %v2857
  %3621 = vmatpush1.msra.mxu0 %v2856
  %3622 = vmatprep.subr.mxu0 %v2864
  %3623 = vmatpush1.msra.mxu0 %v2863
  %3624 = vmatprep.subr.mxu0 %v2871
  %3625 = vmatpush1.msra.mxu0 %v2870
  %3626 = vmatprep.mubr.f32.mxu0 %v2200
  %3627 = vmatmul.mubr.f32.gmra.mrb[0].mxu0 %v2199
  %v3628 = vpop.f32.mrb[0].mxu0
  %v3629 = vadd.f32 %v3558, %v3628
  %v3630 = vpop.f32.mrb[0].mxu0
  %v3631 = vadd.f32 %v3560, %v3630
  %3632 = vdwg.mxu0
  %3633 = vmatprep.subr.mxu0 %v2878
  %3634 = vmatpush1.msra.mxu0 %v2877
  %3635 = vmatprep.subr.mxu0 %v2885
  %3636 = vmatpush1.msra.mxu0 %v2884
  %3637 = vmatprep.subr.mxu0 %v2892
  %3638 = vmatpush1.msra.mxu0 %v2891
  %3639 = vmatprep.subr.mxu0 %v2899
  %3640 = vmatpush1.msra.mxu0 %v2898
  %3641 = vmatprep.subr.mxu0 %v2906
  %3642 = vmatpush1.msra.mxu0 %v2905
  %3643 = vmatprep.subr.mxu0 %v2913
  %3644 = vmatpush1.msra.mxu0 %v2912
  %3645 = vmatprep.subr.mxu0 %v2920
  %3646 = vmatpush1.msra.mxu0 %v2919
  %3647 = vmatprep.subr.mxu0 %v2927
  %3648 = vmatpush1.msra.mxu0 %v2926
  %3649 = vmatprep.subr.mxu0 %v2934
  %3650 = vmatpush1.msra.mxu0 %v2933
  %3651 = vmatprep.subr.mxu0 %v2941
  %3652 = vmatpush1.msra.mxu0 %v2940
  %3653 = vmatprep.subr.mxu0 %v2948
  %3654 = vmatpush1.msra.mxu0 %v2947
  %3655 = vmatprep.subr.mxu0 %v2955
  %3656 = vmatpush1.msra.mxu0 %v2954
  %3657 = vmatprep.subr.mxu0 %v2962
  %3658 = vmatpush1.msra.mxu0 %v2961
  %3659 = vmatprep.subr.mxu0 %v2969
  %3660 = vmatpush1.msra.mxu0 %v2968
  %3661 = vmatprep.subr.mxu0 %v2976
  %3662 = vmatpush1.msra.mxu0 %v2975
  %3663 = vmatprep.subr.mxu0 %v2983
  %3664 = vmatpush1.msra.mxu0 %v2982
  %3665 = vmatprep.subr.mxu0 %v2990
  %3666 = vmatpush1.msra.mxu0 %v2989
  %3667 = vmatprep.subr.mxu0 %v2997
  %3668 = vmatpush1.msra.mxu0 %v2996
  %3669 = vmatprep.subr.mxu0 %v3004
  %3670 = vmatpush1.msra.mxu0 %v3003
  %3671 = vmatprep.subr.mxu0 %v3011
  %3672 = vmatpush1.msra.mxu0 %v3010
  %3673 = vmatprep.subr.mxu0 %v3018
  %3674 = vmatpush1.msra.mxu0 %v3017
  %3675 = vmatprep.subr.mxu0 %v3025
  %3676 = vmatpush1.msra.mxu0 %v3024
  %3677 = vmatprep.subr.mxu0 %v3032
  %3678 = vmatpush1.msra.mxu0 %v3031
  %3679 = vmatprep.subr.mxu0 %v3039
  %3680 = vmatpush1.msra.mxu0 %v3038
  %3681 = vmatprep.subr.mxu0 %v3046
  %3682 = vmatpush1.msra.mxu0 %v3045
  %3683 = vmatprep.subr.mxu0 %v3053
  %3684 = vmatpush1.msra.mxu0 %v3052
  %3685 = vmatprep.subr.mxu0 %v3060
  %3686 = vmatpush1.msra.mxu0 %v3059
  %3687 = vmatprep.subr.mxu0 %v3067
  %3688 = vmatpush1.msra.mxu0 %v3066
  %3689 = vmatprep.subr.mxu0 %v3074
  %3690 = vmatpush1.msra.mxu0 %v3073
  %3691 = vmatprep.subr.mxu0 %v3081
  %3692 = vmatpush1.msra.mxu0 %v3080
  %3693 = vmatprep.subr.mxu0 %v3088
  %3694 = vmatpush1.msra.mxu0 %v3087
  %3695 = vmatprep.subr.mxu0 %v3095
  %3696 = vmatpush1.msra.mxu0 %v3094
  %3697 = vmatprep.mubr.f32.mxu0 %v2202
  %3698 = vmatmul.mubr.f32.gmra.mrb[0].mxu0 %v2201
  %v3699 = vpop.f32.mrb[0].mxu0
  %v3700 = vadd.f32 %v3629, %v3699
  %v3701 = vpop.f32.mrb[0].mxu0
  %v3702 = vadd.f32 %v3631, %v3701
  %3703 = vdwg.mxu0
  %3704 = vmatprep.subr.mxu0 %v2208
  %3705 = vmatpush1.msra.mxu0 %v2207
  %3706 = vmatprep.subr.mxu0 %v2215
  %3707 = vmatpush1.msra.mxu0 %v2214
  %3708 = vmatprep.subr.mxu0 %v2222
  %3709 = vmatpush1.msra.mxu0 %v2221
  %3710 = vmatprep.subr.mxu0 %v2229
  %3711 = vmatpush1.msra.mxu0 %v2228
  %3712 = vmatprep.subr.mxu0 %v2236
  %3713 = vmatpush1.msra.mxu0 %v2235
  %3714 = vmatprep.subr.mxu0 %v2243
  %3715 = vmatpush1.msra.mxu0 %v2242
  %3716 = vmatprep.subr.mxu0 %v2250
  %3717 = vmatpush1.msra.mxu0 %v2249
  %3718 = vmatprep.subr.mxu0 %v2257
  %3719 = vmatpush1.msra.mxu0 %v2256
  %3720 = vmatprep.subr.mxu0 %v2264
  %3721 = vmatpush1.msra.mxu0 %v2263
  %3722 = vmatprep.subr.mxu0 %v2271
  %3723 = vmatpush1.msra.mxu0 %v2270
  %3724 = vmatprep.subr.mxu0 %v2278
  %3725 = vmatpush1.msra.mxu0 %v2277
  %3726 = vmatprep.subr.mxu0 %v2285
  %3727 = vmatpush1.msra.mxu0 %v2284
  %3728 = vmatprep.subr.mxu0 %v2292
  %3729 = vmatpush1.msra.mxu0 %v2291
  %3730 = vmatprep.subr.mxu0 %v2299
  %3731 = vmatpush1.msra.mxu0 %v2298
  %3732 = vmatprep.subr.mxu0 %v2306
  %3733 = vmatpush1.msra.mxu0 %v2305
  %3734 = vmatprep.subr.mxu0 %v2313
  %3735 = vmatpush1.msra.mxu0 %v2312
  %3736 = vmatprep.subr.mxu0 %v2320
  %3737 = vmatpush1.msra.mxu0 %v2319
  %3738 = vmatprep.subr.mxu0 %v2327
  %3739 = vmatpush1.msra.mxu0 %v2326
  %3740 = vmatprep.subr.mxu0 %v2334
  %3741 = vmatpush1.msra.mxu0 %v2333
  %3742 = vmatprep.subr.mxu0 %v2341
  %3743 = vmatpush1.msra.mxu0 %v2340
  %3744 = vmatprep.subr.mxu0 %v2348
  %3745 = vmatpush1.msra.mxu0 %v2347
  %3746 = vmatprep.subr.mxu0 %v2355
  %3747 = vmatpush1.msra.mxu0 %v2354
  %3748 = vmatprep.subr.mxu0 %v2362
  %3749 = vmatpush1.msra.mxu0 %v2361
  %3750 = vmatprep.subr.mxu0 %v2369
  %3751 = vmatpush1.msra.mxu0 %v2368
  %3752 = vmatprep.subr.mxu0 %v2376
  %3753 = vmatpush1.msra.mxu0 %v2375
  %3754 = vmatprep.subr.mxu0 %v2383
  %3755 = vmatpush1.msra.mxu0 %v2382
  %3756 = vmatprep.subr.mxu0 %v2390
  %3757 = vmatpush1.msra.mxu0 %v2389
  %3758 = vmatprep.subr.mxu0 %v2397
  %3759 = vmatpush1.msra.mxu0 %v2396
  %3760 = vmatprep.subr.mxu0 %v2404
  %3761 = vmatpush1.msra.mxu0 %v2403
  %3762 = vmatprep.subr.mxu0 %v2411
  %3763 = vmatpush1.msra.mxu0 %v2410
  %3764 = vmatprep.subr.mxu0 %v2418
  %3765 = vmatpush1.msra.mxu0 %v2417
  %3766 = vmatprep.subr.mxu0 %v2425
  %3767 = vmatpush1.msra.mxu0 %v2424
  %3768 = vmatprep.mubr.f32.mxu0 %v2196
  %3769 = vmatmul.mubr.f32.gmra.mrb[0].mxu0 %v2195
  %v3770 = vpop.f32.mrb[0].mxu0
  %v3771 = vadd.f32 %v3120, %v3770
  %v3772 = vpop.f32.mrb[0].mxu0
  %v3773 = vadd.f32 %v3124, %v3772
  %3774 = vdwg.mxu0
  %3775 = vmatprep.subr.mxu0 %v2432
  %3776 = vmatpush1.msra.mxu0 %v2431
  %3777 = vmatprep.subr.mxu0 %v2439
  %3778 = vmatpush1.msra.mxu0 %v2438
  %3779 = vmatprep.subr.mxu0 %v2446
  %3780 = vmatpush1.msra.mxu0 %v2445
  %3781 = vmatprep.subr.mxu0 %v2453
  %3782 = vmatpush1.msra.mxu0 %v2452
  %3783 = vmatprep.subr.mxu0 %v2460
  %3784 = vmatpush1.msra.mxu0 %v2459
  %3785 = vmatprep.subr.mxu0 %v2467
  %3786 = vmatpush1.msra.mxu0 %v2466
  %3787 = vmatprep.subr.mxu0 %v2474
  %3788 = vmatpush1.msra.mxu0 %v2473
  %3789 = vmatprep.subr.mxu0 %v2481
  %3790 = vmatpush1.msra.mxu0 %v2480
  %3791 = vmatprep.subr.mxu0 %v2488
  %3792 = vmatpush1.msra.mxu0 %v2487
  %3793 = vmatprep.subr.mxu0 %v2495
  %3794 = vmatpush1.msra.mxu0 %v2494
  %3795 = vmatprep.subr.mxu0 %v2502
  %3796 = vmatpush1.msra.mxu0 %v2501
  %3797 = vmatprep.subr.mxu0 %v2509
  %3798 = vmatpush1.msra.mxu0 %v2508
  %3799 = vmatprep.subr.mxu0 %v2516
  %3800 = vmatpush1.msra.mxu0 %v2515
  %3801 = vmatprep.subr.mxu0 %v2523
  %3802 = vmatpush1.msra.mxu0 %v2522
  %3803 = vmatprep.subr.mxu0 %v2530
  %3804 = vmatpush1.msra.mxu0 %v2529
  %3805 = vmatprep.subr.mxu0 %v2537
  %3806 = vmatpush1.msra.mxu0 %v2536
  %3807 = vmatprep.subr.mxu0 %v2544
  %3808 = vmatpush1.msra.mxu0 %v2543
  %3809 = vmatprep.subr.mxu0 %v2551
  %3810 = vmatpush1.msra.mxu0 %v2550
  %3811 = vmatprep.subr.mxu0 %v2558
  %3812 = vmatpush1.msra.mxu0 %v2557
  %3813 = vmatprep.subr.mxu0 %v2565
  %3814 = vmatpush1.msra.mxu0 %v2564
  %3815 = vmatprep.subr.mxu0 %v2572
  %3816 = vmatpush1.msra.mxu0 %v2571
  %3817 = vmatprep.subr.mxu0 %v2579
  %3818 = vmatpush1.msra.mxu0 %v2578
  %3819 = vmatprep.subr.mxu0 %v2586
  %3820 = vmatpush1.msra.mxu0 %v2585
  %3821 = vmatprep.subr.mxu0 %v2593
  %3822 = vmatpush1.msra.mxu0 %v2592
  %3823 = vmatprep.subr.mxu0 %v2600
  %3824 = vmatpush1.msra.mxu0 %v2599
  %3825 = vmatprep.subr.mxu0 %v2607
  %3826 = vmatpush1.msra.mxu0 %v2606
  %3827 = vmatprep.subr.mxu0 %v2614
  %3828 = vmatpush1.msra.mxu0 %v2613
  %3829 = vmatprep.subr.mxu0 %v2621
  %3830 = vmatpush1.msra.mxu0 %v2620
  %3831 = vmatprep.subr.mxu0 %v2628
  %3832 = vmatpush1.msra.mxu0 %v2627
  %3833 = vmatprep.subr.mxu0 %v2635
  %3834 = vmatpush1.msra.mxu0 %v2634
  %3835 = vmatprep.subr.mxu0 %v2642
  %3836 = vmatpush1.msra.mxu0 %v2641
  %3837 = vmatprep.subr.mxu0 %v2649
  %3838 = vmatpush1.msra.mxu0 %v2648
  %3839 = vmatprep.mubr.f32.mxu0 %v2198
  %3840 = vmatmul.mubr.f32.gmra.mrb[0].mxu0 %v2197
  %v3841 = vpop.f32.mrb[0].mxu0
  %v3842 = vadd.f32 %v3771, %v3841
  %v3843 = vpop.f32.mrb[0].mxu0
  %v3844 = vadd.f32 %v3773, %v3843
  %3845 = vdwg.mxu0
  %3846 = vmatprep.subr.mxu0 %v2656
  %3847 = vmatpush1.msra.mxu0 %v2655
  %3848 = vmatprep.subr.mxu0 %v2663
  %3849 = vmatpush1.msra.mxu0 %v2662
  %3850 = vmatprep.subr.mxu0 %v2670
  %3851 = vmatpush1.msra.mxu0 %v2669
  %3852 = vmatprep.subr.mxu0 %v2677
  %3853 = vmatpush1.msra.mxu0 %v2676
  %3854 = vmatprep.subr.mxu0 %v2684
  %3855 = vmatpush1.msra.mxu0 %v2683
  %3856 = vmatprep.subr.mxu0 %v2691
  %3857 = vmatpush1.msra.mxu0 %v2690
  %3858 = vmatprep.subr.mxu0 %v2698
  %3859 = vmatpush1.msra.mxu0 %v2697
  %3860 = vmatprep.subr.mxu0 %v2705
  %3861 = vmatpush1.msra.mxu0 %v2704
  %3862 = vmatprep.subr.mxu0 %v2712
  %3863 = vmatpush1.msra.mxu0 %v2711
  %3864 = vmatprep.subr.mxu0 %v2719
  %3865 = vmatpush1.msra.mxu0 %v2718
  %3866 = vmatprep.subr.mxu0 %v2726
  %3867 = vmatpush1.msra.mxu0 %v2725
  %3868 = vmatprep.subr.mxu0 %v2733
  %3869 = vmatpush1.msra.mxu0 %v2732
  %3870 = vmatprep.subr.mxu0 %v2740
  %3871 = vmatpush1.msra.mxu0 %v2739
  %3872 = vmatprep.subr.mxu0 %v2747
  %3873 = vmatpush1.msra.mxu0 %v2746
  %3874 = vmatprep.subr.mxu0 %v2754
  %3875 = vmatpush1.msra.mxu0 %v2753
  %3876 = vmatprep.subr.mxu0 %v2761
  %3877 = vmatpush1.msra.mxu0 %v2760
  %3878 = vmatprep.subr.mxu0 %v2768
  %3879 = vmatpush1.msra.mxu0 %v2767
  %3880 = vmatprep.subr.mxu0 %v2775
  %3881 = vmatpush1.msra.mxu0 %v2774
  %3882 = vmatprep.subr.mxu0 %v2782
  %3883 = vmatpush1.msra.mxu0 %v2781
  %3884 = vmatprep.subr.mxu0 %v2789
  %3885 = vmatpush1.msra.mxu0 %v2788
  %3886 = vmatprep.subr.mxu0 %v2796
  %3887 = vmatpush1.msra.mxu0 %v2795
  %3888 = vmatprep.subr.mxu0 %v2803
  %3889 = vmatpush1.msra.mxu0 %v2802
  %3890 = vmatprep.subr.mxu0 %v2810
  %3891 = vmatpush1.msra.mxu0 %v2809
  %3892 = vmatprep.subr.mxu0 %v2817
  %3893 = vmatpush1.msra.mxu0 %v2816
  %3894 = vmatprep.subr.mxu0 %v2824
  %3895 = vmatpush1.msra.mxu0 %v2823
  %3896 = vmatprep.subr.mxu0 %v2831
  %3897 = vmatpush1.msra.mxu0 %v2830
  %3898 = vmatprep.subr.mxu0 %v2838
  %3899 = vmatpush1.msra.mxu0 %v2837
  %3900 = vmatprep.subr.mxu0 %v2845
  %3901 = vmatpush1.msra.mxu0 %v2844
  %3902 = vmatprep.subr.mxu0 %v2852
  %3903 = vmatpush1.msra.mxu0 %v2851
  %3904 = vmatprep.subr.mxu0 %v2859
  %3905 = vmatpush1.msra.mxu0 %v2858
  %3906 = vmatprep.subr.mxu0 %v2866
  %3907 = vmatpush1.msra.mxu0 %v2865
  %3908 = vmatprep.subr.mxu0 %v2873
  %3909 = vmatpush1.msra.mxu0 %v2872
  %3910 = vmatprep.mubr.f32.mxu0 %v2200
  %3911 = vmatmul.mubr.f32.gmra.mrb[0].mxu0 %v2199
  %v3912 = vpop.f32.mrb[0].mxu0
  %v3913 = vadd.f32 %v3842, %v3912
  %v3914 = vpop.f32.mrb[0].mxu0
  %v3915 = vadd.f32 %v3844, %v3914
  %3916 = vdwg.mxu0
  %3917 = vmatprep.subr.mxu0 %v2880
  %3918 = vmatpush1.msra.mxu0 %v2879
  %3919 = vmatprep.subr.mxu0 %v2887
  %3920 = vmatpush1.msra.mxu0 %v2886
  %3921 = vmatprep.subr.mxu0 %v2894
  %3922 = vmatpush1.msra.mxu0 %v2893
  %3923 = vmatprep.subr.mxu0 %v2901
  %3924 = vmatpush1.msra.mxu0 %v2900
  %3925 = vmatprep.subr.mxu0 %v2908
  %3926 = vmatpush1.msra.mxu0 %v2907
  %3927 = vmatprep.subr.mxu0 %v2915
  %3928 = vmatpush1.msra.mxu0 %v2914
  %3929 = vmatprep.subr.mxu0 %v2922
  %3930 = vmatpush1.msra.mxu0 %v2921
  %3931 = vmatprep.subr.mxu0 %v2929
  %3932 = vmatpush1.msra.mxu0 %v2928
  %3933 = vmatprep.subr.mxu0 %v2936
  %3934 = vmatpush1.msra.mxu0 %v2935
  %3935 = vmatprep.subr.mxu0 %v2943
  %3936 = vmatpush1.msra.mxu0 %v2942
  %3937 = vmatprep.subr.mxu0 %v2950
  %3938 = vmatpush1.msra.mxu0 %v2949
  %3939 = vmatprep.subr.mxu0 %v2957
  %3940 = vmatpush1.msra.mxu0 %v2956
  %3941 = vmatprep.subr.mxu0 %v2964
  %3942 = vmatpush1.msra.mxu0 %v2963
  %3943 = vmatprep.subr.mxu0 %v2971
  %3944 = vmatpush1.msra.mxu0 %v2970
  %3945 = vmatprep.subr.mxu0 %v2978
  %3946 = vmatpush1.msra.mxu0 %v2977
  %3947 = vmatprep.subr.mxu0 %v2985
  %3948 = vmatpush1.msra.mxu0 %v2984
  %3949 = vmatprep.subr.mxu0 %v2992
  %3950 = vmatpush1.msra.mxu0 %v2991
  %3951 = vmatprep.subr.mxu0 %v2999
  %3952 = vmatpush1.msra.mxu0 %v2998
  %3953 = vmatprep.subr.mxu0 %v3006
  %3954 = vmatpush1.msra.mxu0 %v3005
  %3955 = vmatprep.subr.mxu0 %v3013
  %3956 = vmatpush1.msra.mxu0 %v3012
  %3957 = vmatprep.subr.mxu0 %v3020
  %3958 = vmatpush1.msra.mxu0 %v3019
  %3959 = vmatprep.subr.mxu0 %v3027
  %3960 = vmatpush1.msra.mxu0 %v3026
  %3961 = vmatprep.subr.mxu0 %v3034
  %3962 = vmatpush1.msra.mxu0 %v3033
  %3963 = vmatprep.subr.mxu0 %v3041
  %3964 = vmatpush1.msra.mxu0 %v3040
  %3965 = vmatprep.subr.mxu0 %v3048
  %3966 = vmatpush1.msra.mxu0 %v3047
  %3967 = vmatprep.subr.mxu0 %v3055
  %3968 = vmatpush1.msra.mxu0 %v3054
  %3969 = vmatprep.subr.mxu0 %v3062
  %3970 = vmatpush1.msra.mxu0 %v3061
  %3971 = vmatprep.subr.mxu0 %v3069
  %3972 = vmatpush1.msra.mxu0 %v3068
  %3973 = vmatprep.subr.mxu0 %v3076
  %3974 = vmatpush1.msra.mxu0 %v3075
  %3975 = vmatprep.subr.mxu0 %v3083
  %3976 = vmatpush1.msra.mxu0 %v3082
  %3977 = vmatprep.subr.mxu0 %v3090
  %3978 = vmatpush1.msra.mxu0 %v3089
  %3979 = vmatprep.subr.mxu0 %v3097
  %3980 = vmatpush1.msra.mxu0 %v3096
  %3981 = vmatprep.mubr.f32.mxu0 %v2202
  %3982 = vmatmul.mubr.f32.gmra.mrb[0].mxu0 %v2201
  %v3983 = vpop.f32.mrb[0].mxu0
  %v3984 = vadd.f32 %v3913, %v3983
  %v3985 = vpop.f32.mrb[0].mxu0
  %v3986 = vadd.f32 %v3915, %v3985
  %3987 = vdwg.mxu0
  %3988 = vmatprep.subr.mxu0 0.0
  %3989 = vmatpush1.msra.mxu0 %v2209
  %3990 = vmatprep.subr.mxu0 0.0
  %3991 = vmatpush1.msra.mxu0 %v2216
  %3992 = vmatprep.subr.mxu0 0.0
  %3993 = vmatpush1.msra.mxu0 %v2223
  %3994 = vmatprep.subr.mxu0 0.0
  %3995 = vmatpush1.msra.mxu0 %v2230
  %3996 = vmatprep.subr.mxu0 0.0
  %3997 = vmatpush1.msra.mxu0 %v2237
  %3998 = vmatprep.subr.mxu0 0.0
  %3999 = vmatpush1.msra.mxu0 %v2244
  %4000 = vmatprep.subr.mxu0 0.0
  %4001 = vmatpush1.msra.mxu0 %v2251
  %4002 = vmatprep.subr.mxu0 0.0
  %4003 = vmatpush1.msra.mxu0 %v2258
  %4004 = vmatprep.subr.mxu0 0.0
  %4005 = vmatpush1.msra.mxu0 %v2265
  %4006 = vmatprep.subr.mxu0 0.0
  %4007 = vmatpush1.msra.mxu0 %v2272
  %4008 = vmatprep.subr.mxu0 0.0
  %4009 = vmatpush1.msra.mxu0 %v2279
  %4010 = vmatprep.subr.mxu0 0.0
  %4011 = vmatpush1.msra.mxu0 %v2286
  %4012 = vmatprep.subr.mxu0 0.0
  %4013 = vmatpush1.msra.mxu0 %v2293
  %4014 = vmatprep.subr.mxu0 0.0
  %4015 = vmatpush1.msra.mxu0 %v2300
  %4016 = vmatprep.subr.mxu0 0.0
  %4017 = vmatpush1.msra.mxu0 %v2307
  %4018 = vmatprep.subr.mxu0 0.0
  %4019 = vmatpush1.msra.mxu0 %v2314
  %4020 = vmatprep.subr.mxu0 0.0
  %4021 = vmatpush1.msra.mxu0 %v2321
  %4022 = vmatprep.subr.mxu0 0.0
  %4023 = vmatpush1.msra.mxu0 %v2328
  %4024 = vmatprep.subr.mxu0 0.0
  %4025 = vmatpush1.msra.mxu0 %v2335
  %4026 = vmatprep.subr.mxu0 0.0
  %4027 = vmatpush1.msra.mxu0 %v2342
  %4028 = vmatprep.subr.mxu0 0.0
  %4029 = vmatpush1.msra.mxu0 %v2349
  %4030 = vmatprep.subr.mxu0 0.0
  %4031 = vmatpush1.msra.mxu0 %v2356
  %4032 = vmatprep.subr.mxu0 0.0
  %4033 = vmatpush1.msra.mxu0 %v2363
  %4034 = vmatprep.subr.mxu0 0.0
  %4035 = vmatpush1.msra.mxu0 %v2370
  %4036 = vmatprep.subr.mxu0 0.0
  %4037 = vmatpush1.msra.mxu0 %v2377
  %4038 = vmatprep.subr.mxu0 0.0
  %4039 = vmatpush1.msra.mxu0 %v2384
  %4040 = vmatprep.subr.mxu0 0.0
  %4041 = vmatpush1.msra.mxu0 %v2391
  %4042 = vmatprep.subr.mxu0 0.0
  %4043 = vmatpush1.msra.mxu0 %v2398
  %4044 = vmatprep.subr.mxu0 0.0
  %4045 = vmatpush1.msra.mxu0 %v2405
  %4046 = vmatprep.subr.mxu0 0.0
  %4047 = vmatpush1.msra.mxu0 %v2412
  %4048 = vmatprep.subr.mxu0 0.0
  %4049 = vmatpush1.msra.mxu0 %v2419
  %4050 = vmatprep.subr.mxu0 0.0
  %4051 = vmatpush1.msra.mxu0 %v2426
  %4052 = vmatprep.mubr.f32.mxu0 %v2196
  %4053 = vmatmul.mubr.f32.gmra.mrb[0].mxu0 %v2195
  %v4054 = vpop.f32.mrb[0].mxu0
  %v4055 = vadd.f32 %v3128, %v4054
  %v4056 = vpop.f32.mrb[0].mxu0
  %4057 = vdwg.mxu0
  %4058 = vmatprep.subr.mxu0 0.0
  %4059 = vmatpush1.msra.mxu0 %v2433
  %4060 = vmatprep.subr.mxu0 0.0
  %4061 = vmatpush1.msra.mxu0 %v2440
  %4062 = vmatprep.subr.mxu0 0.0
  %4063 = vmatpush1.msra.mxu0 %v2447
  %4064 = vmatprep.subr.mxu0 0.0
  %4065 = vmatpush1.msra.mxu0 %v2454
  %4066 = vmatprep.subr.mxu0 0.0
  %4067 = vmatpush1.msra.mxu0 %v2461
  %4068 = vmatprep.subr.mxu0 0.0
  %4069 = vmatpush1.msra.mxu0 %v2468
  %4070 = vmatprep.subr.mxu0 0.0
  %4071 = vmatpush1.msra.mxu0 %v2475
  %4072 = vmatprep.subr.mxu0 0.0
  %4073 = vmatpush1.msra.mxu0 %v2482
  %4074 = vmatprep.subr.mxu0 0.0
  %4075 = vmatpush1.msra.mxu0 %v2489
  %4076 = vmatprep.subr.mxu0 0.0
  %4077 = vmatpush1.msra.mxu0 %v2496
  %4078 = vmatprep.subr.mxu0 0.0
  %4079 = vmatpush1.msra.mxu0 %v2503
  %4080 = vmatprep.subr.mxu0 0.0
  %4081 = vmatpush1.msra.mxu0 %v2510
  %4082 = vmatprep.subr.mxu0 0.0
  %4083 = vmatpush1.msra.mxu0 %v2517
  %4084 = vmatprep.subr.mxu0 0.0
  %4085 = vmatpush1.msra.mxu0 %v2524
  %4086 = vmatprep.subr.mxu0 0.0
  %4087 = vmatpush1.msra.mxu0 %v2531
  %4088 = vmatprep.subr.mxu0 0.0
  %4089 = vmatpush1.msra.mxu0 %v2538
  %4090 = vmatprep.subr.mxu0 0.0
  %4091 = vmatpush1.msra.mxu0 %v2545
  %4092 = vmatprep.subr.mxu0 0.0
  %4093 = vmatpush1.msra.mxu0 %v2552
  %4094 = vmatprep.subr.mxu0 0.0
  %4095 = vmatpush1.msra.mxu0 %v2559
  %4096 = vmatprep.subr.mxu0 0.0
  %4097 = vmatpush1.msra.mxu0 %v2566
  %4098 = vmatprep.subr.mxu0 0.0
  %4099 = vmatpush1.msra.mxu0 %v2573
  %4100 = vmatprep.subr.mxu0 0.0
  %4101 = vmatpush1.msra.mxu0 %v2580
  %4102 = vmatprep.subr.mxu0 0.0
  %4103 = vmatpush1.msra.mxu0 %v2587
  %4104 = vmatprep.subr.mxu0 0.0
  %4105 = vmatpush1.msra.mxu0 %v2594
  %4106 = vmatprep.subr.mxu0 0.0
  %4107 = vmatpush1.msra.mxu0 %v2601
  %4108 = vmatprep.subr.mxu0 0.0
  %4109 = vmatpush1.msra.mxu0 %v2608
  %4110 = vmatprep.subr.mxu0 0.0
  %4111 = vmatpush1.msra.mxu0 %v2615
  %4112 = vmatprep.subr.mxu0 0.0
  %4113 = vmatpush1.msra.mxu0 %v2622
  %4114 = vmatprep.subr.mxu0 0.0
  %4115 = vmatpush1.msra.mxu0 %v2629
  %4116 = vmatprep.subr.mxu0 0.0
  %4117 = vmatpush1.msra.mxu0 %v2636
  %4118 = vmatprep.subr.mxu0 0.0
  %4119 = vmatpush1.msra.mxu0 %v2643
  %4120 = vmatprep.subr.mxu0 0.0
  %4121 = vmatpush1.msra.mxu0 %v2650
  %4122 = vmatprep.mubr.f32.mxu0 %v2198
  %4123 = vmatmul.mubr.f32.gmra.mrb[0].mxu0 %v2197
  %v4124 = vpop.f32.mrb[0].mxu0
  %v4125 = vadd.f32 %v4055, %v4124
  %v4126 = vpop.f32.mrb[0].mxu0
  %4127 = vdwg.mxu0
  %4128 = vmatprep.subr.mxu0 0.0
  %4129 = vmatpush1.msra.mxu0 %v2657
  %4130 = vmatprep.subr.mxu0 0.0
  %4131 = vmatpush1.msra.mxu0 %v2664
  %4132 = vmatprep.subr.mxu0 0.0
  %4133 = vmatpush1.msra.mxu0 %v2671
  %4134 = vmatprep.subr.mxu0 0.0
  %4135 = vmatpush1.msra.mxu0 %v2678
  %4136 = vmatprep.subr.mxu0 0.0
  %4137 = vmatpush1.msra.mxu0 %v2685
  %4138 = vmatprep.subr.mxu0 0.0
  %4139 = vmatpush1.msra.mxu0 %v2692
  %4140 = vmatprep.subr.mxu0 0.0
  %4141 = vmatpush1.msra.mxu0 %v2699
  %4142 = vmatprep.subr.mxu0 0.0
  %4143 = vmatpush1.msra.mxu0 %v2706
  %4144 = vmatprep.subr.mxu0 0.0
  %4145 = vmatpush1.msra.mxu0 %v2713
  %4146 = vmatprep.subr.mxu0 0.0
  %4147 = vmatpush1.msra.mxu0 %v2720
  %4148 = vmatprep.subr.mxu0 0.0
  %4149 = vmatpush1.msra.mxu0 %v2727
  %4150 = vmatprep.subr.mxu0 0.0
  %4151 = vmatpush1.msra.mxu0 %v2734
  %4152 = vmatprep.subr.mxu0 0.0
  %4153 = vmatpush1.msra.mxu0 %v2741
  %4154 = vmatprep.subr.mxu0 0.0
  %4155 = vmatpush1.msra.mxu0 %v2748
  %4156 = vmatprep.subr.mxu0 0.0
  %4157 = vmatpush1.msra.mxu0 %v2755
  %4158 = vmatprep.subr.mxu0 0.0
  %4159 = vmatpush1.msra.mxu0 %v2762
  %4160 = vmatprep.subr.mxu0 0.0
  %4161 = vmatpush1.msra.mxu0 %v2769
  %4162 = vmatprep.subr.mxu0 0.0
  %4163 = vmatpush1.msra.mxu0 %v2776
  %4164 = vmatprep.subr.mxu0 0.0
  %4165 = vmatpush1.msra.mxu0 %v2783
  %4166 = vmatprep.subr.mxu0 0.0
  %4167 = vmatpush1.msra.mxu0 %v2790
  %4168 = vmatprep.subr.mxu0 0.0
  %4169 = vmatpush1.msra.mxu0 %v2797
  %4170 = vmatprep.subr.mxu0 0.0
  %4171 = vmatpush1.msra.mxu0 %v2804
  %4172 = vmatprep.subr.mxu0 0.0
  %4173 = vmatpush1.msra.mxu0 %v2811
  %4174 = vmatprep.subr.mxu0 0.0
  %4175 = vmatpush1.msra.mxu0 %v2818
  %4176 = vmatprep.subr.mxu0 0.0
  %4177 = vmatpush1.msra.mxu0 %v2825
  %4178 = vmatprep.subr.mxu0 0.0
  %4179 = vmatpush1.msra.mxu0 %v2832
  %4180 = vmatprep.subr.mxu0 0.0
  %4181 = vmatpush1.msra.mxu0 %v2839
  %4182 = vmatprep.subr.mxu0 0.0
  %4183 = vmatpush1.msra.mxu0 %v2846
  %4184 = vmatprep.subr.mxu0 0.0
  %4185 = vmatpush1.msra.mxu0 %v2853
  %4186 = vmatprep.subr.mxu0 0.0
  %4187 = vmatpush1.msra.mxu0 %v2860
  %4188 = vmatprep.subr.mxu0 0.0
  %4189 = vmatpush1.msra.mxu0 %v2867
  %4190 = vmatprep.subr.mxu0 0.0
  %4191 = vmatpush1.msra.mxu0 %v2874
  %4192 = vmatprep.mubr.f32.mxu0 %v2200
  %4193 = vmatmul.mubr.f32.gmra.mrb[0].mxu0 %v2199
  %v4194 = vpop.f32.mrb[0].mxu0
  %v4195 = vadd.f32 %v4125, %v4194
  %v4196 = vpop.f32.mrb[0].mxu0
  %4197 = vdwg.mxu0
  %4198 = vmatprep.subr.mxu0 0.0
  %4199 = vmatpush1.msra.mxu0 %v2881
  %4200 = vmatprep.subr.mxu0 0.0
  %4201 = vmatpush1.msra.mxu0 %v2888
  %4202 = vmatprep.subr.mxu0 0.0
  %4203 = vmatpush1.msra.mxu0 %v2895
  %4204 = vmatprep.subr.mxu0 0.0
  %4205 = vmatpush1.msra.mxu0 %v2902
  %4206 = vmatprep.subr.mxu0 0.0
  %4207 = vmatpush1.msra.mxu0 %v2909
  %4208 = vmatprep.subr.mxu0 0.0
  %4209 = vmatpush1.msra.mxu0 %v2916
  %4210 = vmatprep.subr.mxu0 0.0
  %4211 = vmatpush1.msra.mxu0 %v2923
  %4212 = vmatprep.subr.mxu0 0.0
  %4213 = vmatpush1.msra.mxu0 %v2930
  %4214 = vmatprep.subr.mxu0 0.0
  %4215 = vmatpush1.msra.mxu0 %v2937
  %4216 = vmatprep.subr.mxu0 0.0
  %4217 = vmatpush1.msra.mxu0 %v2944
  %4218 = vmatprep.subr.mxu0 0.0
  %4219 = vmatpush1.msra.mxu0 %v2951
  %4220 = vmatprep.subr.mxu0 0.0
  %4221 = vmatpush1.msra.mxu0 %v2958
  %4222 = vmatprep.subr.mxu0 0.0
  %4223 = vmatpush1.msra.mxu0 %v2965
  %4224 = vmatprep.subr.mxu0 0.0
  %4225 = vmatpush1.msra.mxu0 %v2972
  %4226 = vmatprep.subr.mxu0 0.0
  %4227 = vmatpush1.msra.mxu0 %v2979
  %4228 = vmatprep.subr.mxu0 0.0
  %4229 = vmatpush1.msra.mxu0 %v2986
  %4230 = vmatprep.subr.mxu0 0.0
  %4231 = vmatpush1.msra.mxu0 %v2993
  %4232 = vmatprep.subr.mxu0 0.0
  %4233 = vmatpush1.msra.mxu0 %v3000
  %4234 = vmatprep.subr.mxu0 0.0
  %4235 = vmatpush1.msra.mxu0 %v3007
  %4236 = vmatprep.subr.mxu0 0.0
  %4237 = vmatpush1.msra.mxu0 %v3014
  %4238 = vmatprep.subr.mxu0 0.0
  %4239 = vmatpush1.msra.mxu0 %v3021
  %4240 = vmatprep.subr.mxu0 0.0
  %4241 = vmatpush1.msra.mxu0 %v3028
  %4242 = vmatprep.subr.mxu0 0.0
  %4243 = vmatpush1.msra.mxu0 %v3035
  %4244 = vmatprep.subr.mxu0 0.0
  %4245 = vmatpush1.msra.mxu0 %v3042
  %4246 = vmatprep.subr.mxu0 0.0
  %4247 = vmatpush1.msra.mxu0 %v3049
  %4248 = vmatprep.subr.mxu0 0.0
  %4249 = vmatpush1.msra.mxu0 %v3056
  %4250 = vmatprep.subr.mxu0 0.0
  %4251 = vmatpush1.msra.mxu0 %v3063
  %4252 = vmatprep.subr.mxu0 0.0
  %4253 = vmatpush1.msra.mxu0 %v3070
  %4254 = vmatprep.subr.mxu0 0.0
  %4255 = vmatpush1.msra.mxu0 %v3077
  %4256 = vmatprep.subr.mxu0 0.0
  %4257 = vmatpush1.msra.mxu0 %v3084
  %4258 = vmatprep.subr.mxu0 0.0
  %4259 = vmatpush1.msra.mxu0 %v3091
  %4260 = vmatprep.subr.mxu0 0.0
  %4261 = vmatpush1.msra.mxu0 %v3098
  %4262 = vmatprep.mubr.f32.mxu0 %v2202
  %4263 = vmatmul.mubr.f32.gmra.mrb[0].mxu0 %v2201
  %v4264 = vpop.f32.mrb[0].mxu0
  %v4265 = vadd.f32 %v4195, %v4264
  %v4266 = vpop.f32.mrb[0].mxu0
  %4267 = vdwg.mxu0
  %v4268 = vtanh.pop %v3416
  %v4269 = vtanh.pop %v3418
  %v4270 = vtanh.pop %v3700
  %v4271 = vtanh.pop %v3702
  %v4272 = vtanh.pop %v3984
  %v4273 = vtanh.pop %v3986
  %v4274 = vtanh.pop %v4265
  %4275 = vst [vmem:[%s17] sm:$0xff] %v4268
  %4276 = vst [vmem:[%s17 + $0x8] sm:$0xff] %v4269
  %4277 = vst [vmem:[%s17 + $0x10] sm:$0xff] %v4270
  %4278 = vst [vmem:[%s17 + $0x18] sm:$0xff] %v4271
  %4279 = vst [vmem:[%s17 + $0x20] sm:$0xff] %v4272
  %4280 = vst [vmem:[%s17 + $0x28] sm:$0xff] %v4273
  %4281 = vst [vmem:[%s17 + $0x30] sm:$0xff] %v4274
  // Predicated region
  $region70: #{_generator_forward_impl.1} parent=0 // pred_check
    _
  $region71: #{_generator_forward_impl.1} parent=0 // pred_check_branch
    %4283 = sbr.rel (0) target = $region73
  $region72: #{_generator_forward_impl.1} parent=0 // pred_region
    _
  $region73: #{_generator_forward_impl.1} parent=0 // pred_fallthru
    _
  // Predicated region
  $region74: #{_generator_forward_impl.1} parent=0 // pred_check
    _
  $region75: #{_generator_forward_impl.1} parent=0 // pred_check_branch
    %4285 = sbr.rel (0) target = $region77
  $region76: #{_generator_forward_impl.1} parent=0 // pred_region
    _
  $region77: #{_generator_forward_impl.1} parent=0 // pred_fallthru
    _

</llo_original>
